<compile_context>
chip_gen: v7x
topology: tpu7x:2x2x1
jax: 0.10.0
libtpu: 0.0.40
codegen_flags: <defaults>
</compile_context>

<pallas_src>
import math
import jax
import jax.numpy as jnp
from jax import lax
from jax.experimental import pallas as pl
from jax.experimental.pallas import tpu as pltpu

LANE = 128            # channel padding target (lane width)
HALO = 16             # halo rows fetched past each time tile (>= max k'-1 = 14)
TT_MAX = 512          # max time-tile rows (perf review: 512-1024)
COMPUTE_DTYPE = jnp.float32   # set to jnp.bfloat16 to halve HBM/VMEM traffic


def _round_up(x, m):
    return (x + m - 1) // m * m


# ---------------------------------------------------------------------------
# Pallas kernel: conv as k' shifted matmuls, fused bias + LeakyReLU
# ---------------------------------------------------------------------------
def _make_conv_kernel(k_f, K, N, TT, with_lrelu):
    def kernel(x_ref, h_ref, w_ref, b_ref, *rest):
        if with_lrelu:
            y_ref, ya_ref, xh = rest
        else:
            y_ref, xh = rest
            ya_ref = None
        x = x_ref[0]                                    # (TT, K)
        if k_f > 1:
            # Stage main tile + halo contiguously in VMEM scratch so shifted
            # taps can be read as static row windows.
            xh[0:TT, :] = x
            xh[TT:TT + HALO, :] = h_ref[0]
        acc = jnp.zeros((TT, N), jnp.float32)
        for q in range(k_f):                            # static unroll over taps
            xq = x if q == 0 else xh[q:q + TT, :]
            wq = w_ref[q]                               # (K, N)
            if K == 1:
                # Cin == 1 (first layer): VPU broadcast MAC, skip the MXU.
                acc = acc + xq * wq
            else:
                acc = acc + jnp.dot(xq, wq, preferred_element_type=jnp.float32)
        y = acc + b_ref[...]                            # (TT, N) + (1, N)
        y_ref[0] = y                                    # Conv1d output
        if with_lrelu:
            ya_ref[0] = jnp.where(y > 0, y, 0.1 * y)    # LeakyReLU(0.1) output

    return kernel


# ---------------------------------------------------------------------------
# Weight folding: PyTorch (Cout, Cin, k) -> (k', s*Cpad_in, Cpad_out)
# ---------------------------------------------------------------------------
def _fold_weight(w, b, stride, c_in_pad, c_out_pad):
    c_out, c_in, k = w.shape
    k_f = (k - 1) // stride + 1
    wf = jnp.zeros((k_f, stride * c_in_pad, c_out_pad), jnp.float32)
    for q in range(k_f):
        for r in range(stride):
            t = q * stride + r
            if t < k:
                wf = wf.at[q, r * c_in_pad:r * c_in_pad + c_in, :c_out].set(
                    w[:, :, t].T)
    bf = jnp.zeros((1, c_out_pad), jnp.float32).at[0, :c_out].set(b)
    return wf, bf


# ---------------------------------------------------------------------------
# One Conv1d (+ fused LeakyReLU) layer
# ---------------------------------------------------------------------------
def conv1d_pallas(x_nwc, t_valid, w, b, stride, padding, with_lrelu):
    """x_nwc: (B, M_alloc, Cpad_in) NWC activation; rows >= t_valid and channels
    beyond the real Cin are zero / ignored.  Returns (outputs, T_out) where
    outputs = y_full or (y_full, ya_full), each (B, M_out_alloc, Cpad_out)."""
    B, _, c_in_pad = x_nwc.shape
    c_out, c_in, k = w.shape
    assert c_in <= c_in_pad
    s, p = stride, padding
    t_in = t_valid
    t_out = (t_in + 2 * p - k) // s + 1
    assert t_out > 0

    c_out_pad = _round_up(c_out, LANE)
    k_f = (k - 1) // s + 1
    assert k_f - 1 <= HALO
    K = s * c_in_pad
    N = c_out_pad

    TT = min(TT_MAX, _round_up(t_out, HALO))      # time-tile rows (mult of 16)
    n_tiles = pl.cdiv(t_out, TT)
    m_in = _round_up(max(n_tiles * TT + HALO, pl.cdiv(t_in + 2 * p, s)), HALO)
    t_pad = s * m_in

    # Single fused slice+pad per layer (conv zero-padding + tile/halo slack),
    # then a contiguous reshape folding the stride into the channel dim.
    xv = x_nwc[:, :t_in, :]
    x_p = jnp.pad(xv, ((0, 0), (p, t_pad - t_in - p), (0, 0)))
    x_f = x_p.reshape(B, m_in, K).astype(COMPUTE_DTYPE)

    wf, bf = _fold_weight(w, b, s, c_in_pad, c_out_pad)
    wf = wf.astype(COMPUTE_DTYPE)

    m_out_alloc = n_tiles * TT
    kernel = _make_conv_kernel(k_f, K, N, TT, with_lrelu)

    tiles_per_halo = TT // HALO
    in_specs = [
        pl.BlockSpec((1, TT, K), lambda bb, ii: (bb, ii, 0)),
        pl.BlockSpec((1, HALO, K),
                     lambda bb, ii, _t=tiles_per_halo: (bb, (ii + 1) * _t, 0)),
        pl.BlockSpec((k_f, K, N), lambda bb, ii: (0, 0, 0)),
        pl.BlockSpec((1, N), lambda bb, ii: (0, 0)),
    ]
    out_block = pl.BlockSpec((1, TT, N), lambda bb, ii: (bb, ii, 0))
    n_out = 2 if with_lrelu else 1
    out_sds = jax.ShapeDtypeStruct((B, m_out_alloc, N), jnp.float32)
    out_shape = (out_sds,) * n_out if with_lrelu else out_sds
    out_specs = (out_block,) * n_out if with_lrelu else out_block

    itemsize = jnp.dtype(COMPUTE_DTYPE).itemsize
    cost = pl.CostEstimate(
        flops=int(2 * B * m_out_alloc * K * N * k_f),
        transcendentals=0,
        bytes_accessed=int(B * n_tiles * (TT + HALO) * K * itemsize
                           + wf.size * itemsize + bf.size * 4
                           + n_out * B * m_out_alloc * N * 4),
    )

    result = pl.pallas_call(
        kernel,
        out_shape=out_shape,
        grid=(B, n_tiles),
        in_specs=in_specs,
        out_specs=out_specs,
        scratch_shapes=[pltpu.VMEM((TT + HALO, K), COMPUTE_DTYPE)],
        compiler_params=pltpu.CompilerParams(
            dimension_semantics=("parallel", "parallel")),
        cost_estimate=cost,
    )(x_f, x_f, wf, bf)     # x_f passed twice: main tile view + 16-row halo view

    return result, t_out


# ---------------------------------------------------------------------------
# ScaleDiscriminator: parameter init + forward
# ---------------------------------------------------------------------------
def init_scale_discriminator(key,
                             kernel_size=15,
                             channels=(32, 32, 64, 64, 128, 128, 128),
                             stride=(1, 2, 2, 4, 4, 1, 1),
                             padding=(7, 6, 6, 18, 18, 0, 0)):
    """Deterministic init mirroring nn.Conv1d default (uniform +-1/sqrt(fan_in)).
    Channel widths are a scaled-down version of the module defaults (small test)."""
    kernels = [kernel_size] + [3] * 6
    params = []
    in_ch = 1
    for ch, k, s, p in zip(channels, kernels, stride, padding):
        key, kw, kb = jax.random.split(key, 3)
        bound = 1.0 / math.sqrt(in_ch * k)
        w = jax.random.uniform(kw, (ch, in_ch, k), jnp.float32, -bound, bound)
        b = jax.random.uniform(kb, (ch,), jnp.float32, -bound, bound)
        params.append(dict(w=w, b=b, stride=s, padding=p))
        in_ch = ch
    # final Conv1d(in_ch, 1, 3, 1, 1), no activation
    key, kw, kb = jax.random.split(key, 3)
    bound = 1.0 / math.sqrt(in_ch * 3)
    w = jax.random.uniform(kw, (1, in_ch, 3), jnp.float32, -bound, bound)
    b = jax.random.uniform(kb, (1,), jnp.float32, -bound, bound)
    params.append(dict(w=w, b=b, stride=1, padding=1))
    # TODO(synk): nn.AvgPool1d(4, 2, padding=2) is defined in __init__ but never
    # used in forward(), so it is intentionally not implemented here.
    return params


def _to_ncw(y_full, t_out, c_out):
    """Slice time/channel padding off and convert to PyTorch (B, C, T)."""
    return y_full[:, :t_out, :c_out].transpose(0, 2, 1)


def scale_discriminator_forward(params, x):
    """x: (B, 1, T).  Returns the 15 feature maps (after every Sequential layer),
    each in PyTorch (B, C, T) layout."""
    B, _, T = x.shape
    feats = []
    h = x.transpose(0, 2, 1)            # (B, T, 1) NWC; stays NWC between layers
    t_valid = T
    for li, layer in enumerate(params):
        is_last = li == len(params) - 1
        c_out = layer["w"].shape[0]
        outs, t_out = conv1d_pallas(h, t_valid, layer["w"], layer["b"],
                                    layer["stride"], layer["padding"],
                                    with_lrelu=not is_last)
        if is_last:
            feats.append(_to_ncw(outs, t_out, c_out))
        else:
            y_full, ya_full = outs
            feats.append(_to_ncw(y_full, t_out, c_out))     # after Conv1d
            feats.append(_to_ncw(ya_full, t_out, c_out))    # after LeakyReLU(0.1)
            h = ya_full                  # padded NWC fed straight to next layer
            t_valid = t_out
    return feats


# ---------------------------------------------------------------------------
# Pure-JAX reference (for correctness check)
# ---------------------------------------------------------------------------
def _ref_conv1d(x, w, b, stride, padding):
    dn = lax.conv_dimension_numbers(x.shape, w.shape, ("NCH", "OIH", "NCH"))
    y = lax.conv_general_dilated(x, w, (stride,), [(padding, padding)],
                                 dimension_numbers=dn)
    return y + b.reshape(1, -1, 1)


def scale_discriminator_forward_ref(params, x):
    feats = []
    for layer in params[:-1]:
        y = _ref_conv1d(x, layer["w"], layer["b"], layer["stride"], layer["padding"])
        feats.append(y)
        x = jnp.where(y > 0, y, 0.1 * y)
        feats.append(x)
    last = params[-1]
    feats.append(_ref_conv1d(x, last["w"], last["b"], last["stride"], last["padding"]))
    return feats


# ---------------------------------------------------------------------------
if __name__ == "__main__":
    key = jax.random.PRNGKey(0)
    k_param, k_x = jax.random.split(key)

    params = init_scale_discriminator(k_param)

    B, T = 2, 64
    x = jax.random.normal(k_x, (B, 1, T), dtype=jnp.float32)   # (B, 1, T)

    fwd = jax.jit(lambda inp: scale_discriminator_forward(params, inp))
    feats = fwd(x)
    feats = jax.block_until_ready(feats)

    # Sanity: 7 convs + 7 LeakyReLUs + 1 final conv = 15 feature maps.
    assert len(feats) == 15, f"expected 15 feature maps, got {len(feats)}"

    # Numerical check against a pure-JAX reference.
    ref_feats = scale_discriminator_forward_ref(params, x)
    for i, (a, r) in enumerate(zip(feats, ref_feats)):
        assert a.shape == r.shape, f"layer {i}: shape {a.shape} vs {r.shape}"
        assert bool(jnp.all(jnp.isfinite(a))), f"layer {i}: non-finite values"
        assert bool(jnp.allclose(a, r, rtol=1e-2, atol=1e-3)), f"layer {i}: mismatch"

    print("KERNEL_OK")
</pallas_src>

<mosaic_0001>
module attributes {stable_mosaic.version = 11 : i64} {
  func.func @kernel(%arg0: i32, %arg1: i32, %arg2: memref<1x64x1xf32, #tpu.memory_space<vmem>>, %arg3: memref<1x16x1xf32, #tpu.memory_space<vmem>>, %arg4: memref<15x1x128xf32, #tpu.memory_space<vmem>>, %arg5: memref<1x128xf32, #tpu.memory_space<vmem>>, %arg6: memref<1x64x128xf32, #tpu.memory_space<vmem>>, %arg7: memref<1x64x128xf32, #tpu.memory_space<vmem>>, %arg8: memref<80x1xf32, #tpu.memory_space<vmem>>) attributes {dimension_semantics = [#tpu.dimension_semantics<parallel>, #tpu.dimension_semantics<parallel>], iteration_bounds = array<i64: 2, 1>, scalar_prefetch = 0 : i64, scratch_operands = 1 : i64, tpu.core_type = #tpu.core_type<tc>, window_params = [{transform_indices = @transform_0, window_bounds = array<i64: 1, 64, 1>}, {transform_indices = @transform_1, window_bounds = array<i64: 1, 16, 1>}, {pipeline_mode = #tpu.pipeline_mode<synchronous>, transform_indices = @transform_2, window_bounds = array<i64: 15, 1, 128>}, {pipeline_mode = #tpu.pipeline_mode<synchronous>, transform_indices = @transform_3, window_bounds = array<i64: 1, 128>}, {transform_indices = @transform_4, window_bounds = array<i64: 1, 64, 128>}, {transform_indices = @transform_5, window_bounds = array<i64: 1, 64, 128>}]} {
    %c0 = arith.constant 0 : index
    %c0_0 = arith.constant 0 : index
    %c0_1 = arith.constant 0 : index
    %0 = vector.load %arg2[%c0, %c0_0, %c0_1] : memref<1x64x1xf32, #tpu.memory_space<vmem>>, vector<1x64x1xf32>
    %1 = vector.shape_cast %0 : vector<1x64x1xf32> to vector<64x1xf32>
    %c0_2 = arith.constant 0 : index
    %c0_3 = arith.constant 0 : index
    %2 = vector.load %arg8[%c0_2, %c0_3] : memref<80x1xf32, #tpu.memory_space<vmem>>, vector<64x1xf32>
    tpu.vector_store %arg8[%c0_2, %c0_3], %1 {strides = array<i32>} : memref<80x1xf32, #tpu.memory_space<vmem>>, vector<64x1xf32>,
    %c0_4 = arith.constant 0 : index
    %c0_5 = arith.constant 0 : index
    %c0_6 = arith.constant 0 : index
    %3 = vector.load %arg3[%c0_4, %c0_5, %c0_6] : memref<1x16x1xf32, #tpu.memory_space<vmem>>, vector<1x16x1xf32>
    %4 = vector.shape_cast %3 : vector<1x16x1xf32> to vector<16x1xf32>
    %c64 = arith.constant 64 : index
    %c0_7 = arith.constant 0 : index
    %5 = vector.load %arg8[%c64, %c0_7] : memref<80x1xf32, #tpu.memory_space<vmem>>, vector<16x1xf32>
    tpu.vector_store %arg8[%c64, %c0_7], %4 {strides = array<i32>} : memref<80x1xf32, #tpu.memory_space<vmem>>, vector<16x1xf32>,
    %cst = arith.constant 0.000000e+00 : f32
    %6 = vector.broadcast %cst : f32 to vector<64x128xf32>
    %c0_8 = arith.constant 0 : index
    %c0_9 = arith.constant 0 : index
    %c0_10 = arith.constant 0 : index
    %7 = vector.load %arg4[%c0_8, %c0_9, %c0_10] : memref<15x1x128xf32, #tpu.memory_space<vmem>>, vector<1x1x128xf32>
    %8 = vector.shape_cast %7 : vector<1x1x128xf32> to vector<1x128xf32>
    %9 = vector.broadcast %1 : vector<64x1xf32> to vector<64x128xf32>
    %10 = vector.broadcast %8 : vector<1x128xf32> to vector<64x128xf32>
    %11 = arith.mulf %9, %10 : vector<64x128xf32>
    %12 = arith.addf %6, %11 : vector<64x128xf32>
    %c1 = arith.constant 1 : index
    %c0_11 = arith.constant 0 : index
    %13 = vector.load %arg8[%c1, %c0_11] : memref<80x1xf32, #tpu.memory_space<vmem>>, vector<64x1xf32>
    %c1_12 = arith.constant 1 : index
    %c0_13 = arith.constant 0 : index
    %c0_14 = arith.constant 0 : index
    %14 = vector.load %arg4[%c1_12, %c0_13, %c0_14] : memref<15x1x128xf32, #tpu.memory_space<vmem>>, vector<1x1x128xf32>
    %15 = vector.shape_cast %14 : vector<1x1x128xf32> to vector<1x128xf32>
    %16 = vector.broadcast %13 : vector<64x1xf32> to vector<64x128xf32>
    %17 = vector.broadcast %15 : vector<1x128xf32> to vector<64x128xf32>
    %18 = arith.mulf %16, %17 : vector<64x128xf32>
    %19 = arith.addf %12, %18 : vector<64x128xf32>
    %c2 = arith.constant 2 : index
    %c0_15 = arith.constant 0 : index
    %20 = vector.load %arg8[%c2, %c0_15] : memref<80x1xf32, #tpu.memory_space<vmem>>, vector<64x1xf32>
    %c2_16 = arith.constant 2 : index
    %c0_17 = arith.constant 0 : index
    %c0_18 = arith.constant 0 : index
    %21 = vector.load %arg4[%c2_16, %c0_17, %c0_18] : memref<15x1x128xf32, #tpu.memory_space<vmem>>, vector<1x1x128xf32>
    %22 = vector.shape_cast %21 : vector<1x1x128xf32> to vector<1x128xf32>
    %23 = vector.broadcast %20 : vector<64x1xf32> to vector<64x128xf32>
    %24 = vector.broadcast %22 : vector<1x128xf32> to vector<64x128xf32>
    %25 = arith.mulf %23, %24 : vector<64x128xf32>
    %26 = arith.addf %19, %25 : vector<64x128xf32>
    %c3 = arith.constant 3 : index
    %c0_19 = arith.constant 0 : index
    %27 = vector.load %arg8[%c3, %c0_19] : memref<80x1xf32, #tpu.memory_space<vmem>>, vector<64x1xf32>
    %c3_20 = arith.constant 3 : index
    %c0_21 = arith.constant 0 : index
    %c0_22 = arith.constant 0 : index
    %28 = vector.load %arg4[%c3_20, %c0_21, %c0_22] : memref<15x1x128xf32, #tpu.memory_space<vmem>>, vector<1x1x128xf32>
    %29 = vector.shape_cast %28 : vector<1x1x128xf32> to vector<1x128xf32>
    %30 = vector.broadcast %27 : vector<64x1xf32> to vector<64x128xf32>
    %31 = vector.broadcast %29 : vector<1x128xf32> to vector<64x128xf32>
    %32 = arith.mulf %30, %31 : vector<64x128xf32>
    %33 = arith.addf %26, %32 : vector<64x128xf32>
    %c4 = arith.constant 4 : index
    %c0_23 = arith.constant 0 : index
    %34 = vector.load %arg8[%c4, %c0_23] : memref<80x1xf32, #tpu.memory_space<vmem>>, vector<64x1xf32>
    %c4_24 = arith.constant 4 : index
    %c0_25 = arith.constant 0 : index
    %c0_26 = arith.constant 0 : index
    %35 = vector.load %arg4[%c4_24, %c0_25, %c0_26] : memref<15x1x128xf32, #tpu.memory_space<vmem>>, vector<1x1x128xf32>
    %36 = vector.shape_cast %35 : vector<1x1x128xf32> to vector<1x128xf32>
    %37 = vector.broadcast %34 : vector<64x1xf32> to vector<64x128xf32>
    %38 = vector.broadcast %36 : vector<1x128xf32> to vector<64x128xf32>
    %39 = arith.mulf %37, %38 : vector<64x128xf32>
    %40 = arith.addf %33, %39 : vector<64x128xf32>
    %c5 = arith.constant 5 : index
    %c0_27 = arith.constant 0 : index
    %41 = vector.load %arg8[%c5, %c0_27] : memref<80x1xf32, #tpu.memory_space<vmem>>, vector<64x1xf32>
    %c5_28 = arith.constant 5 : index
    %c0_29 = arith.constant 0 : index
    %c0_30 = arith.constant 0 : index
    %42 = vector.load %arg4[%c5_28, %c0_29, %c0_30] : memref<15x1x128xf32, #tpu.memory_space<vmem>>, vector<1x1x128xf32>
    %43 = vector.shape_cast %42 : vector<1x1x128xf32> to vector<1x128xf32>
    %44 = vector.broadcast %41 : vector<64x1xf32> to vector<64x128xf32>
    %45 = vector.broadcast %43 : vector<1x128xf32> to vector<64x128xf32>
    %46 = arith.mulf %44, %45 : vector<64x128xf32>
    %47 = arith.addf %40, %46 : vector<64x128xf32>
    %c6 = arith.constant 6 : index
    %c0_31 = arith.constant 0 : index
    %48 = vector.load %arg8[%c6, %c0_31] : memref<80x1xf32, #tpu.memory_space<vmem>>, vector<64x1xf32>
    %c6_32 = arith.constant 6 : index
    %c0_33 = arith.constant 0 : index
    %c0_34 = arith.constant 0 : index
    %49 = vector.load %arg4[%c6_32, %c0_33, %c0_34] : memref<15x1x128xf32, #tpu.memory_space<vmem>>, vector<1x1x128xf32>
    %50 = vector.shape_cast %49 : vector<1x1x128xf32> to vector<1x128xf32>
    %51 = vector.broadcast %48 : vector<64x1xf32> to vector<64x128xf32>
    %52 = vector.broadcast %50 : vector<1x128xf32> to vector<64x128xf32>
    %53 = arith.mulf %51, %52 : vector<64x128xf32>
    %54 = arith.addf %47, %53 : vector<64x128xf32>
    %c7 = arith.constant 7 : index
    %c0_35 = arith.constant 0 : index
    %55 = vector.load %arg8[%c7, %c0_35] : memref<80x1xf32, #tpu.memory_space<vmem>>, vector<64x1xf32>
    %c7_36 = arith.constant 7 : index
    %c0_37 = arith.constant 0 : index
    %c0_38 = arith.constant 0 : index
    %56 = vector.load %arg4[%c7_36, %c0_37, %c0_38] : memref<15x1x128xf32, #tpu.memory_space<vmem>>, vector<1x1x128xf32>
    %57 = vector.shape_cast %56 : vector<1x1x128xf32> to vector<1x128xf32>
    %58 = vector.broadcast %55 : vector<64x1xf32> to vector<64x128xf32>
    %59 = vector.broadcast %57 : vector<1x128xf32> to vector<64x128xf32>
    %60 = arith.mulf %58, %59 : vector<64x128xf32>
    %61 = arith.addf %54, %60 : vector<64x128xf32>
    %c8 = arith.constant 8 : index
    %c0_39 = arith.constant 0 : index
    %62 = vector.load %arg8[%c8, %c0_39] : memref<80x1xf32, #tpu.memory_space<vmem>>, vector<64x1xf32>
    %c8_40 = arith.constant 8 : index
    %c0_41 = arith.constant 0 : index
    %c0_42 = arith.constant 0 : index
    %63 = vector.load %arg4[%c8_40, %c0_41, %c0_42] : memref<15x1x128xf32, #tpu.memory_space<vmem>>, vector<1x1x128xf32>
    %64 = vector.shape_cast %63 : vector<1x1x128xf32> to vector<1x128xf32>
    %65 = vector.broadcast %62 : vector<64x1xf32> to vector<64x128xf32>
    %66 = vector.broadcast %64 : vector<1x128xf32> to vector<64x128xf32>
    %67 = arith.mulf %65, %66 : vector<64x128xf32>
    %68 = arith.addf %61, %67 : vector<64x128xf32>
    %c9 = arith.constant 9 : index
    %c0_43 = arith.constant 0 : index
    %69 = vector.load %arg8[%c9, %c0_43] : memref<80x1xf32, #tpu.memory_space<vmem>>, vector<64x1xf32>
    %c9_44 = arith.constant 9 : index
    %c0_45 = arith.constant 0 : index
    %c0_46 = arith.constant 0 : index
    %70 = vector.load %arg4[%c9_44, %c0_45, %c0_46] : memref<15x1x128xf32, #tpu.memory_space<vmem>>, vector<1x1x128xf32>
    %71 = vector.shape_cast %70 : vector<1x1x128xf32> to vector<1x128xf32>
    %72 = vector.broadcast %69 : vector<64x1xf32> to vector<64x128xf32>
    %73 = vector.broadcast %71 : vector<1x128xf32> to vector<64x128xf32>
    %74 = arith.mulf %72, %73 : vector<64x128xf32>
    %75 = arith.addf %68, %74 : vector<64x128xf32>
    %c10 = arith.constant 10 : index
    %c0_47 = arith.constant 0 : index
    %76 = vector.load %arg8[%c10, %c0_47] : memref<80x1xf32, #tpu.memory_space<vmem>>, vector<64x1xf32>
    %c10_48 = arith.constant 10 : index
    %c0_49 = arith.constant 0 : index
    %c0_50 = arith.constant 0 : index
    %77 = vector.load %arg4[%c10_48, %c0_49, %c0_50] : memref<15x1x128xf32, #tpu.memory_space<vmem>>, vector<1x1x128xf32>
    %78 = vector.shape_cast %77 : vector<1x1x128xf32> to vector<1x128xf32>
    %79 = vector.broadcast %76 : vector<64x1xf32> to vector<64x128xf32>
    %80 = vector.broadcast %78 : vector<1x128xf32> to vector<64x128xf32>
    %81 = arith.mulf %79, %80 : vector<64x128xf32>
    %82 = arith.addf %75, %81 : vector<64x128xf32>
    %c11 = arith.constant 11 : index
    %c0_51 = arith.constant 0 : index
    %83 = vector.load %arg8[%c11, %c0_51] : memref<80x1xf32, #tpu.memory_space<vmem>>, vector<64x1xf32>
    %c11_52 = arith.constant 11 : index
    %c0_53 = arith.constant 0 : index
    %c0_54 = arith.constant 0 : index
    %84 = vector.load %arg4[%c11_52, %c0_53, %c0_54] : memref<15x1x128xf32, #tpu.memory_space<vmem>>, vector<1x1x128xf32>
    %85 = vector.shape_cast %84 : vector<1x1x128xf32> to vector<1x128xf32>
    %86 = vector.broadcast %83 : vector<64x1xf32> to vector<64x128xf32>
    %87 = vector.broadcast %85 : vector<1x128xf32> to vector<64x128xf32>
    %88 = arith.mulf %86, %87 : vector<64x128xf32>
    %89 = arith.addf %82, %88 : vector<64x128xf32>
    %c12 = arith.constant 12 : index
    %c0_55 = arith.constant 0 : index
    %90 = vector.load %arg8[%c12, %c0_55] : memref<80x1xf32, #tpu.memory_space<vmem>>, vector<64x1xf32>
    %c12_56 = arith.constant 12 : index
    %c0_57 = arith.constant 0 : index
    %c0_58 = arith.constant 0 : index
    %91 = vector.load %arg4[%c12_56, %c0_57, %c0_58] : memref<15x1x128xf32, #tpu.memory_space<vmem>>, vector<1x1x128xf32>
    %92 = vector.shape_cast %91 : vector<1x1x128xf32> to vector<1x128xf32>
    %93 = vector.broadcast %90 : vector<64x1xf32> to vector<64x128xf32>
    %94 = vector.broadcast %92 : vector<1x128xf32> to vector<64x128xf32>
    %95 = arith.mulf %93, %94 : vector<64x128xf32>
    %96 = arith.addf %89, %95 : vector<64x128xf32>
    %c13 = arith.constant 13 : index
    %c0_59 = arith.constant 0 : index
    %97 = vector.load %arg8[%c13, %c0_59] : memref<80x1xf32, #tpu.memory_space<vmem>>, vector<64x1xf32>
    %c13_60 = arith.constant 13 : index
    %c0_61 = arith.constant 0 : index
    %c0_62 = arith.constant 0 : index
    %98 = vector.load %arg4[%c13_60, %c0_61, %c0_62] : memref<15x1x128xf32, #tpu.memory_space<vmem>>, vector<1x1x128xf32>
    %99 = vector.shape_cast %98 : vector<1x1x128xf32> to vector<1x128xf32>
    %100 = vector.broadcast %97 : vector<64x1xf32> to vector<64x128xf32>
    %101 = vector.broadcast %99 : vector<1x128xf32> to vector<64x128xf32>
    %102 = arith.mulf %100, %101 : vector<64x128xf32>
    %103 = arith.addf %96, %102 : vector<64x128xf32>
    %c14 = arith.constant 14 : index
    %c0_63 = arith.constant 0 : index
    %104 = vector.load %arg8[%c14, %c0_63] : memref<80x1xf32, #tpu.memory_space<vmem>>, vector<64x1xf32>
    %c14_64 = arith.constant 14 : index
    %c0_65 = arith.constant 0 : index
    %c0_66 = arith.constant 0 : index
    %105 = vector.load %arg4[%c14_64, %c0_65, %c0_66] : memref<15x1x128xf32, #tpu.memory_space<vmem>>, vector<1x1x128xf32>
    %106 = vector.shape_cast %105 : vector<1x1x128xf32> to vector<1x128xf32>
    %107 = vector.broadcast %104 : vector<64x1xf32> to vector<64x128xf32>
    %108 = vector.broadcast %106 : vector<1x128xf32> to vector<64x128xf32>
    %109 = arith.mulf %107, %108 : vector<64x128xf32>
    %110 = arith.addf %103, %109 : vector<64x128xf32>
    %c0_67 = arith.constant 0 : index
    %c0_68 = arith.constant 0 : index
    %111 = vector.load %arg5[%c0_67, %c0_68] : memref<1x128xf32, #tpu.memory_space<vmem>>, vector<1x128xf32>
    %112 = vector.broadcast %111 : vector<1x128xf32> to vector<64x128xf32>
    %113 = arith.addf %110, %112 : vector<64x128xf32>
    %c0_69 = arith.constant 0 : index
    %c0_70 = arith.constant 0 : index
    %c0_71 = arith.constant 0 : index
    %114 = vector.load %arg6[%c0_69, %c0_70, %c0_71] : memref<1x64x128xf32, #tpu.memory_space<vmem>>, vector<1x64x128xf32>
    %115 = vector.shape_cast %114 : vector<1x64x128xf32> to vector<64x128xf32>
    %116 = vector.shape_cast %113 : vector<64x128xf32> to vector<1x64x128xf32>
    tpu.vector_store %arg6[%c0_69, %c0_70, %c0_71], %116 {strides = array<i32>} : memref<1x64x128xf32, #tpu.memory_space<vmem>>, vector<1x64x128xf32>,
    %cst_72 = arith.constant 0.000000e+00 : f32
    %117 = vector.broadcast %cst_72 : f32 to vector<64x128xf32>
    %118 = arith.cmpf ogt, %113, %117 : vector<64x128xf32>
    %cst_73 = arith.constant 1.000000e-01 : f32
    %119 = vector.broadcast %cst_73 : f32 to vector<64x128xf32>
    %120 = arith.mulf %119, %113 : vector<64x128xf32>
    %121 = arith.select %118, %113, %120 : vector<64x128xi1>, vector<64x128xf32>
    %c0_74 = arith.constant 0 : index
    %c0_75 = arith.constant 0 : index
    %c0_76 = arith.constant 0 : index
    %122 = vector.load %arg7[%c0_74, %c0_75, %c0_76] : memref<1x64x128xf32, #tpu.memory_space<vmem>>, vector<1x64x128xf32>
    %123 = vector.shape_cast %122 : vector<1x64x128xf32> to vector<64x128xf32>
    %124 = vector.shape_cast %121 : vector<64x128xf32> to vector<1x64x128xf32>
    tpu.vector_store %arg7[%c0_74, %c0_75, %c0_76], %124 {strides = array<i32>} : memref<1x64x128xf32, #tpu.memory_space<vmem>>, vector<1x64x128xf32>,
    return
  }
  func.func @transform_0(%arg0: i32, %arg1: i32) -> (i32, i32, i32) {
    %c0_i32 = arith.constant 0 : i32
    %c0_i32_0 = arith.constant 0 : i32
    return %arg0, %arg1, %c0_i32 : i32, i32, i32
  }
  func.func @transform_1(%arg0: i32, %arg1: i32) -> (i32, i32, i32) {
    %c1_i32 = arith.constant 1 : i32
    %0 = arith.addi %arg1, %c1_i32 : i32
    %c4_i32 = arith.constant 4 : i32
    %1 = arith.muli %0, %c4_i32 : i32
    %c0_i32 = arith.constant 0 : i32
    %c0_i32_0 = arith.constant 0 : i32
    return %arg0, %1, %c0_i32 : i32, i32, i32
  }
  func.func @transform_2(%arg0: i32, %arg1: i32) -> (i32, i32, i32) {
    %c0_i32 = arith.constant 0 : i32
    %c0_i32_0 = arith.constant 0 : i32
    %c0_i32_1 = arith.constant 0 : i32
    %c0_i32_2 = arith.constant 0 : i32
    return %c0_i32, %c0_i32_0, %c0_i32_1 : i32, i32, i32
  }
  func.func @transform_3(%arg0: i32, %arg1: i32) -> (i32, i32) {
    %c0_i32 = arith.constant 0 : i32
    %c0_i32_0 = arith.constant 0 : i32
    %c0_i32_1 = arith.constant 0 : i32
    return %c0_i32, %c0_i32_0 : i32, i32
  }
  func.func @transform_4(%arg0: i32, %arg1: i32) -> (i32, i32, i32) {
    %c0_i32 = arith.constant 0 : i32
    %c0_i32_0 = arith.constant 0 : i32
    return %arg0, %arg1, %c0_i32 : i32, i32, i32
  }
  func.func @transform_5(%arg0: i32, %arg1: i32) -> (i32, i32, i32) {
    %c0_i32 = arith.constant 0 : i32
    %c0_i32_0 = arith.constant 0 : i32
    return %arg0, %arg1, %c0_i32 : i32, i32, i32
  }
}

module attributes {stable_mosaic.version = 11 : i64} {
  func.func @kernel(%arg0: i32, %arg1: i32, %arg2: memref<1x32x256xf32, #tpu.memory_space<vmem>>, %arg3: memref<1x16x256xf32, #tpu.memory_space<vmem>>, %arg4: memref<2x256x128xf32, #tpu.memory_space<vmem>>, %arg5: memref<1x128xf32, #tpu.memory_space<vmem>>, %arg6: memref<1x32x128xf32, #tpu.memory_space<vmem>>, %arg7: memref<1x32x128xf32, #tpu.memory_space<vmem>>, %arg8: memref<48x256xf32, #tpu.memory_space<vmem>>) attributes {dimension_semantics = [#tpu.dimension_semantics<parallel>, #tpu.dimension_semantics<parallel>], iteration_bounds = array<i64: 2, 1>, scalar_prefetch = 0 : i64, scratch_operands = 1 : i64, tpu.core_type = #tpu.core_type<tc>, window_params = [{transform_indices = @transform_0, window_bounds = array<i64: 1, 32, 256>}, {transform_indices = @transform_1, window_bounds = array<i64: 1, 16, 256>}, {pipeline_mode = #tpu.pipeline_mode<synchronous>, transform_indices = @transform_2, window_bounds = array<i64: 2, 256, 128>}, {pipeline_mode = #tpu.pipeline_mode<synchronous>, transform_indices = @transform_3, window_bounds = array<i64: 1, 128>}, {transform_indices = @transform_4, window_bounds = array<i64: 1, 32, 128>}, {transform_indices = @transform_5, window_bounds = array<i64: 1, 32, 128>}]} {
    %c0 = arith.constant 0 : index
    %c0_0 = arith.constant 0 : index
    %c0_1 = arith.constant 0 : index
    %0 = vector.load %arg2[%c0, %c0_0, %c0_1] : memref<1x32x256xf32, #tpu.memory_space<vmem>>, vector<1x32x256xf32>
    %1 = vector.shape_cast %0 : vector<1x32x256xf32> to vector<32x256xf32>
    %c0_2 = arith.constant 0 : index
    %c0_3 = arith.constant 0 : index
    %2 = vector.load %arg8[%c0_2, %c0_3] : memref<48x256xf32, #tpu.memory_space<vmem>>, vector<32x256xf32>
    tpu.vector_store %arg8[%c0_2, %c0_3], %1 {strides = array<i32>} : memref<48x256xf32, #tpu.memory_space<vmem>>, vector<32x256xf32>,
    %c0_4 = arith.constant 0 : index
    %c0_5 = arith.constant 0 : index
    %c0_6 = arith.constant 0 : index
    %3 = vector.load %arg3[%c0_4, %c0_5, %c0_6] : memref<1x16x256xf32, #tpu.memory_space<vmem>>, vector<1x16x256xf32>
    %4 = vector.shape_cast %3 : vector<1x16x256xf32> to vector<16x256xf32>
    %c32 = arith.constant 32 : index
    %c0_7 = arith.constant 0 : index
    %5 = vector.load %arg8[%c32, %c0_7] : memref<48x256xf32, #tpu.memory_space<vmem>>, vector<16x256xf32>
    tpu.vector_store %arg8[%c32, %c0_7], %4 {strides = array<i32>} : memref<48x256xf32, #tpu.memory_space<vmem>>, vector<16x256xf32>,
    %cst = arith.constant 0.000000e+00 : f32
    %6 = vector.broadcast %cst : f32 to vector<32x128xf32>
    %c0_8 = arith.constant 0 : index
    %c0_9 = arith.constant 0 : index
    %c0_10 = arith.constant 0 : index
    %7 = vector.load %arg4[%c0_8, %c0_9, %c0_10] : memref<2x256x128xf32, #tpu.memory_space<vmem>>, vector<1x256x128xf32>
    %8 = vector.shape_cast %7 : vector<1x256x128xf32> to vector<256x128xf32>
    %cst_11 = arith.constant dense<0.000000e+00> : vector<32x128xf32>
    %9 = tpu.matmul %1, %8, %cst_11 {dimension_numbers = #tpu.dot_dimension_numbers<[1], [0], [0], [1], [0, 0, 1, 1], [], []>} : vector<32x256xf32>, vector<256x128xf32>, vector<32x128xf32> -> vector<32x128xf32>
    %10 = arith.addf %6, %9 : vector<32x128xf32>
    %c1 = arith.constant 1 : index
    %c0_12 = arith.constant 0 : index
    %11 = vector.load %arg8[%c1, %c0_12] : memref<48x256xf32, #tpu.memory_space<vmem>>, vector<32x256xf32>
    %c1_13 = arith.constant 1 : index
    %c0_14 = arith.constant 0 : index
    %c0_15 = arith.constant 0 : index
    %12 = vector.load %arg4[%c1_13, %c0_14, %c0_15] : memref<2x256x128xf32, #tpu.memory_space<vmem>>, vector<1x256x128xf32>
    %13 = vector.shape_cast %12 : vector<1x256x128xf32> to vector<256x128xf32>
    %cst_16 = arith.constant dense<0.000000e+00> : vector<32x128xf32>
    %14 = tpu.matmul %11, %13, %cst_16 {dimension_numbers = #tpu.dot_dimension_numbers<[1], [0], [0], [1], [0, 0, 1, 1], [], []>} : vector<32x256xf32>, vector<256x128xf32>, vector<32x128xf32> -> vector<32x128xf32>
    %15 = arith.addf %10, %14 : vector<32x128xf32>
    %c0_17 = arith.constant 0 : index
    %c0_18 = arith.constant 0 : index
    %16 = vector.load %arg5[%c0_17, %c0_18] : memref<1x128xf32, #tpu.memory_space<vmem>>, vector<1x128xf32>
    %17 = vector.broadcast %16 : vector<1x128xf32> to vector<32x128xf32>
    %18 = arith.addf %15, %17 : vector<32x128xf32>
    %c0_19 = arith.constant 0 : index
    %c0_20 = arith.constant 0 : index
    %c0_21 = arith.constant 0 : index
    %19 = vector.load %arg6[%c0_19, %c0_20, %c0_21] : memref<1x32x128xf32, #tpu.memory_space<vmem>>, vector<1x32x128xf32>
    %20 = vector.shape_cast %19 : vector<1x32x128xf32> to vector<32x128xf32>
    %21 = vector.shape_cast %18 : vector<32x128xf32> to vector<1x32x128xf32>
    tpu.vector_store %arg6[%c0_19, %c0_20, %c0_21], %21 {strides = array<i32>} : memref<1x32x128xf32, #tpu.memory_space<vmem>>, vector<1x32x128xf32>,
    %cst_22 = arith.constant 0.000000e+00 : f32
    %22 = vector.broadcast %cst_22 : f32 to vector<32x128xf32>
    %23 = arith.cmpf ogt, %18, %22 : vector<32x128xf32>
    %cst_23 = arith.constant 1.000000e-01 : f32
    %24 = vector.broadcast %cst_23 : f32 to vector<32x128xf32>
    %25 = arith.mulf %24, %18 : vector<32x128xf32>
    %26 = arith.select %23, %18, %25 : vector<32x128xi1>, vector<32x128xf32>
    %c0_24 = arith.constant 0 : index
    %c0_25 = arith.constant 0 : index
    %c0_26 = arith.constant 0 : index
    %27 = vector.load %arg7[%c0_24, %c0_25, %c0_26] : memref<1x32x128xf32, #tpu.memory_space<vmem>>, vector<1x32x128xf32>
    %28 = vector.shape_cast %27 : vector<1x32x128xf32> to vector<32x128xf32>
    %29 = vector.shape_cast %26 : vector<32x128xf32> to vector<1x32x128xf32>
    tpu.vector_store %arg7[%c0_24, %c0_25, %c0_26], %29 {strides = array<i32>} : memref<1x32x128xf32, #tpu.memory_space<vmem>>, vector<1x32x128xf32>,
    return
  }
  func.func @transform_0(%arg0: i32, %arg1: i32) -> (i32, i32, i32) {
    %c0_i32 = arith.constant 0 : i32
    %c0_i32_0 = arith.constant 0 : i32
    return %arg0, %arg1, %c0_i32 : i32, i32, i32
  }
  func.func @transform_1(%arg0: i32, %arg1: i32) -> (i32, i32, i32) {
    %c1_i32 = arith.constant 1 : i32
    %0 = arith.addi %arg1, %c1_i32 : i32
    %c2_i32 = arith.constant 2 : i32
    %1 = arith.muli %0, %c2_i32 : i32
    %c0_i32 = arith.constant 0 : i32
    %c0_i32_0 = arith.constant 0 : i32
    return %arg0, %1, %c0_i32 : i32, i32, i32
  }
  func.func @transform_2(%arg0: i32, %arg1: i32) -> (i32, i32, i32) {
    %c0_i32 = arith.constant 0 : i32
    %c0_i32_0 = arith.constant 0 : i32
    %c0_i32_1 = arith.constant 0 : i32
    %c0_i32_2 = arith.constant 0 : i32
    return %c0_i32, %c0_i32_0, %c0_i32_1 : i32, i32, i32
  }
  func.func @transform_3(%arg0: i32, %arg1: i32) -> (i32, i32) {
    %c0_i32 = arith.constant 0 : i32
    %c0_i32_0 = arith.constant 0 : i32
    %c0_i32_1 = arith.constant 0 : i32
    return %c0_i32, %c0_i32_0 : i32, i32
  }
  func.func @transform_4(%arg0: i32, %arg1: i32) -> (i32, i32, i32) {
    %c0_i32 = arith.constant 0 : i32
    %c0_i32_0 = arith.constant 0 : i32
    return %arg0, %arg1, %c0_i32 : i32, i32, i32
  }
  func.func @transform_5(%arg0: i32, %arg1: i32) -> (i32, i32, i32) {
    %c0_i32 = arith.constant 0 : i32
    %c0_i32_0 = arith.constant 0 : i32
    return %arg0, %arg1, %c0_i32 : i32, i32, i32
  }
}

module attributes {stable_mosaic.version = 11 : i64} {
  func.func @kernel(%arg0: i32, %arg1: i32, %arg2: memref<1x48x256xf32, #tpu.memory_space<vmem>>, %arg3: memref<1x16x256xf32, #tpu.memory_space<vmem>>, %arg4: memref<2x256x128xf32, #tpu.memory_space<vmem>>, %arg5: memref<1x128xf32, #tpu.memory_space<vmem>>, %arg6: memref<1x48x128xf32, #tpu.memory_space<vmem>>, %arg7: memref<1x48x128xf32, #tpu.memory_space<vmem>>, %arg8: memref<64x256xf32, #tpu.memory_space<vmem>>) attributes {dimension_semantics = [#tpu.dimension_semantics<parallel>, #tpu.dimension_semantics<parallel>], iteration_bounds = array<i64: 2, 1>, scalar_prefetch = 0 : i64, scratch_operands = 1 : i64, tpu.core_type = #tpu.core_type<tc>, window_params = [{transform_indices = @transform_0, window_bounds = array<i64: 1, 48, 256>}, {transform_indices = @transform_1, window_bounds = array<i64: 1, 16, 256>}, {pipeline_mode = #tpu.pipeline_mode<synchronous>, transform_indices = @transform_2, window_bounds = array<i64: 2, 256, 128>}, {pipeline_mode = #tpu.pipeline_mode<synchronous>, transform_indices = @transform_3, window_bounds = array<i64: 1, 128>}, {transform_indices = @transform_4, window_bounds = array<i64: 1, 48, 128>}, {transform_indices = @transform_5, window_bounds = array<i64: 1, 48, 128>}]} {
    %c0 = arith.constant 0 : index
    %c0_0 = arith.constant 0 : index
    %c0_1 = arith.constant 0 : index
    %0 = vector.load %arg2[%c0, %c0_0, %c0_1] : memref<1x48x256xf32, #tpu.memory_space<vmem>>, vector<1x48x256xf32>
    %1 = vector.shape_cast %0 : vector<1x48x256xf32> to vector<48x256xf32>
    %c0_2 = arith.constant 0 : index
    %c0_3 = arith.constant 0 : index
    %2 = vector.load %arg8[%c0_2, %c0_3] : memref<64x256xf32, #tpu.memory_space<vmem>>, vector<48x256xf32>
    tpu.vector_store %arg8[%c0_2, %c0_3], %1 {strides = array<i32>} : memref<64x256xf32, #tpu.memory_space<vmem>>, vector<48x256xf32>,
    %c0_4 = arith.constant 0 : index
    %c0_5 = arith.constant 0 : index
    %c0_6 = arith.constant 0 : index
    %3 = vector.load %arg3[%c0_4, %c0_5, %c0_6] : memref<1x16x256xf32, #tpu.memory_space<vmem>>, vector<1x16x256xf32>
    %4 = vector.shape_cast %3 : vector<1x16x256xf32> to vector<16x256xf32>
    %c48 = arith.constant 48 : index
    %c0_7 = arith.constant 0 : index
    %5 = vector.load %arg8[%c48, %c0_7] : memref<64x256xf32, #tpu.memory_space<vmem>>, vector<16x256xf32>
    tpu.vector_store %arg8[%c48, %c0_7], %4 {strides = array<i32>} : memref<64x256xf32, #tpu.memory_space<vmem>>, vector<16x256xf32>,
    %cst = arith.constant 0.000000e+00 : f32
    %6 = vector.broadcast %cst : f32 to vector<48x128xf32>
    %c0_8 = arith.constant 0 : index
    %c0_9 = arith.constant 0 : index
    %c0_10 = arith.constant 0 : index
    %7 = vector.load %arg4[%c0_8, %c0_9, %c0_10] : memref<2x256x128xf32, #tpu.memory_space<vmem>>, vector<1x256x128xf32>
    %8 = vector.shape_cast %7 : vector<1x256x128xf32> to vector<256x128xf32>
    %cst_11 = arith.constant dense<0.000000e+00> : vector<48x128xf32>
    %9 = tpu.matmul %1, %8, %cst_11 {dimension_numbers = #tpu.dot_dimension_numbers<[1], [0], [0], [1], [0, 0, 1, 1], [], []>} : vector<48x256xf32>, vector<256x128xf32>, vector<48x128xf32> -> vector<48x128xf32>
    %10 = arith.addf %6, %9 : vector<48x128xf32>
    %c1 = arith.constant 1 : index
    %c0_12 = arith.constant 0 : index
    %11 = vector.load %arg8[%c1, %c0_12] : memref<64x256xf32, #tpu.memory_space<vmem>>, vector<48x256xf32>
    %c1_13 = arith.constant 1 : index
    %c0_14 = arith.constant 0 : index
    %c0_15 = arith.constant 0 : index
    %12 = vector.load %arg4[%c1_13, %c0_14, %c0_15] : memref<2x256x128xf32, #tpu.memory_space<vmem>>, vector<1x256x128xf32>
    %13 = vector.shape_cast %12 : vector<1x256x128xf32> to vector<256x128xf32>
    %cst_16 = arith.constant dense<0.000000e+00> : vector<48x128xf32>
    %14 = tpu.matmul %11, %13, %cst_16 {dimension_numbers = #tpu.dot_dimension_numbers<[1], [0], [0], [1], [0, 0, 1, 1], [], []>} : vector<48x256xf32>, vector<256x128xf32>, vector<48x128xf32> -> vector<48x128xf32>
    %15 = arith.addf %10, %14 : vector<48x128xf32>
    %c0_17 = arith.constant 0 : index
    %c0_18 = arith.constant 0 : index
    %16 = vector.load %arg5[%c0_17, %c0_18] : memref<1x128xf32, #tpu.memory_space<vmem>>, vector<1x128xf32>
    %17 = vector.broadcast %16 : vector<1x128xf32> to vector<48x128xf32>
    %18 = arith.addf %15, %17 : vector<48x128xf32>
    %c0_19 = arith.constant 0 : index
    %c0_20 = arith.constant 0 : index
    %c0_21 = arith.constant 0 : index
    %19 = vector.load %arg6[%c0_19, %c0_20, %c0_21] : memref<1x48x128xf32, #tpu.memory_space<vmem>>, vector<1x48x128xf32>
    %20 = vector.shape_cast %19 : vector<1x48x128xf32> to vector<48x128xf32>
    %21 = vector.shape_cast %18 : vector<48x128xf32> to vector<1x48x128xf32>
    tpu.vector_store %arg6[%c0_19, %c0_20, %c0_21], %21 {strides = array<i32>} : memref<1x48x128xf32, #tpu.memory_space<vmem>>, vector<1x48x128xf32>,
    %cst_22 = arith.constant 0.000000e+00 : f32
    %22 = vector.broadcast %cst_22 : f32 to vector<48x128xf32>
    %23 = arith.cmpf ogt, %18, %22 : vector<48x128xf32>
    %cst_23 = arith.constant 1.000000e-01 : f32
    %24 = vector.broadcast %cst_23 : f32 to vector<48x128xf32>
    %25 = arith.mulf %24, %18 : vector<48x128xf32>
    %26 = arith.select %23, %18, %25 : vector<48x128xi1>, vector<48x128xf32>
    %c0_24 = arith.constant 0 : index
    %c0_25 = arith.constant 0 : index
    %c0_26 = arith.constant 0 : index
    %27 = vector.load %arg7[%c0_24, %c0_25, %c0_26] : memref<1x48x128xf32, #tpu.memory_space<vmem>>, vector<1x48x128xf32>
    %28 = vector.shape_cast %27 : vector<1x48x128xf32> to vector<48x128xf32>
    %29 = vector.shape_cast %26 : vector<48x128xf32> to vector<1x48x128xf32>
    tpu.vector_store %arg7[%c0_24, %c0_25, %c0_26], %29 {strides = array<i32>} : memref<1x48x128xf32, #tpu.memory_space<vmem>>, vector<1x48x128xf32>,
    return
  }
  func.func @transform_0(%arg0: i32, %arg1: i32) -> (i32, i32, i32) {
    %c0_i32 = arith.constant 0 : i32
    %c0_i32_0 = arith.constant 0 : i32
    return %arg0, %arg1, %c0_i32 : i32, i32, i32
  }
  func.func @transform_1(%arg0: i32, %arg1: i32) -> (i32, i32, i32) {
    %c1_i32 = arith.constant 1 : i32
    %0 = arith.addi %arg1, %c1_i32 : i32
    %c3_i32 = arith.constant 3 : i32
    %1 = arith.muli %0, %c3_i32 : i32
    %c0_i32 = arith.constant 0 : i32
    %c0_i32_0 = arith.constant 0 : i32
    return %arg0, %1, %c0_i32 : i32, i32, i32
  }
  func.func @transform_2(%arg0: i32, %arg1: i32) -> (i32, i32, i32) {
    %c0_i32 = arith.constant 0 : i32
    %c0_i32_0 = arith.constant 0 : i32
    %c0_i32_1 = arith.constant 0 : i32
    %c0_i32_2 = arith.constant 0 : i32
    return %c0_i32, %c0_i32_0, %c0_i32_1 : i32, i32, i32
  }
  func.func @transform_3(%arg0: i32, %arg1: i32) -> (i32, i32) {
    %c0_i32 = arith.constant 0 : i32
    %c0_i32_0 = arith.constant 0 : i32
    %c0_i32_1 = arith.constant 0 : i32
    return %c0_i32, %c0_i32_0 : i32, i32
  }
  func.func @transform_4(%arg0: i32, %arg1: i32) -> (i32, i32, i32) {
    %c0_i32 = arith.constant 0 : i32
    %c0_i32_0 = arith.constant 0 : i32
    return %arg0, %arg1, %c0_i32 : i32, i32, i32
  }
  func.func @transform_5(%arg0: i32, %arg1: i32) -> (i32, i32, i32) {
    %c0_i32 = arith.constant 0 : i32
    %c0_i32_0 = arith.constant 0 : i32
    return %arg0, %arg1, %c0_i32 : i32, i32, i32
  }
}

module attributes {stable_mosaic.version = 11 : i64} {
  func.func @kernel(%arg0: i32, %arg1: i32, %arg2: memref<1x16x512xf32, #tpu.memory_space<vmem>>, %arg3: memref<1x16x512xf32, #tpu.memory_space<vmem>>, %arg4: memref<1x512x128xf32, #tpu.memory_space<vmem>>, %arg5: memref<1x128xf32, #tpu.memory_space<vmem>>, %arg6: memref<1x16x128xf32, #tpu.memory_space<vmem>>, %arg7: memref<1x16x128xf32, #tpu.memory_space<vmem>>, %arg8: memref<32x512xf32, #tpu.memory_space<vmem>>) attributes {dimension_semantics = [#tpu.dimension_semantics<parallel>, #tpu.dimension_semantics<parallel>], iteration_bounds = array<i64: 2, 1>, scalar_prefetch = 0 : i64, scratch_operands = 1 : i64, tpu.core_type = #tpu.core_type<tc>, window_params = [{transform_indices = @transform_0, window_bounds = array<i64: 1, 16, 512>}, {transform_indices = @transform_1, window_bounds = array<i64: 1, 16, 512>}, {pipeline_mode = #tpu.pipeline_mode<synchronous>, transform_indices = @transform_2, window_bounds = array<i64: 1, 512, 128>}, {pipeline_mode = #tpu.pipeline_mode<synchronous>, transform_indices = @transform_3, window_bounds = array<i64: 1, 128>}, {transform_indices = @transform_4, window_bounds = array<i64: 1, 16, 128>}, {transform_indices = @transform_5, window_bounds = array<i64: 1, 16, 128>}]} {
    %c0 = arith.constant 0 : index
    %c0_0 = arith.constant 0 : index
    %c0_1 = arith.constant 0 : index
    %0 = vector.load %arg2[%c0, %c0_0, %c0_1] : memref<1x16x512xf32, #tpu.memory_space<vmem>>, vector<1x16x512xf32>
    %1 = vector.shape_cast %0 : vector<1x16x512xf32> to vector<16x512xf32>
    %cst = arith.constant 0.000000e+00 : f32
    %2 = vector.broadcast %cst : f32 to vector<16x128xf32>
    %c0_2 = arith.constant 0 : index
    %c0_3 = arith.constant 0 : index
    %c0_4 = arith.constant 0 : index
    %3 = vector.load %arg4[%c0_2, %c0_3, %c0_4] : memref<1x512x128xf32, #tpu.memory_space<vmem>>, vector<1x512x128xf32>
    %4 = vector.shape_cast %3 : vector<1x512x128xf32> to vector<512x128xf32>
    %cst_5 = arith.constant dense<0.000000e+00> : vector<16x128xf32>
    %5 = tpu.matmul %1, %4, %cst_5 {dimension_numbers = #tpu.dot_dimension_numbers<[1], [0], [0], [1], [0, 0, 1, 1], [], []>} : vector<16x512xf32>, vector<512x128xf32>, vector<16x128xf32> -> vector<16x128xf32>
    %6 = arith.addf %2, %5 : vector<16x128xf32>
    %c0_6 = arith.constant 0 : index
    %c0_7 = arith.constant 0 : index
    %7 = vector.load %arg5[%c0_6, %c0_7] : memref<1x128xf32, #tpu.memory_space<vmem>>, vector<1x128xf32>
    %8 = vector.broadcast %7 : vector<1x128xf32> to vector<16x128xf32>
    %9 = arith.addf %6, %8 : vector<16x128xf32>
    %c0_8 = arith.constant 0 : index
    %c0_9 = arith.constant 0 : index
    %c0_10 = arith.constant 0 : index
    %10 = vector.load %arg6[%c0_8, %c0_9, %c0_10] : memref<1x16x128xf32, #tpu.memory_space<vmem>>, vector<1x16x128xf32>
    %11 = vector.shape_cast %10 : vector<1x16x128xf32> to vector<16x128xf32>
    %12 = vector.shape_cast %9 : vector<16x128xf32> to vector<1x16x128xf32>
    tpu.vector_store %arg6[%c0_8, %c0_9, %c0_10], %12 {strides = array<i32>} : memref<1x16x128xf32, #tpu.memory_space<vmem>>, vector<1x16x128xf32>,
    %cst_11 = arith.constant 0.000000e+00 : f32
    %13 = vector.broadcast %cst_11 : f32 to vector<16x128xf32>
    %14 = arith.cmpf ogt, %9, %13 : vector<16x128xf32>
    %cst_12 = arith.constant 1.000000e-01 : f32
    %15 = vector.broadcast %cst_12 : f32 to vector<16x128xf32>
    %16 = arith.mulf %15, %9 : vector<16x128xf32>
    %17 = arith.select %14, %9, %16 : vector<16x128xi1>, vector<16x128xf32>
    %c0_13 = arith.constant 0 : index
    %c0_14 = arith.constant 0 : index
    %c0_15 = arith.constant 0 : index
    %18 = vector.load %arg7[%c0_13, %c0_14, %c0_15] : memref<1x16x128xf32, #tpu.memory_space<vmem>>, vector<1x16x128xf32>
    %19 = vector.shape_cast %18 : vector<1x16x128xf32> to vector<16x128xf32>
    %20 = vector.shape_cast %17 : vector<16x128xf32> to vector<1x16x128xf32>
    tpu.vector_store %arg7[%c0_13, %c0_14, %c0_15], %20 {strides = array<i32>} : memref<1x16x128xf32, #tpu.memory_space<vmem>>, vector<1x16x128xf32>,
    return
  }
  func.func @transform_0(%arg0: i32, %arg1: i32) -> (i32, i32, i32) {
    %c0_i32 = arith.constant 0 : i32
    %c0_i32_0 = arith.constant 0 : i32
    return %arg0, %arg1, %c0_i32 : i32, i32, i32
  }
  func.func @transform_1(%arg0: i32, %arg1: i32) -> (i32, i32, i32) {
    %c1_i32 = arith.constant 1 : i32
    %0 = arith.addi %arg1, %c1_i32 : i32
    %c1_i32_0 = arith.constant 1 : i32
    %1 = arith.muli %0, %c1_i32_0 : i32
    %c0_i32 = arith.constant 0 : i32
    %c0_i32_1 = arith.constant 0 : i32
    return %arg0, %1, %c0_i32 : i32, i32, i32
  }
  func.func @transform_2(%arg0: i32, %arg1: i32) -> (i32, i32, i32) {
    %c0_i32 = arith.constant 0 : i32
    %c0_i32_0 = arith.constant 0 : i32
    %c0_i32_1 = arith.constant 0 : i32
    %c0_i32_2 = arith.constant 0 : i32
    return %c0_i32, %c0_i32_0, %c0_i32_1 : i32, i32, i32
  }
  func.func @transform_3(%arg0: i32, %arg1: i32) -> (i32, i32) {
    %c0_i32 = arith.constant 0 : i32
    %c0_i32_0 = arith.constant 0 : i32
    %c0_i32_1 = arith.constant 0 : i32
    return %c0_i32, %c0_i32_0 : i32, i32
  }
  func.func @transform_4(%arg0: i32, %arg1: i32) -> (i32, i32, i32) {
    %c0_i32 = arith.constant 0 : i32
    %c0_i32_0 = arith.constant 0 : i32
    return %arg0, %arg1, %c0_i32 : i32, i32, i32
  }
  func.func @transform_5(%arg0: i32, %arg1: i32) -> (i32, i32, i32) {
    %c0_i32 = arith.constant 0 : i32
    %c0_i32_0 = arith.constant 0 : i32
    return %arg0, %arg1, %c0_i32 : i32, i32, i32
  }
}

module attributes {stable_mosaic.version = 11 : i64} {
  func.func @kernel(%arg0: i32, %arg1: i32, %arg2: memref<1x16x128xf32, #tpu.memory_space<vmem>>, %arg3: memref<1x16x128xf32, #tpu.memory_space<vmem>>, %arg4: memref<3x128x128xf32, #tpu.memory_space<vmem>>, %arg5: memref<1x128xf32, #tpu.memory_space<vmem>>, %arg6: memref<1x16x128xf32, #tpu.memory_space<vmem>>, %arg7: memref<1x16x128xf32, #tpu.memory_space<vmem>>, %arg8: memref<32x128xf32, #tpu.memory_space<vmem>>) attributes {dimension_semantics = [#tpu.dimension_semantics<parallel>, #tpu.dimension_semantics<parallel>], iteration_bounds = array<i64: 2, 1>, scalar_prefetch = 0 : i64, scratch_operands = 1 : i64, tpu.core_type = #tpu.core_type<tc>, window_params = [{transform_indices = @transform_0, window_bounds = array<i64: 1, 16, 128>}, {transform_indices = @transform_1, window_bounds = array<i64: 1, 16, 128>}, {pipeline_mode = #tpu.pipeline_mode<synchronous>, transform_indices = @transform_2, window_bounds = array<i64: 3, 128, 128>}, {pipeline_mode = #tpu.pipeline_mode<synchronous>, transform_indices = @transform_3, window_bounds = array<i64: 1, 128>}, {transform_indices = @transform_4, window_bounds = array<i64: 1, 16, 128>}, {transform_indices = @transform_5, window_bounds = array<i64: 1, 16, 128>}]} {
    %c0 = arith.constant 0 : index
    %c0_0 = arith.constant 0 : index
    %c0_1 = arith.constant 0 : index
    %0 = vector.load %arg2[%c0, %c0_0, %c0_1] : memref<1x16x128xf32, #tpu.memory_space<vmem>>, vector<1x16x128xf32>
    %1 = vector.shape_cast %0 : vector<1x16x128xf32> to vector<16x128xf32>
    %c0_2 = arith.constant 0 : index
    %c0_3 = arith.constant 0 : index
    %2 = vector.load %arg8[%c0_2, %c0_3] : memref<32x128xf32, #tpu.memory_space<vmem>>, vector<16x128xf32>
    tpu.vector_store %arg8[%c0_2, %c0_3], %1 {strides = array<i32>} : memref<32x128xf32, #tpu.memory_space<vmem>>, vector<16x128xf32>,
    %c0_4 = arith.constant 0 : index
    %c0_5 = arith.constant 0 : index
    %c0_6 = arith.constant 0 : index
    %3 = vector.load %arg3[%c0_4, %c0_5, %c0_6] : memref<1x16x128xf32, #tpu.memory_space<vmem>>, vector<1x16x128xf32>
    %4 = vector.shape_cast %3 : vector<1x16x128xf32> to vector<16x128xf32>
    %c16 = arith.constant 16 : index
    %c0_7 = arith.constant 0 : index
    %5 = vector.load %arg8[%c16, %c0_7] : memref<32x128xf32, #tpu.memory_space<vmem>>, vector<16x128xf32>
    tpu.vector_store %arg8[%c16, %c0_7], %4 {strides = array<i32>} : memref<32x128xf32, #tpu.memory_space<vmem>>, vector<16x128xf32>,
    %cst = arith.constant 0.000000e+00 : f32
    %6 = vector.broadcast %cst : f32 to vector<16x128xf32>
    %c0_8 = arith.constant 0 : index
    %c0_9 = arith.constant 0 : index
    %c0_10 = arith.constant 0 : index
    %7 = vector.load %arg4[%c0_8, %c0_9, %c0_10] : memref<3x128x128xf32, #tpu.memory_space<vmem>>, vector<1x128x128xf32>
    %8 = vector.shape_cast %7 : vector<1x128x128xf32> to vector<128x128xf32>
    %cst_11 = arith.constant dense<0.000000e+00> : vector<16x128xf32>
    %9 = tpu.matmul %1, %8, %cst_11 {dimension_numbers = #tpu.dot_dimension_numbers<[1], [0], [0], [1], [0, 0, 1, 1], [], []>} : vector<16x128xf32>, vector<128x128xf32>, vector<16x128xf32> -> vector<16x128xf32>
    %10 = arith.addf %6, %9 : vector<16x128xf32>
    %c1 = arith.constant 1 : index
    %c0_12 = arith.constant 0 : index
    %11 = vector.load %arg8[%c1, %c0_12] : memref<32x128xf32, #tpu.memory_space<vmem>>, vector<16x128xf32>
    %c1_13 = arith.constant 1 : index
    %c0_14 = arith.constant 0 : index
    %c0_15 = arith.constant 0 : index
    %12 = vector.load %arg4[%c1_13, %c0_14, %c0_15] : memref<3x128x128xf32, #tpu.memory_space<vmem>>, vector<1x128x128xf32>
    %13 = vector.shape_cast %12 : vector<1x128x128xf32> to vector<128x128xf32>
    %cst_16 = arith.constant dense<0.000000e+00> : vector<16x128xf32>
    %14 = tpu.matmul %11, %13, %cst_16 {dimension_numbers = #tpu.dot_dimension_numbers<[1], [0], [0], [1], [0, 0, 1, 1], [], []>} : vector<16x128xf32>, vector<128x128xf32>, vector<16x128xf32> -> vector<16x128xf32>
    %15 = arith.addf %10, %14 : vector<16x128xf32>
    %c2 = arith.constant 2 : index
    %c0_17 = arith.constant 0 : index
    %16 = vector.load %arg8[%c2, %c0_17] : memref<32x128xf32, #tpu.memory_space<vmem>>, vector<16x128xf32>
    %c2_18 = arith.constant 2 : index
    %c0_19 = arith.constant 0 : index
    %c0_20 = arith.constant 0 : index
    %17 = vector.load %arg4[%c2_18, %c0_19, %c0_20] : memref<3x128x128xf32, #tpu.memory_space<vmem>>, vector<1x128x128xf32>
    %18 = vector.shape_cast %17 : vector<1x128x128xf32> to vector<128x128xf32>
    %cst_21 = arith.constant dense<0.000000e+00> : vector<16x128xf32>
    %19 = tpu.matmul %16, %18, %cst_21 {dimension_numbers = #tpu.dot_dimension_numbers<[1], [0], [0], [1], [0, 0, 1, 1], [], []>} : vector<16x128xf32>, vector<128x128xf32>, vector<16x128xf32> -> vector<16x128xf32>
    %20 = arith.addf %15, %19 : vector<16x128xf32>
    %c0_22 = arith.constant 0 : index
    %c0_23 = arith.constant 0 : index
    %21 = vector.load %arg5[%c0_22, %c0_23] : memref<1x128xf32, #tpu.memory_space<vmem>>, vector<1x128xf32>
    %22 = vector.broadcast %21 : vector<1x128xf32> to vector<16x128xf32>
    %23 = arith.addf %20, %22 : vector<16x128xf32>
    %c0_24 = arith.constant 0 : index
    %c0_25 = arith.constant 0 : index
    %c0_26 = arith.constant 0 : index
    %24 = vector.load %arg6[%c0_24, %c0_25, %c0_26] : memref<1x16x128xf32, #tpu.memory_space<vmem>>, vector<1x16x128xf32>
    %25 = vector.shape_cast %24 : vector<1x16x128xf32> to vector<16x128xf32>
    %26 = vector.shape_cast %23 : vector<16x128xf32> to vector<1x16x128xf32>
    tpu.vector_store %arg6[%c0_24, %c0_25, %c0_26], %26 {strides = array<i32>} : memref<1x16x128xf32, #tpu.memory_space<vmem>>, vector<1x16x128xf32>,
    %cst_27 = arith.constant 0.000000e+00 : f32
    %27 = vector.broadcast %cst_27 : f32 to vector<16x128xf32>
    %28 = arith.cmpf ogt, %23, %27 : vector<16x128xf32>
    %cst_28 = arith.constant 1.000000e-01 : f32
    %29 = vector.broadcast %cst_28 : f32 to vector<16x128xf32>
    %30 = arith.mulf %29, %23 : vector<16x128xf32>
    %31 = arith.select %28, %23, %30 : vector<16x128xi1>, vector<16x128xf32>
    %c0_29 = arith.constant 0 : index
    %c0_30 = arith.constant 0 : index
    %c0_31 = arith.constant 0 : index
    %32 = vector.load %arg7[%c0_29, %c0_30, %c0_31] : memref<1x16x128xf32, #tpu.memory_space<vmem>>, vector<1x16x128xf32>
    %33 = vector.shape_cast %32 : vector<1x16x128xf32> to vector<16x128xf32>
    %34 = vector.shape_cast %31 : vector<16x128xf32> to vector<1x16x128xf32>
    tpu.vector_store %arg7[%c0_29, %c0_30, %c0_31], %34 {strides = array<i32>} : memref<1x16x128xf32, #tpu.memory_space<vmem>>, vector<1x16x128xf32>,
    return
  }
  func.func @transform_0(%arg0: i32, %arg1: i32) -> (i32, i32, i32) {
    %c0_i32 = arith.constant 0 : i32
    %c0_i32_0 = arith.constant 0 : i32
    return %arg0, %arg1, %c0_i32 : i32, i32, i32
  }
  func.func @transform_1(%arg0: i32, %arg1: i32) -> (i32, i32, i32) {
    %c1_i32 = arith.constant 1 : i32
    %0 = arith.addi %arg1, %c1_i32 : i32
    %c1_i32_0 = arith.constant 1 : i32
    %1 = arith.muli %0, %c1_i32_0 : i32
    %c0_i32 = arith.constant 0 : i32
    %c0_i32_1 = arith.constant 0 : i32
    return %arg0, %1, %c0_i32 : i32, i32, i32
  }
  func.func @transform_2(%arg0: i32, %arg1: i32) -> (i32, i32, i32) {
    %c0_i32 = arith.constant 0 : i32
    %c0_i32_0 = arith.constant 0 : i32
    %c0_i32_1 = arith.constant 0 : i32
    %c0_i32_2 = arith.constant 0 : i32
    return %c0_i32, %c0_i32_0, %c0_i32_1 : i32, i32, i32
  }
  func.func @transform_3(%arg0: i32, %arg1: i32) -> (i32, i32) {
    %c0_i32 = arith.constant 0 : i32
    %c0_i32_0 = arith.constant 0 : i32
    %c0_i32_1 = arith.constant 0 : i32
    return %c0_i32, %c0_i32_0 : i32, i32
  }
  func.func @transform_4(%arg0: i32, %arg1: i32) -> (i32, i32, i32) {
    %c0_i32 = arith.constant 0 : i32
    %c0_i32_0 = arith.constant 0 : i32
    return %arg0, %arg1, %c0_i32 : i32, i32, i32
  }
  func.func @transform_5(%arg0: i32, %arg1: i32) -> (i32, i32, i32) {
    %c0_i32 = arith.constant 0 : i32
    %c0_i32_0 = arith.constant 0 : i32
    return %arg0, %arg1, %c0_i32 : i32, i32, i32
  }
}

module attributes {stable_mosaic.version = 11 : i64} {
  func.func @kernel(%arg0: i32, %arg1: i32, %arg2: memref<1x16x128xf32, #tpu.memory_space<vmem>>, %arg3: memref<1x16x128xf32, #tpu.memory_space<vmem>>, %arg4: memref<3x128x128xf32, #tpu.memory_space<vmem>>, %arg5: memref<1x128xf32, #tpu.memory_space<vmem>>, %arg6: memref<1x16x128xf32, #tpu.memory_space<vmem>>, %arg7: memref<32x128xf32, #tpu.memory_space<vmem>>) attributes {dimension_semantics = [#tpu.dimension_semantics<parallel>, #tpu.dimension_semantics<parallel>], iteration_bounds = array<i64: 2, 1>, scalar_prefetch = 0 : i64, scratch_operands = 1 : i64, tpu.core_type = #tpu.core_type<tc>, window_params = [{transform_indices = @transform_0, window_bounds = array<i64: 1, 16, 128>}, {transform_indices = @transform_1, window_bounds = array<i64: 1, 16, 128>}, {pipeline_mode = #tpu.pipeline_mode<synchronous>, transform_indices = @transform_2, window_bounds = array<i64: 3, 128, 128>}, {pipeline_mode = #tpu.pipeline_mode<synchronous>, transform_indices = @transform_3, window_bounds = array<i64: 1, 128>}, {transform_indices = @transform_4, window_bounds = array<i64: 1, 16, 128>}]} {
    %c0 = arith.constant 0 : index
    %c0_0 = arith.constant 0 : index
    %c0_1 = arith.constant 0 : index
    %0 = vector.load %arg2[%c0, %c0_0, %c0_1] : memref<1x16x128xf32, #tpu.memory_space<vmem>>, vector<1x16x128xf32>
    %1 = vector.shape_cast %0 : vector<1x16x128xf32> to vector<16x128xf32>
    %c0_2 = arith.constant 0 : index
    %c0_3 = arith.constant 0 : index
    %2 = vector.load %arg7[%c0_2, %c0_3] : memref<32x128xf32, #tpu.memory_space<vmem>>, vector<16x128xf32>
    tpu.vector_store %arg7[%c0_2, %c0_3], %1 {strides = array<i32>} : memref<32x128xf32, #tpu.memory_space<vmem>>, vector<16x128xf32>,
    %c0_4 = arith.constant 0 : index
    %c0_5 = arith.constant 0 : index
    %c0_6 = arith.constant 0 : index
    %3 = vector.load %arg3[%c0_4, %c0_5, %c0_6] : memref<1x16x128xf32, #tpu.memory_space<vmem>>, vector<1x16x128xf32>
    %4 = vector.shape_cast %3 : vector<1x16x128xf32> to vector<16x128xf32>
    %c16 = arith.constant 16 : index
    %c0_7 = arith.constant 0 : index
    %5 = vector.load %arg7[%c16, %c0_7] : memref<32x128xf32, #tpu.memory_space<vmem>>, vector<16x128xf32>
    tpu.vector_store %arg7[%c16, %c0_7], %4 {strides = array<i32>} : memref<32x128xf32, #tpu.memory_space<vmem>>, vector<16x128xf32>,
    %cst = arith.constant 0.000000e+00 : f32
    %6 = vector.broadcast %cst : f32 to vector<16x128xf32>
    %c0_8 = arith.constant 0 : index
    %c0_9 = arith.constant 0 : index
    %c0_10 = arith.constant 0 : index
    %7 = vector.load %arg4[%c0_8, %c0_9, %c0_10] : memref<3x128x128xf32, #tpu.memory_space<vmem>>, vector<1x128x128xf32>
    %8 = vector.shape_cast %7 : vector<1x128x128xf32> to vector<128x128xf32>
    %cst_11 = arith.constant dense<0.000000e+00> : vector<16x128xf32>
    %9 = tpu.matmul %1, %8, %cst_11 {dimension_numbers = #tpu.dot_dimension_numbers<[1], [0], [0], [1], [0, 0, 1, 1], [], []>} : vector<16x128xf32>, vector<128x128xf32>, vector<16x128xf32> -> vector<16x128xf32>
    %10 = arith.addf %6, %9 : vector<16x128xf32>
    %c1 = arith.constant 1 : index
    %c0_12 = arith.constant 0 : index
    %11 = vector.load %arg7[%c1, %c0_12] : memref<32x128xf32, #tpu.memory_space<vmem>>, vector<16x128xf32>
    %c1_13 = arith.constant 1 : index
    %c0_14 = arith.constant 0 : index
    %c0_15 = arith.constant 0 : index
    %12 = vector.load %arg4[%c1_13, %c0_14, %c0_15] : memref<3x128x128xf32, #tpu.memory_space<vmem>>, vector<1x128x128xf32>
    %13 = vector.shape_cast %12 : vector<1x128x128xf32> to vector<128x128xf32>
    %cst_16 = arith.constant dense<0.000000e+00> : vector<16x128xf32>
    %14 = tpu.matmul %11, %13, %cst_16 {dimension_numbers = #tpu.dot_dimension_numbers<[1], [0], [0], [1], [0, 0, 1, 1], [], []>} : vector<16x128xf32>, vector<128x128xf32>, vector<16x128xf32> -> vector<16x128xf32>
    %15 = arith.addf %10, %14 : vector<16x128xf32>
    %c2 = arith.constant 2 : index
    %c0_17 = arith.constant 0 : index
    %16 = vector.load %arg7[%c2, %c0_17] : memref<32x128xf32, #tpu.memory_space<vmem>>, vector<16x128xf32>
    %c2_18 = arith.constant 2 : index
    %c0_19 = arith.constant 0 : index
    %c0_20 = arith.constant 0 : index
    %17 = vector.load %arg4[%c2_18, %c0_19, %c0_20] : memref<3x128x128xf32, #tpu.memory_space<vmem>>, vector<1x128x128xf32>
    %18 = vector.shape_cast %17 : vector<1x128x128xf32> to vector<128x128xf32>
    %cst_21 = arith.constant dense<0.000000e+00> : vector<16x128xf32>
    %19 = tpu.matmul %16, %18, %cst_21 {dimension_numbers = #tpu.dot_dimension_numbers<[1], [0], [0], [1], [0, 0, 1, 1], [], []>} : vector<16x128xf32>, vector<128x128xf32>, vector<16x128xf32> -> vector<16x128xf32>
    %20 = arith.addf %15, %19 : vector<16x128xf32>
    %c0_22 = arith.constant 0 : index
    %c0_23 = arith.constant 0 : index
    %21 = vector.load %arg5[%c0_22, %c0_23] : memref<1x128xf32, #tpu.memory_space<vmem>>, vector<1x128xf32>
    %22 = vector.broadcast %21 : vector<1x128xf32> to vector<16x128xf32>
    %23 = arith.addf %20, %22 : vector<16x128xf32>
    %c0_24 = arith.constant 0 : index
    %c0_25 = arith.constant 0 : index
    %c0_26 = arith.constant 0 : index
    %24 = vector.load %arg6[%c0_24, %c0_25, %c0_26] : memref<1x16x128xf32, #tpu.memory_space<vmem>>, vector<1x16x128xf32>
    %25 = vector.shape_cast %24 : vector<1x16x128xf32> to vector<16x128xf32>
    %26 = vector.shape_cast %23 : vector<16x128xf32> to vector<1x16x128xf32>
    tpu.vector_store %arg6[%c0_24, %c0_25, %c0_26], %26 {strides = array<i32>} : memref<1x16x128xf32, #tpu.memory_space<vmem>>, vector<1x16x128xf32>,
    return
  }
  func.func @transform_0(%arg0: i32, %arg1: i32) -> (i32, i32, i32) {
    %c0_i32 = arith.constant 0 : i32
    %c0_i32_0 = arith.constant 0 : i32
    return %arg0, %arg1, %c0_i32 : i32, i32, i32
  }
  func.func @transform_1(%arg0: i32, %arg1: i32) -> (i32, i32, i32) {
    %c1_i32 = arith.constant 1 : i32
    %0 = arith.addi %arg1, %c1_i32 : i32
    %c1_i32_0 = arith.constant 1 : i32
    %1 = arith.muli %0, %c1_i32_0 : i32
    %c0_i32 = arith.constant 0 : i32
    %c0_i32_1 = arith.constant 0 : i32
    return %arg0, %1, %c0_i32 : i32, i32, i32
  }
  func.func @transform_2(%arg0: i32, %arg1: i32) -> (i32, i32, i32) {
    %c0_i32 = arith.constant 0 : i32
    %c0_i32_0 = arith.constant 0 : i32
    %c0_i32_1 = arith.constant 0 : i32
    %c0_i32_2 = arith.constant 0 : i32
    return %c0_i32, %c0_i32_0, %c0_i32_1 : i32, i32, i32
  }
  func.func @transform_3(%arg0: i32, %arg1: i32) -> (i32, i32) {
    %c0_i32 = arith.constant 0 : i32
    %c0_i32_0 = arith.constant 0 : i32
    %c0_i32_1 = arith.constant 0 : i32
    return %c0_i32, %c0_i32_0 : i32, i32
  }
  func.func @transform_4(%arg0: i32, %arg1: i32) -> (i32, i32, i32) {
    %c0_i32 = arith.constant 0 : i32
    %c0_i32_0 = arith.constant 0 : i32
    return %arg0, %arg1, %c0_i32 : i32, i32, i32
  }
}

</mosaic_0001>

<llo_original>
// kernel: _lambda_.10
$region0: #{_lambda_.10}
  #allocation0 [shape = 'u32[]', space=smem, size = 0x4, offset = 0x4, fixed_abs, tag = 'smem constant byte address 0x4 - core index']
  #allocation1 [shape = 'u32[144,128]{1,0:T(1,128)}', space=vmem, size = 0x12000, scoped, tag = 'internal scratch']
  #allocation2 [shape = 'f32[48,256]{1,0:T(8,128)}', space=vmem, size = 0xc000, scoped, tag = 'scratch operand']
  %s0 = inlined_call_operand.vmem [shape: f32[2,48,256], index: 0, kind: input, shape index: {}, may-alias: {0,1}]
  %s1 = inlined_call_operand.vmem [shape: f32[2,48,256], index: 1, kind: input, shape index: {}, may-alias: {0,1}]
  %s2 = inlined_call_operand.vmem [shape: f32[2,256,128], index: 2, kind: input, shape index: {}]
  %s3 = inlined_call_operand.vmem [shape: f32[1,128], index: 3, kind: input, shape index: {}]
  %s4 = inlined_call_operand.vmem [shape: f32[2,32,128], index: 4, kind: output, shape index: {0}]
  %s5 = inlined_call_operand.vmem [shape: f32[2,32,128], index: 5, kind: output, shape index: {1}]
  %6 = xla_tuple %s4, %s5
  %s7 = sld [smem:[#allocation0]]
  $region57: #{_lambda_.10} parent=0
    _
  %s9 = ssub.s32 1, %s7
  %s10 = scalar_select 0, %s9, %s7
  loop: start=0, step=1, limit=4
  $region2: #{_lambda_.10} parent=0 // loop_pre_header
    _
  $region3: #{_lambda_.10} parent=0 // loop_header
    %s12 = sphi 0, %s16
    %p13 = scmp.ge.s32.totalorder %s12, 4
    %s19 = sphi 0, %s31
    %s20 = sphi 0, %s27
    %s21 = sphi 0, %s19
    %s22 = sphi 0, %s20
    %s23 = sphi 0, %s21
    %s24 = sphi 0, %s22
    %s36 = sphi 0, %s38
    %s39 = sphi 0, %s36
    %s40 = sphi 0, %s39
    %s56 = sphi 0, %s40
    %s68 = sphi 0, %s70
    %s71 = sphi 0, %s68
    %s72 = sphi 0, %s71
    %s88 = sphi 0, %s72
    %s92 = sphi 0, %s92
    %s94 = sphi 0, %s92
    %s95 = sphi 0, %s94
    %s109 = sphi 0, %s95
    %s113 = sphi 0, %s113
    %s115 = sphi 0, %s113
    %s116 = sphi 0, %s115
    %s130 = sphi 0, %s116
    %s138 = sphi 0, %s140
    %s141 = sphi 0, %s138
    %s142 = sphi 0, %s141
    %s158 = sphi 0, %s142
    %s166 = sphi 0, %s168
    %s169 = sphi 0, %s166
    %s170 = sphi 0, %s169
    %s186 = sphi 0, %s170
  $region4: #{_lambda_.10} parent=0 // loop_header_branch
    %15 = sbr.rel (%p13) target = $region8
  $region5: #{_lambda_.10} parent=0 // loop_body
    %s17 = ssub.s32 %s12, 1
    %s18 = ssub.s32 %s12, 2
    %s25 = sadd.s32 1, %s20
    %p26 = scmp.ge.s32.totalorder %s25, 1
    %s27 = scalar_select %p26, 0, %s25
    %s28 = sadd.s32 1, %s19
    %s29 = scalar_select %p26, %s28, %s19
    %p30 = scmp.ge.s32.totalorder %s29, 2
    %s31 = scalar_select %p30, 0, %s29
    %s32 = ssub.s32 %s19, %s31
    %s33 = ssub.s32 %s20, %s27
    %s34 = sor.u32 %s32, %s33
    %p35 = scmp.eq.s32.totalorder %s34, 0
    %s37 = sadd.s32 %s36, 1
    %s38 = scalar_select %p35, %s36, %s37
    %p41 = pneg %p35
    %p42 = scmp.eq.s32.totalorder %s12, 1
    %p43 = por %p41, %p42
    %p44 = scmp.ne.s32.totalorder %s36, %s39
    %p45 = scmp.eq.s32.totalorder %s12, 0
    %p46 = por %p44, %p45
    %p47 = scmp.ne.s32.totalorder %s36, %s39
    %p48 = scmp.eq.s32.totalorder %s17, 1
    %p49 = por %p47, %p48
    %p50 = scmp.ne.s32.totalorder %s39, %s40
    %p51 = scmp.eq.s32.totalorder %s17, 0
    %p52 = por %p50, %p51
    %p53 = scmp.ne.s32.totalorder %s39, %s40
    %p54 = scmp.eq.s32.totalorder %s18, 1
    %p55 = por %p53, %p54
    %p57 = scmp.ne.s32.totalorder %s40, %s56
    %p58 = scmp.eq.s32.totalorder %s18, 0
    %p59 = por %p57, %p58
    %s60 = sadd.s32 %s20, 1
    %s61 = smul.u32 %s60, 2
    %s62 = sadd.s32 %s27, 1
    %s63 = smul.u32 %s62, 2
    %s64 = ssub.s32 %s19, %s31
    %s65 = ssub.s32 %s61, %s63
    %s66 = sor.u32 %s64, %s65
    %p67 = scmp.eq.s32.totalorder %s66, 0
    %s69 = sadd.s32 %s68, 1
    %s70 = scalar_select %p67, %s68, %s69
    %p73 = pneg %p67
    %p74 = scmp.eq.s32.totalorder %s12, 1
    %p75 = por %p73, %p74
    %p76 = scmp.ne.s32.totalorder %s68, %s71
    %p77 = scmp.eq.s32.totalorder %s12, 0
    %p78 = por %p76, %p77
    %p79 = scmp.ne.s32.totalorder %s68, %s71
    %p80 = scmp.eq.s32.totalorder %s17, 1
    %p81 = por %p79, %p80
    %p82 = scmp.ne.s32.totalorder %s71, %s72
    %p83 = scmp.eq.s32.totalorder %s17, 0
    %p84 = por %p82, %p83
    %p85 = scmp.ne.s32.totalorder %s71, %s72
    %p86 = scmp.eq.s32.totalorder %s18, 1
    %p87 = por %p85, %p86
    %p89 = scmp.ne.s32.totalorder %s72, %s88
    %p90 = scmp.eq.s32.totalorder %s18, 0
    %p91 = por %p89, %p90
    %s93 = sadd.s32 %s92, 1
    %p96 = scmp.eq.s32.totalorder %s12, 1
    %p97 = scmp.ne.s32.totalorder %s92, %s94
    %p98 = scmp.eq.s32.totalorder %s12, 0
    %p99 = por %p97, %p98
    %p100 = scmp.ne.s32.totalorder %s92, %s94
    %p101 = scmp.eq.s32.totalorder %s17, 1
    %p102 = por %p100, %p101
    %p103 = scmp.ne.s32.totalorder %s94, %s95
    %p104 = scmp.eq.s32.totalorder %s17, 0
    %p105 = por %p103, %p104
    %p106 = scmp.ne.s32.totalorder %s94, %s95
    %p107 = scmp.eq.s32.totalorder %s18, 1
    %p108 = por %p106, %p107
    %p110 = scmp.ne.s32.totalorder %s95, %s109
    %p111 = scmp.eq.s32.totalorder %s18, 0
    %p112 = por %p110, %p111
    %s114 = sadd.s32 %s113, 1
    %p117 = scmp.eq.s32.totalorder %s12, 1
    %p118 = scmp.ne.s32.totalorder %s113, %s115
    %p119 = scmp.eq.s32.totalorder %s12, 0
    %p120 = por %p118, %p119
    %p121 = scmp.ne.s32.totalorder %s113, %s115
    %p122 = scmp.eq.s32.totalorder %s17, 1
    %p123 = por %p121, %p122
    %p124 = scmp.ne.s32.totalorder %s115, %s116
    %p125 = scmp.eq.s32.totalorder %s17, 0
    %p126 = por %p124, %p125
    %p127 = scmp.ne.s32.totalorder %s115, %s116
    %p128 = scmp.eq.s32.totalorder %s18, 1
    %p129 = por %p127, %p128
    %p131 = scmp.ne.s32.totalorder %s116, %s130
    %p132 = scmp.eq.s32.totalorder %s18, 0
    %p133 = por %p131, %p132
    %s134 = ssub.s32 %s19, %s31
    %s135 = ssub.s32 %s20, %s27
    %s136 = sor.u32 %s134, %s135
    %p137 = scmp.eq.s32.totalorder %s136, 0
    %s139 = sadd.s32 %s138, 1
    %s140 = scalar_select %p137, %s138, %s139
    %p143 = pneg %p137
    %p144 = scmp.eq.s32.totalorder %s12, 1
    %p145 = por %p143, %p144
    %p146 = scmp.ne.s32.totalorder %s138, %s141
    %p147 = scmp.eq.s32.totalorder %s12, 0
    %p148 = por %p146, %p147
    %p149 = scmp.ne.s32.totalorder %s138, %s141
    %p150 = scmp.eq.s32.totalorder %s17, 1
    %p151 = por %p149, %p150
    %p152 = scmp.ne.s32.totalorder %s141, %s142
    %p153 = scmp.eq.s32.totalorder %s17, 0
    %p154 = por %p152, %p153
    %p155 = scmp.ne.s32.totalorder %s141, %s142
    %p156 = scmp.eq.s32.totalorder %s18, 1
    %p157 = por %p155, %p156
    %p159 = scmp.ne.s32.totalorder %s142, %s158
    %p160 = scmp.eq.s32.totalorder %s18, 0
    %p161 = por %p159, %p160
    %s162 = ssub.s32 %s19, %s31
    %s163 = ssub.s32 %s20, %s27
    %s164 = sor.u32 %s162, %s163
    %p165 = scmp.eq.s32.totalorder %s164, 0
    %s167 = sadd.s32 %s166, 1
    %s168 = scalar_select %p165, %s166, %s167
    %p171 = pneg %p165
    %p172 = scmp.eq.s32.totalorder %s12, 1
    %p173 = por %p171, %p172
    %p174 = scmp.ne.s32.totalorder %s166, %s169
    %p175 = scmp.eq.s32.totalorder %s12, 0
    %p176 = por %p174, %p175
    %p177 = scmp.ne.s32.totalorder %s166, %s169
    %p178 = scmp.eq.s32.totalorder %s17, 1
    %p179 = por %p177, %p178
    %p180 = scmp.ne.s32.totalorder %s169, %s170
    %p181 = scmp.eq.s32.totalorder %s17, 0
    %p182 = por %p180, %p181
    %p183 = scmp.ne.s32.totalorder %s169, %s170
    %p184 = scmp.eq.s32.totalorder %s18, 1
    %p185 = por %p183, %p184
    %p187 = scmp.ne.s32.totalorder %s170, %s186
    %p188 = scmp.eq.s32.totalorder %s18, 0
    %p189 = por %p187, %p188
    %p190 = scmp.le.s32.totalorder 1, %s12
    %p191 = scmp.lt.s32.totalorder %s12, 3
    %p192 = pnand %p190, %p191
    %p193 = pneg %p192
    // Predicated region
    $region9: #{_lambda_.10} parent=5 // pred_check
      _
    $region10: #{_lambda_.10} parent=5 // pred_check_branch
      %195 = sbr.rel (%p192) target = $region12
    $region11: #{_lambda_.10} parent=5 // pred_region
      %s196 = ssub.s32 %s12, 1
      // Predicated region
      $region13: #{_lambda_.10} parent=11 // pred_check
        %p197 = pneg %p105
      $region14: #{_lambda_.10} parent=11 // pred_check_branch
        %199 = sbr.rel (%p197) target = $region16
      $region15: #{_lambda_.10} parent=11 // pred_region
        _
      $region16: #{_lambda_.10} parent=11 // pred_fallthru
        _
      // Predicated region
      $region17: #{_lambda_.10} parent=11 // pred_check
        %p200 = pneg %p126
      $region18: #{_lambda_.10} parent=11 // pred_check_branch
        %202 = sbr.rel (%p200) target = $region20
      $region19: #{_lambda_.10} parent=11 // pred_region
        _
      $region20: #{_lambda_.10} parent=11 // pred_fallthru
        _
    $region12: #{_lambda_.10} parent=5 // pred_fallthru
      _
    %p203 = scmp.lt.s32.totalorder %s12, 2
    // Predicated region
    $region21: #{_lambda_.10} parent=5 // pred_check
      %p204 = pneg %p203
    $region22: #{_lambda_.10} parent=5 // pred_check_branch
      %206 = sbr.rel (%p204) target = $region24
    $region23: #{_lambda_.10} parent=5 // pred_region
      // Predicated region
      $region25: #{_lambda_.10} parent=23 // pred_check
        %p207 = pneg %p46
      $region26: #{_lambda_.10} parent=23 // pred_check_branch
        %209 = sbr.rel (%p207) target = $region28
      $region27: #{_lambda_.10} parent=23 // pred_region
        %s210 = smul.u32 4, %s20
        %s211 = ssub.s32 6, %s210
        %p212 = scmp.lt.s32.totalorder %s211, 4
        %s213 = scalar_select %p212, %s211, 4
        %s214 = smul.u32 128, %s213
        %s215 = smul.u32 %s214, 2
        %p216 = scmp.lt.s32.totalorder %s19, 1
        %s217 = scalar_select %p216, %s19, 1
        %p218 = scmp.lt.s32.totalorder %s210, 5
        %s219 = scalar_select %p218, %s210, 5
        %s220 = smul.addr %s219, 2
        %s221 = smul.addr %s217, 12
        %s222 = sadd.s32 %s220, %s221
        %s223 = smul.addr %s222, 8
        %s224 = scalar_lea.vmem %s0, %s223
        %s225 = smul.u32 4, %s20
        %s226 = ssub.s32 6, %s225
        %p227 = scmp.lt.s32.totalorder %s226, 4
        %s228 = scalar_select %p227, %s226, 4
        %s229 = smul.u32 128, %s228
        %s230 = smul.u32 %s229, 2
      $region28: #{_lambda_.10} parent=23 // pred_fallthru
        _
      // Predicated region
      $region29: #{_lambda_.10} parent=23 // pred_check
        %p231 = pneg %p78
      $region30: #{_lambda_.10} parent=23 // pred_check_branch
        %233 = sbr.rel (%p231) target = $region32
      $region31: #{_lambda_.10} parent=23 // pred_region
        %s234 = sadd.s32 %s20, 1
        %s235 = smul.u32 %s234, 2
        %s236 = smul.u32 2, %s235
        %p237 = scmp.lt.s32.totalorder %s19, 1
        %s238 = scalar_select %p237, %s19, 1
        %p239 = scmp.lt.s32.totalorder %s236, 5
        %s240 = scalar_select %p239, %s236, 5
        %s241 = smul.addr %s240, 2
        %s242 = smul.addr %s238, 12
        %s243 = sadd.s32 %s241, %s242
        %s244 = smul.addr %s243, 8
        %s245 = scalar_lea.vmem %s1, %s244
        %s246 = sadd.s32 %s20, 1
        %s247 = smul.u32 %s246, 2
        %s248 = smul.u32 2, %s247
      $region32: #{_lambda_.10} parent=23 // pred_fallthru
        _
    $region24: #{_lambda_.10} parent=5 // pred_fallthru
      _
    %p249 = scmp.le.s32.totalorder 1, %s12
    %p250 = scmp.lt.s32.totalorder %s12, 3
    %p251 = pnand %p249, %p250
    %p252 = pneg %p251
    // Predicated region
    $region33: #{_lambda_.10} parent=5 // pred_check
      _
    $region34: #{_lambda_.10} parent=5 // pred_check_branch
      %254 = sbr.rel (%p251) target = $region36
    $region35: #{_lambda_.10} parent=5 // pred_region
      %s255 = ssub.s32 %s12, 1
      %s256 = smul.u32 4, %s22
      %s257 = ssub.s32 6, %s256
      %p258 = scmp.lt.s32.totalorder %s257, 4
      %s259 = scalar_select %p258, %s257, 4
      %s260 = smul.u32 128, %s259
      %s261 = smul.u32 %s260, 2
      %p262 = scmp.lt.s32.totalorder %s21, 1
      %s263 = scalar_select %p262, %s21, 1
      %p264 = scmp.lt.s32.totalorder %s256, 5
      %s265 = scalar_select %p264, %s256, 5
      %s266 = smul.addr %s265, 2
      %s267 = smul.addr %s263, 12
      %s268 = sadd.s32 %s266, %s267
      %s269 = smul.addr %s268, 8
      %s270 = scalar_lea.vmem %s0, %s269
      %p271 = pneg %p52
      %p272 = pneg %p49
      %s273 = sadd.s32 %s22, 1
      %s274 = smul.u32 %s273, 2
      %s275 = smul.u32 2, %s274
      %p276 = scmp.lt.s32.totalorder %s21, 1
      %s277 = scalar_select %p276, %s21, 1
      %p278 = scmp.lt.s32.totalorder %s275, 5
      %s279 = scalar_select %p278, %s275, 5
      %s280 = smul.addr %s279, 2
      %s281 = smul.addr %s277, 12
      %s282 = sadd.s32 %s280, %s281
      %s283 = smul.addr %s282, 8
      %s284 = scalar_lea.vmem %s1, %s283
      %p285 = pneg %p84
      %p286 = pneg %p81
      %p287 = pneg %p105
      %p288 = pneg %p102
      %p289 = pneg %p126
      %p290 = pneg %p123
      %p291 = pneg %p154
      %p292 = pneg %p151
      %s293 = smul.u32 4, %s22
      %p294 = scmp.lt.s32.totalorder %s21, 1
      %s295 = scalar_select %p294, %s21, 1
      %p296 = scmp.lt.s32.totalorder %s293, 3
      %s297 = scalar_select %p296, %s293, 3
      %s298 = smul.addr %s295, 4
      %s299 = sadd.s32 %s297, %s298
      %s300 = smul.addr %s299, 8
      %s301 = scalar_lea.vmem %s4, %s300
      %p302 = pneg %p182
      %p303 = pneg %p179
      %s304 = smul.u32 4, %s22
      %p305 = scmp.lt.s32.totalorder %s21, 1
      %s306 = scalar_select %p305, %s21, 1
      %p307 = scmp.lt.s32.totalorder %s304, 3
      %s308 = scalar_select %p307, %s304, 3
      %s309 = smul.addr %s306, 4
      %s310 = sadd.s32 %s308, %s309
      %s311 = smul.addr %s310, 8
      %s312 = scalar_lea.vmem %s5, %s311
      %s313 = smul.u32 4, %s22
      %s314 = ssub.s32 6, %s313
      %p315 = scmp.lt.s32.totalorder %s314, 4
      %s316 = scalar_select %p315, %s314, 4
      %s317 = smul.u32 128, %s316
      %s318 = smul.u32 %s317, 2
      %p319 = scmp.lt.s32.totalorder %s21, 1
      %s320 = scalar_select %p319, %s21, 1
      %p321 = scmp.lt.s32.totalorder %s313, 5
      %s322 = scalar_select %p321, %s313, 5
      %s323 = smul.addr %s322, 2
      %s324 = smul.addr %s320, 12
      %s325 = sadd.s32 %s323, %s324
      %s326 = smul.addr %s325, 8
      %s327 = scalar_lea.vmem %s0, %s326
      %s328 = smul.u32 4, %s22
      %s329 = ssub.s32 6, %s328
      %p330 = scmp.lt.s32.totalorder %s329, 4
      %s331 = scalar_select %p330, %s329, 4
      %s332 = smul.u32 128, %s331
      %s333 = smul.u32 %s332, 2
      %s334 = sadd.s32 %s22, 1
      %s335 = smul.u32 %s334, 2
      %s336 = smul.u32 2, %s335
      %p337 = scmp.lt.s32.totalorder %s21, 1
      %s338 = scalar_select %p337, %s21, 1
      %p339 = scmp.lt.s32.totalorder %s336, 5
      %s340 = scalar_select %p339, %s336, 5
      %s341 = smul.addr %s340, 2
      %s342 = smul.addr %s338, 12
      %s343 = sadd.s32 %s341, %s342
      %s344 = smul.addr %s343, 8
      %s345 = scalar_lea.vmem %s1, %s344
      %s346 = sadd.s32 %s22, 1
      %s347 = smul.u32 %s346, 2
      %s348 = smul.u32 2, %s347
      %s349 = smul.u32 4, %s22
      %p350 = scmp.lt.s32.totalorder %s21, 1
      %s351 = scalar_select %p350, %s21, 1
      %p352 = scmp.lt.s32.totalorder %s349, 3
      %s353 = scalar_select %p352, %s349, 3
      %s354 = smul.addr %s351, 4
      %s355 = sadd.s32 %s353, %s354
      %s356 = smul.addr %s355, 8
      %s357 = scalar_lea.vmem %s4, %s356
      %s358 = smul.u32 4, %s22
      %s359 = smul.u32 4, %s22
      %p360 = scmp.lt.s32.totalorder %s21, 1
      %s361 = scalar_select %p360, %s21, 1
      %p362 = scmp.lt.s32.totalorder %s359, 3
      %s363 = scalar_select %p362, %s359, 3
      %s364 = smul.addr %s361, 4
      %s365 = sadd.s32 %s363, %s364
      %s366 = smul.addr %s365, 8
      %s367 = scalar_lea.vmem %s5, %s366
      %s368 = smul.u32 4, %s22
      %v369 = vld [vmem:[%s327] sm:$0xff]
      %v370 = vld [vmem:[%s327 + $0x8] sm:$0xff]
      %v371 = vld [vmem:[%s327 + $0x10] sm:$0xff]
      %v372 = vld [vmem:[%s327 + $0x18] sm:$0xff]
      %v373 = vld [vmem:[%s327 + $0x20] sm:$0xff]
      %v374 = vld [vmem:[%s327 + $0x28] sm:$0xff]
      %v375 = vld [vmem:[%s327 + $0x30] sm:$0xff]
      %v376 = vld [vmem:[%s327 + $0x38] sm:$0xff]
      %377 = vst [vmem:[#allocation2] sm:$0xff] %v369
      %378 = vst [vmem:[#allocation2 + $0x8] sm:$0xff] %v370
      %379 = vst [vmem:[#allocation2 + $0x10] sm:$0xff] %v371
      %380 = vst [vmem:[#allocation2 + $0x18] sm:$0xff] %v372
      %381 = vst [vmem:[#allocation2 + $0x20] sm:$0xff] %v373
      %382 = vst [vmem:[#allocation2 + $0x28] sm:$0xff] %v374
      %383 = vst [vmem:[#allocation2 + $0x30] sm:$0xff] %v375
      %384 = vst [vmem:[#allocation2 + $0x38] sm:$0xff] %v376
      %v385 = vld [vmem:[%s345] sm:$0xff]
      %v386 = vld [vmem:[%s345 + $0x8] sm:$0xff]
      %v387 = vld [vmem:[%s345 + $0x10] sm:$0xff]
      %v388 = vld [vmem:[%s345 + $0x18] sm:$0xff]
      %389 = vst [vmem:[#allocation2 + $0x40] sm:$0xff] %v385
      %390 = vst [vmem:[#allocation2 + $0x48] sm:$0xff] %v386
      %391 = vst [vmem:[#allocation2 + $0x50] sm:$0xff] %v387
      %392 = vst [vmem:[#allocation2 + $0x58] sm:$0xff] %v388
      %v393 = vld [vmem:[%s2] sm:$0xff]
      %v394 = vld [vmem:[%s2 + $0x8] sm:$0xff]
      %v395 = vld [vmem:[%s2 + $0x10] sm:$0xff]
      %v396 = vld [vmem:[%s2 + $0x18] sm:$0xff]
      %v397 = vld [vmem:[%s2 + $0x20] sm:$0xff]
      %v398 = vld [vmem:[%s2 + $0x28] sm:$0xff]
      %v399 = vld [vmem:[%s2 + $0x30] sm:$0xff]
      %v400 = vld [vmem:[%s2 + $0x38] sm:$0xff]
      %v401 = vld [vmem:[%s2 + $0x40] sm:$0xff]
      %v402 = vld [vmem:[%s2 + $0x48] sm:$0xff]
      %v403 = vld [vmem:[%s2 + $0x50] sm:$0xff]
      %v404 = vld [vmem:[%s2 + $0x58] sm:$0xff]
      %v405 = vld [vmem:[%s2 + $0x60] sm:$0xff]
      %v406 = vld [vmem:[%s2 + $0x68] sm:$0xff]
      %v407 = vld [vmem:[%s2 + $0x70] sm:$0xff]
      %v408 = vld [vmem:[%s2 + $0x78] sm:$0xff]
      %v409 = vld [vmem:[%s2 + $0x80] sm:$0xff]
      %v410 = vld [vmem:[%s2 + $0x88] sm:$0xff]
      %v411 = vld [vmem:[%s2 + $0x90] sm:$0xff]
      %v412 = vld [vmem:[%s2 + $0x98] sm:$0xff]
      %v413 = vld [vmem:[%s2 + $0xa0] sm:$0xff]
      %v414 = vld [vmem:[%s2 + $0xa8] sm:$0xff]
      %v415 = vld [vmem:[%s2 + $0xb0] sm:$0xff]
      %v416 = vld [vmem:[%s2 + $0xb8] sm:$0xff]
      %v417 = vld [vmem:[%s2 + $0xc0] sm:$0xff]
      %v418 = vld [vmem:[%s2 + $0xc8] sm:$0xff]
      %v419 = vld [vmem:[%s2 + $0xd0] sm:$0xff]
      %v420 = vld [vmem:[%s2 + $0xd8] sm:$0xff]
      %v421 = vld [vmem:[%s2 + $0xe0] sm:$0xff]
      %v422 = vld [vmem:[%s2 + $0xe8] sm:$0xff]
      %v423 = vld [vmem:[%s2 + $0xf0] sm:$0xff]
      %v424 = vld [vmem:[%s2 + $0xf8] sm:$0xff]
      %v425 = vld [vmem:[#allocation2] sm:$0xfe]
      %v426 = vld [vmem:[#allocation2 + $0x8] sm:$0xfe]
      %v427 = vld [vmem:[#allocation2 + $0x10] sm:$0xff]
      %v428 = vld [vmem:[#allocation2 + $0x18] sm:$0xff]
      %v429 = vld [vmem:[#allocation2 + $0x20] sm:$0xff]
      %v430 = vld [vmem:[#allocation2 + $0x28] sm:$0xff]
      %v431 = vld [vmem:[#allocation2 + $0x30] sm:$0xff]
      %v432 = vld [vmem:[#allocation2 + $0x38] sm:$0xff]
      %v433 = vld [vmem:[#allocation2 + $0x40] sm:$0x1]
      %v434 = vld [vmem:[#allocation2 + $0x48] sm:$0x1]
      %s435 = scalar_lea.vmem %s2, 256
      %v436 = vld [vmem:[%s435] sm:$0xff]
      %v437 = vld [vmem:[%s435 + $0x8] sm:$0xff]
      %v438 = vld [vmem:[%s435 + $0x10] sm:$0xff]
      %v439 = vld [vmem:[%s435 + $0x18] sm:$0xff]
      %v440 = vld [vmem:[%s435 + $0x20] sm:$0xff]
      %v441 = vld [vmem:[%s435 + $0x28] sm:$0xff]
      %v442 = vld [vmem:[%s435 + $0x30] sm:$0xff]
      %v443 = vld [vmem:[%s435 + $0x38] sm:$0xff]
      %v444 = vld [vmem:[%s435 + $0x40] sm:$0xff]
      %v445 = vld [vmem:[%s435 + $0x48] sm:$0xff]
      %v446 = vld [vmem:[%s435 + $0x50] sm:$0xff]
      %v447 = vld [vmem:[%s435 + $0x58] sm:$0xff]
      %v448 = vld [vmem:[%s435 + $0x60] sm:$0xff]
      %v449 = vld [vmem:[%s435 + $0x68] sm:$0xff]
      %v450 = vld [vmem:[%s435 + $0x70] sm:$0xff]
      %v451 = vld [vmem:[%s435 + $0x78] sm:$0xff]
      %v452 = vld [vmem:[%s435 + $0x80] sm:$0xff]
      %v453 = vld [vmem:[%s435 + $0x88] sm:$0xff]
      %v454 = vld [vmem:[%s435 + $0x90] sm:$0xff]
      %v455 = vld [vmem:[%s435 + $0x98] sm:$0xff]
      %v456 = vld [vmem:[%s435 + $0xa0] sm:$0xff]
      %v457 = vld [vmem:[%s435 + $0xa8] sm:$0xff]
      %v458 = vld [vmem:[%s435 + $0xb0] sm:$0xff]
      %v459 = vld [vmem:[%s435 + $0xb8] sm:$0xff]
      %v460 = vld [vmem:[%s435 + $0xc0] sm:$0xff]
      %v461 = vld [vmem:[%s435 + $0xc8] sm:$0xff]
      %v462 = vld [vmem:[%s435 + $0xd0] sm:$0xff]
      %v463 = vld [vmem:[%s435 + $0xd8] sm:$0xff]
      %v464 = vld [vmem:[%s435 + $0xe0] sm:$0xff]
      %v465 = vld [vmem:[%s435 + $0xe8] sm:$0xff]
      %v466 = vld [vmem:[%s435 + $0xf0] sm:$0xff]
      %v467 = vld [vmem:[%s435 + $0xf8] sm:$0xff]
      %vm478 = vcmask 1046528
      %v479 = vrot.slane %v425, 1
      %v480 = vrot.slane %v427, 1
      %v481 = vsel %vm478, %v479, %v480
      %v482 = vrot.slane %v426, 1
      %v483 = vrot.slane %v428, 1
      %v484 = vsel %vm478, %v482, %v483
      %v485 = vrot.slane %v429, 1
      %v486 = vsel %vm478, %v480, %v485
      %v487 = vrot.slane %v430, 1
      %v488 = vsel %vm478, %v483, %v487
      %v489 = vrot.slane %v431, 1
      %v490 = vsel %vm478, %v485, %v489
      %v491 = vrot.slane %v432, 1
      %v492 = vsel %vm478, %v487, %v491
      %v493 = vrot.slane %v433, 1
      %v494 = vsel %vm478, %v489, %v493
      %v495 = vrot.slane %v434, 1
      %v496 = vsel %vm478, %v491, %v495
      %505 = vmatprep.subr.mxu0 0.0
      %506 = vmatpush1.msra.mxu0 %v436
      %507 = vmatprep.subr.mxu0 0.0
      %508 = vmatpush1.msra.mxu0 %v437
      %509 = vmatprep.subr.mxu0 0.0
      %510 = vmatpush1.msra.mxu0 %v438
      %511 = vmatprep.subr.mxu0 0.0
      %512 = vmatpush1.msra.mxu0 %v439
      %513 = vmatprep.subr.mxu0 0.0
      %514 = vmatpush1.msra.mxu0 %v440
      %515 = vmatprep.subr.mxu0 0.0
      %516 = vmatpush1.msra.mxu0 %v441
      %517 = vmatprep.subr.mxu0 0.0
      %518 = vmatpush1.msra.mxu0 %v442
      %519 = vmatprep.subr.mxu0 0.0
      %520 = vmatpush1.msra.mxu0 %v443
      %521 = vmatprep.subr.mxu0 0.0
      %522 = vmatpush1.msra.mxu0 %v444
      %523 = vmatprep.subr.mxu0 0.0
      %524 = vmatpush1.msra.mxu0 %v445
      %525 = vmatprep.subr.mxu0 0.0
      %526 = vmatpush1.msra.mxu0 %v446
      %527 = vmatprep.subr.mxu0 0.0
      %528 = vmatpush1.msra.mxu0 %v447
      %529 = vmatprep.subr.mxu0 0.0
      %530 = vmatpush1.msra.mxu0 %v448
      %531 = vmatprep.subr.mxu0 0.0
      %532 = vmatpush1.msra.mxu0 %v449
      %533 = vmatprep.subr.mxu0 0.0
      %534 = vmatpush1.msra.mxu0 %v450
      %535 = vmatprep.subr.mxu0 0.0
      %536 = vmatpush1.msra.mxu0 %v451
      %537 = vmatprep.subr.mxu0 0.0
      %538 = vmatpush1.msra.mxu0 %v452
      %539 = vmatprep.subr.mxu0 0.0
      %540 = vmatpush1.msra.mxu0 %v453
      %541 = vmatprep.subr.mxu0 0.0
      %542 = vmatpush1.msra.mxu0 %v454
      %543 = vmatprep.subr.mxu0 0.0
      %544 = vmatpush1.msra.mxu0 %v455
      %545 = vmatprep.subr.mxu0 0.0
      %546 = vmatpush1.msra.mxu0 %v456
      %547 = vmatprep.subr.mxu0 0.0
      %548 = vmatpush1.msra.mxu0 %v457
      %549 = vmatprep.subr.mxu0 0.0
      %550 = vmatpush1.msra.mxu0 %v458
      %551 = vmatprep.subr.mxu0 0.0
      %552 = vmatpush1.msra.mxu0 %v459
      %553 = vmatprep.subr.mxu0 0.0
      %554 = vmatpush1.msra.mxu0 %v460
      %555 = vmatprep.subr.mxu0 0.0
      %556 = vmatpush1.msra.mxu0 %v461
      %557 = vmatprep.subr.mxu0 0.0
      %558 = vmatpush1.msra.mxu0 %v462
      %559 = vmatprep.subr.mxu0 0.0
      %560 = vmatpush1.msra.mxu0 %v463
      %561 = vmatprep.subr.mxu0 0.0
      %562 = vmatpush1.msra.mxu0 %v464
      %563 = vmatprep.subr.mxu0 0.0
      %564 = vmatpush1.msra.mxu0 %v465
      %565 = vmatprep.subr.mxu0 0.0
      %566 = vmatpush1.msra.mxu0 %v466
      %567 = vmatprep.subr.mxu0 0.0
      %568 = vmatpush1.msra.mxu0 %v467
      %569 = vmatprep.mubr.f32.mxu0 %v484
      %570 = vmatmul.mubr.f32.gmra.mrb[0].mxu0 %v481
      %v571 = vpop.f32.mrb[0].mxu0
      %v572 = vadd.f32 0.0, %v571
      %v573 = vpop.f32.mrb[0].mxu0
      %574 = vmatprep.mubr.f32.mxu0 %v488
      %575 = vmatmul.mubr.f32.gmra.mrb[0].mxu0 %v486
      %v576 = vpop.f32.mrb[0].mxu0
      %v577 = vadd.f32 0.0, %v576
      %v578 = vpop.f32.mrb[0].mxu0
      %579 = vmatprep.mubr.f32.mxu0 %v492
      %580 = vmatmul.mubr.f32.gmra.mrb[0].mxu0 %v490
      %v581 = vpop.f32.mrb[0].mxu0
      %v582 = vadd.f32 0.0, %v581
      %v583 = vpop.f32.mrb[0].mxu0
      %584 = vmatprep.mubr.f32.mxu0 %v496
      %585 = vmatmul.mubr.f32.gmra.mrb[0].mxu0 %v494
      %v586 = vpop.f32.mrb[0].mxu0
      %v587 = vadd.f32 0.0, %v586
      %v588 = vpop.f32.mrb[0].mxu0
      %589 = vdwg.mxu0
      %590 = vmatprep.subr.mxu0 0.0
      %591 = vmatpush1.msra.mxu0 %v393
      %592 = vmatprep.subr.mxu0 0.0
      %593 = vmatpush1.msra.mxu0 %v394
      %594 = vmatprep.subr.mxu0 0.0
      %595 = vmatpush1.msra.mxu0 %v395
      %596 = vmatprep.subr.mxu0 0.0
      %597 = vmatpush1.msra.mxu0 %v396
      %598 = vmatprep.subr.mxu0 0.0
      %599 = vmatpush1.msra.mxu0 %v397
      %600 = vmatprep.subr.mxu0 0.0
      %601 = vmatpush1.msra.mxu0 %v398
      %602 = vmatprep.subr.mxu0 0.0
      %603 = vmatpush1.msra.mxu0 %v399
      %604 = vmatprep.subr.mxu0 0.0
      %605 = vmatpush1.msra.mxu0 %v400
      %606 = vmatprep.subr.mxu0 0.0
      %607 = vmatpush1.msra.mxu0 %v401
      %608 = vmatprep.subr.mxu0 0.0
      %609 = vmatpush1.msra.mxu0 %v402
      %610 = vmatprep.subr.mxu0 0.0
      %611 = vmatpush1.msra.mxu0 %v403
      %612 = vmatprep.subr.mxu0 0.0
      %613 = vmatpush1.msra.mxu0 %v404
      %614 = vmatprep.subr.mxu0 0.0
      %615 = vmatpush1.msra.mxu0 %v405
      %616 = vmatprep.subr.mxu0 0.0
      %617 = vmatpush1.msra.mxu0 %v406
      %618 = vmatprep.subr.mxu0 0.0
      %619 = vmatpush1.msra.mxu0 %v407
      %620 = vmatprep.subr.mxu0 0.0
      %621 = vmatpush1.msra.mxu0 %v408
      %622 = vmatprep.subr.mxu0 0.0
      %623 = vmatpush1.msra.mxu0 %v409
      %624 = vmatprep.subr.mxu0 0.0
      %625 = vmatpush1.msra.mxu0 %v410
      %626 = vmatprep.subr.mxu0 0.0
      %627 = vmatpush1.msra.mxu0 %v411
      %628 = vmatprep.subr.mxu0 0.0
      %629 = vmatpush1.msra.mxu0 %v412
      %630 = vmatprep.subr.mxu0 0.0
      %631 = vmatpush1.msra.mxu0 %v413
      %632 = vmatprep.subr.mxu0 0.0
      %633 = vmatpush1.msra.mxu0 %v414
      %634 = vmatprep.subr.mxu0 0.0
      %635 = vmatpush1.msra.mxu0 %v415
      %636 = vmatprep.subr.mxu0 0.0
      %637 = vmatpush1.msra.mxu0 %v416
      %638 = vmatprep.subr.mxu0 0.0
      %639 = vmatpush1.msra.mxu0 %v417
      %640 = vmatprep.subr.mxu0 0.0
      %641 = vmatpush1.msra.mxu0 %v418
      %642 = vmatprep.subr.mxu0 0.0
      %643 = vmatpush1.msra.mxu0 %v419
      %644 = vmatprep.subr.mxu0 0.0
      %645 = vmatpush1.msra.mxu0 %v420
      %646 = vmatprep.subr.mxu0 0.0
      %647 = vmatpush1.msra.mxu0 %v421
      %648 = vmatprep.subr.mxu0 0.0
      %649 = vmatpush1.msra.mxu0 %v422
      %650 = vmatprep.subr.mxu0 0.0
      %651 = vmatpush1.msra.mxu0 %v423
      %652 = vmatprep.subr.mxu0 0.0
      %653 = vmatpush1.msra.mxu0 %v424
      %654 = vmatprep.mubr.f32.mxu0 %v370
      %655 = vmatmul.mubr.f32.gmra.mrb[0].mxu0 %v369
      %v656 = vpop.f32.mrb[0].mxu0
      %v657 = vadd.f32 %v572, %v656
      %v658 = vpop.f32.mrb[0].mxu0
      %659 = vmatprep.mubr.f32.mxu0 %v372
      %660 = vmatmul.mubr.f32.gmra.mrb[0].mxu0 %v371
      %v661 = vpop.f32.mrb[0].mxu0
      %v662 = vadd.f32 %v577, %v661
      %v663 = vpop.f32.mrb[0].mxu0
      %664 = vmatprep.mubr.f32.mxu0 %v374
      %665 = vmatmul.mubr.f32.gmra.mrb[0].mxu0 %v373
      %v666 = vpop.f32.mrb[0].mxu0
      %v667 = vadd.f32 %v582, %v666
      %v668 = vpop.f32.mrb[0].mxu0
      %669 = vmatprep.mubr.f32.mxu0 %v376
      %670 = vmatmul.mubr.f32.gmra.mrb[0].mxu0 %v375
      %v671 = vpop.f32.mrb[0].mxu0
      %v672 = vadd.f32 %v587, %v671
      %v673 = vpop.f32.mrb[0].mxu0
      %674 = vdwg.mxu0
      %v675 = vld [vmem:[%s3] sm:$0x1]
      %v677 = vlaneseq
      %v678 = vshrl.u32 %v677, 7
      %v679 = vsub.s32 0, %v678
      %v680 = vrot.slane %v675, %v679
      %v682 = vadd.f32 %v657, %v680
      %v683 = vadd.f32 %v662, %v680
      %v684 = vadd.f32 %v667, %v680
      %v685 = vadd.f32 %v672, %v680
      %686 = vst [vmem:[%s357] sm:$0xff] %v682
      %687 = vst [vmem:[%s357 + $0x8] sm:$0xff] %v683
      %688 = vst [vmem:[%s357 + $0x10] sm:$0xff] %v684
      %689 = vst [vmem:[%s357 + $0x18] sm:$0xff] %v685
      %vm690 = vcmp.gt.f32.partialorder %v682, 0.0
      %vm691 = vcmp.gt.f32.partialorder %v683, 0.0
      %vm692 = vcmp.gt.f32.partialorder %v684, 0.0
      %vm693 = vcmp.gt.f32.partialorder %v685, 0.0
      %v694 = vmul.f32 %v682, 0.1
      %v695 = vmul.f32 %v683, 0.1
      %v696 = vmul.f32 %v684, 0.1
      %v697 = vmul.f32 %v685, 0.1
      %v698 = vsel %vm690, %v682, %v694
      %v699 = vsel %vm691, %v683, %v695
      %v700 = vsel %vm692, %v684, %v696
      %v701 = vsel %vm693, %v685, %v697
      %702 = vst [vmem:[%s367] sm:$0xff] %v698
      %703 = vst [vmem:[%s367 + $0x8] sm:$0xff] %v699
      %704 = vst [vmem:[%s367 + $0x10] sm:$0xff] %v700
      %705 = vst [vmem:[%s367 + $0x18] sm:$0xff] %v701
      %s706 = smul.u32 4, %s22
      %p707 = scmp.lt.s32.totalorder %s21, 1
      %s708 = scalar_select %p707, %s21, 1
      %p709 = scmp.lt.s32.totalorder %s706, 3
      %s710 = scalar_select %p709, %s706, 3
      %s711 = smul.addr %s708, 4
      %s712 = sadd.s32 %s710, %s711
      %s713 = smul.addr %s712, 8
      %s714 = scalar_lea.vmem %s4, %s713
      %s715 = smul.u32 4, %s22
      %p716 = scmp.lt.s32.totalorder %s21, 1
      %s717 = scalar_select %p716, %s21, 1
      %p718 = scmp.lt.s32.totalorder %s715, 3
      %s719 = scalar_select %p718, %s715, 3
      %s720 = smul.addr %s717, 4
      %s721 = sadd.s32 %s719, %s720
      %s722 = smul.addr %s721, 8
      %s723 = scalar_lea.vmem %s5, %s722
      // Predicated region
      $region37: #{_lambda_.10} parent=35 // pred_check
        %p724 = pneg %p151
      $region38: #{_lambda_.10} parent=35 // pred_check_branch
        %726 = sbr.rel (%p724) target = $region40
      $region39: #{_lambda_.10} parent=35 // pred_region
        %s727 = smul.u32 4, %s22
      $region40: #{_lambda_.10} parent=35 // pred_fallthru
        _
      // Predicated region
      $region41: #{_lambda_.10} parent=35 // pred_check
        %p728 = pneg %p179
      $region42: #{_lambda_.10} parent=35 // pred_check_branch
        %730 = sbr.rel (%p728) target = $region44
      $region43: #{_lambda_.10} parent=35 // pred_region
        %s731 = smul.u32 4, %s22
      $region44: #{_lambda_.10} parent=35 // pred_fallthru
        _
    $region36: #{_lambda_.10} parent=5 // pred_fallthru
      _
    %p732 = scmp.le.s32.totalorder 2, %s12
    // Predicated region
    $region45: #{_lambda_.10} parent=5 // pred_check
      %p733 = pneg %p732
    $region46: #{_lambda_.10} parent=5 // pred_check_branch
      %735 = sbr.rel (%p733) target = $region48
    $region47: #{_lambda_.10} parent=5 // pred_region
      %s736 = ssub.s32 %s12, 2
      // Predicated region
      $region49: #{_lambda_.10} parent=47 // pred_check
        %p737 = pneg %p157
      $region50: #{_lambda_.10} parent=47 // pred_check_branch
        %739 = sbr.rel (%p737) target = $region52
      $region51: #{_lambda_.10} parent=47 // pred_region
        %s740 = smul.u32 4, %s24
        %p741 = scmp.lt.s32.totalorder %s23, 1
        %s742 = scalar_select %p741, %s23, 1
        %p743 = scmp.lt.s32.totalorder %s740, 3
        %s744 = scalar_select %p743, %s740, 3
        %s745 = smul.addr %s742, 4
        %s746 = sadd.s32 %s744, %s745
        %s747 = smul.addr %s746, 8
        %s748 = scalar_lea.vmem %s4, %s747
      $region52: #{_lambda_.10} parent=47 // pred_fallthru
        _
      // Predicated region
      $region53: #{_lambda_.10} parent=47 // pred_check
        %p749 = pneg %p185
      $region54: #{_lambda_.10} parent=47 // pred_check_branch
        %751 = sbr.rel (%p749) target = $region56
      $region55: #{_lambda_.10} parent=47 // pred_region
        %s752 = smul.u32 4, %s24
        %p753 = scmp.lt.s32.totalorder %s23, 1
        %s754 = scalar_select %p753, %s23, 1
        %p755 = scmp.lt.s32.totalorder %s752, 3
        %s756 = scalar_select %p755, %s752, 3
        %s757 = smul.addr %s754, 4
        %s758 = sadd.s32 %s756, %s757
        %s759 = smul.addr %s758, 8
        %s760 = scalar_lea.vmem %s5, %s759
      $region56: #{_lambda_.10} parent=47 // pred_fallthru
        _
    $region48: #{_lambda_.10} parent=5 // pred_fallthru
      _
  $region6: #{_lambda_.10} parent=0 // loop_footer
    %s16 = sadd.s32 1, %s12
  $region7: #{_lambda_.10} parent=0 // loop_footer_branch
    %11 = sbr.rel target = $region3
  $region8: #{_lambda_.10} parent=0 // loop_exit
    _

// kernel: _lambda_.9
$region0: #{_lambda_.9}
  #allocation0 [shape = 'u32[]', space=smem, size = 0x4, offset = 0x4, fixed_abs, tag = 'smem constant byte address 0x4 - core index']
  #allocation1 [shape = 'u32[144,128]{1,0:T(1,128)}', space=vmem, size = 0x12000, scoped, tag = 'internal scratch']
  #allocation2 [shape = 'f32[64,256]{1,0:T(8,128)}', space=vmem, size = 0x10000, scoped, tag = 'scratch operand']
  %s0 = inlined_call_operand.vmem [shape: f32[2,64,256], index: 0, kind: input, shape index: {}, may-alias: {0,1}]
  %s1 = inlined_call_operand.vmem [shape: f32[2,64,256], index: 1, kind: input, shape index: {}, may-alias: {0,1}]
  %s2 = inlined_call_operand.vmem [shape: f32[2,256,128], index: 2, kind: input, shape index: {}]
  %s3 = inlined_call_operand.vmem [shape: f32[1,128], index: 3, kind: input, shape index: {}]
  %s4 = inlined_call_operand.vmem [shape: f32[2,48,128], index: 4, kind: output, shape index: {0}]
  %s5 = inlined_call_operand.vmem [shape: f32[2,48,128], index: 5, kind: output, shape index: {1}]
  %6 = xla_tuple %s4, %s5
  %s7 = sld [smem:[#allocation0]]
  $region57: #{_lambda_.9} parent=0
    _
  %s9 = ssub.s32 1, %s7
  %s10 = scalar_select 0, %s9, %s7
  loop: start=0, step=1, limit=4
  $region2: #{_lambda_.9} parent=0 // loop_pre_header
    _
  $region3: #{_lambda_.9} parent=0 // loop_header
    %s12 = sphi 0, %s16
    %p13 = scmp.ge.s32.totalorder %s12, 4
    %s19 = sphi 0, %s31
    %s20 = sphi 0, %s27
    %s21 = sphi 0, %s19
    %s22 = sphi 0, %s20
    %s23 = sphi 0, %s21
    %s24 = sphi 0, %s22
    %s36 = sphi 0, %s38
    %s39 = sphi 0, %s36
    %s40 = sphi 0, %s39
    %s56 = sphi 0, %s40
    %s68 = sphi 0, %s70
    %s71 = sphi 0, %s68
    %s72 = sphi 0, %s71
    %s88 = sphi 0, %s72
    %s92 = sphi 0, %s92
    %s94 = sphi 0, %s92
    %s95 = sphi 0, %s94
    %s109 = sphi 0, %s95
    %s113 = sphi 0, %s113
    %s115 = sphi 0, %s113
    %s116 = sphi 0, %s115
    %s130 = sphi 0, %s116
    %s138 = sphi 0, %s140
    %s141 = sphi 0, %s138
    %s142 = sphi 0, %s141
    %s158 = sphi 0, %s142
    %s166 = sphi 0, %s168
    %s169 = sphi 0, %s166
    %s170 = sphi 0, %s169
    %s186 = sphi 0, %s170
  $region4: #{_lambda_.9} parent=0 // loop_header_branch
    %15 = sbr.rel (%p13) target = $region8
  $region5: #{_lambda_.9} parent=0 // loop_body
    %s17 = ssub.s32 %s12, 1
    %s18 = ssub.s32 %s12, 2
    %s25 = sadd.s32 1, %s20
    %p26 = scmp.ge.s32.totalorder %s25, 1
    %s27 = scalar_select %p26, 0, %s25
    %s28 = sadd.s32 1, %s19
    %s29 = scalar_select %p26, %s28, %s19
    %p30 = scmp.ge.s32.totalorder %s29, 2
    %s31 = scalar_select %p30, 0, %s29
    %s32 = ssub.s32 %s19, %s31
    %s33 = ssub.s32 %s20, %s27
    %s34 = sor.u32 %s32, %s33
    %p35 = scmp.eq.s32.totalorder %s34, 0
    %s37 = sadd.s32 %s36, 1
    %s38 = scalar_select %p35, %s36, %s37
    %p41 = pneg %p35
    %p42 = scmp.eq.s32.totalorder %s12, 1
    %p43 = por %p41, %p42
    %p44 = scmp.ne.s32.totalorder %s36, %s39
    %p45 = scmp.eq.s32.totalorder %s12, 0
    %p46 = por %p44, %p45
    %p47 = scmp.ne.s32.totalorder %s36, %s39
    %p48 = scmp.eq.s32.totalorder %s17, 1
    %p49 = por %p47, %p48
    %p50 = scmp.ne.s32.totalorder %s39, %s40
    %p51 = scmp.eq.s32.totalorder %s17, 0
    %p52 = por %p50, %p51
    %p53 = scmp.ne.s32.totalorder %s39, %s40
    %p54 = scmp.eq.s32.totalorder %s18, 1
    %p55 = por %p53, %p54
    %p57 = scmp.ne.s32.totalorder %s40, %s56
    %p58 = scmp.eq.s32.totalorder %s18, 0
    %p59 = por %p57, %p58
    %s60 = sadd.s32 %s20, 1
    %s61 = smul.u32 %s60, 3
    %s62 = sadd.s32 %s27, 1
    %s63 = smul.u32 %s62, 3
    %s64 = ssub.s32 %s19, %s31
    %s65 = ssub.s32 %s61, %s63
    %s66 = sor.u32 %s64, %s65
    %p67 = scmp.eq.s32.totalorder %s66, 0
    %s69 = sadd.s32 %s68, 1
    %s70 = scalar_select %p67, %s68, %s69
    %p73 = pneg %p67
    %p74 = scmp.eq.s32.totalorder %s12, 1
    %p75 = por %p73, %p74
    %p76 = scmp.ne.s32.totalorder %s68, %s71
    %p77 = scmp.eq.s32.totalorder %s12, 0
    %p78 = por %p76, %p77
    %p79 = scmp.ne.s32.totalorder %s68, %s71
    %p80 = scmp.eq.s32.totalorder %s17, 1
    %p81 = por %p79, %p80
    %p82 = scmp.ne.s32.totalorder %s71, %s72
    %p83 = scmp.eq.s32.totalorder %s17, 0
    %p84 = por %p82, %p83
    %p85 = scmp.ne.s32.totalorder %s71, %s72
    %p86 = scmp.eq.s32.totalorder %s18, 1
    %p87 = por %p85, %p86
    %p89 = scmp.ne.s32.totalorder %s72, %s88
    %p90 = scmp.eq.s32.totalorder %s18, 0
    %p91 = por %p89, %p90
    %s93 = sadd.s32 %s92, 1
    %p96 = scmp.eq.s32.totalorder %s12, 1
    %p97 = scmp.ne.s32.totalorder %s92, %s94
    %p98 = scmp.eq.s32.totalorder %s12, 0
    %p99 = por %p97, %p98
    %p100 = scmp.ne.s32.totalorder %s92, %s94
    %p101 = scmp.eq.s32.totalorder %s17, 1
    %p102 = por %p100, %p101
    %p103 = scmp.ne.s32.totalorder %s94, %s95
    %p104 = scmp.eq.s32.totalorder %s17, 0
    %p105 = por %p103, %p104
    %p106 = scmp.ne.s32.totalorder %s94, %s95
    %p107 = scmp.eq.s32.totalorder %s18, 1
    %p108 = por %p106, %p107
    %p110 = scmp.ne.s32.totalorder %s95, %s109
    %p111 = scmp.eq.s32.totalorder %s18, 0
    %p112 = por %p110, %p111
    %s114 = sadd.s32 %s113, 1
    %p117 = scmp.eq.s32.totalorder %s12, 1
    %p118 = scmp.ne.s32.totalorder %s113, %s115
    %p119 = scmp.eq.s32.totalorder %s12, 0
    %p120 = por %p118, %p119
    %p121 = scmp.ne.s32.totalorder %s113, %s115
    %p122 = scmp.eq.s32.totalorder %s17, 1
    %p123 = por %p121, %p122
    %p124 = scmp.ne.s32.totalorder %s115, %s116
    %p125 = scmp.eq.s32.totalorder %s17, 0
    %p126 = por %p124, %p125
    %p127 = scmp.ne.s32.totalorder %s115, %s116
    %p128 = scmp.eq.s32.totalorder %s18, 1
    %p129 = por %p127, %p128
    %p131 = scmp.ne.s32.totalorder %s116, %s130
    %p132 = scmp.eq.s32.totalorder %s18, 0
    %p133 = por %p131, %p132
    %s134 = ssub.s32 %s19, %s31
    %s135 = ssub.s32 %s20, %s27
    %s136 = sor.u32 %s134, %s135
    %p137 = scmp.eq.s32.totalorder %s136, 0
    %s139 = sadd.s32 %s138, 1
    %s140 = scalar_select %p137, %s138, %s139
    %p143 = pneg %p137
    %p144 = scmp.eq.s32.totalorder %s12, 1
    %p145 = por %p143, %p144
    %p146 = scmp.ne.s32.totalorder %s138, %s141
    %p147 = scmp.eq.s32.totalorder %s12, 0
    %p148 = por %p146, %p147
    %p149 = scmp.ne.s32.totalorder %s138, %s141
    %p150 = scmp.eq.s32.totalorder %s17, 1
    %p151 = por %p149, %p150
    %p152 = scmp.ne.s32.totalorder %s141, %s142
    %p153 = scmp.eq.s32.totalorder %s17, 0
    %p154 = por %p152, %p153
    %p155 = scmp.ne.s32.totalorder %s141, %s142
    %p156 = scmp.eq.s32.totalorder %s18, 1
    %p157 = por %p155, %p156
    %p159 = scmp.ne.s32.totalorder %s142, %s158
    %p160 = scmp.eq.s32.totalorder %s18, 0
    %p161 = por %p159, %p160
    %s162 = ssub.s32 %s19, %s31
    %s163 = ssub.s32 %s20, %s27
    %s164 = sor.u32 %s162, %s163
    %p165 = scmp.eq.s32.totalorder %s164, 0
    %s167 = sadd.s32 %s166, 1
    %s168 = scalar_select %p165, %s166, %s167
    %p171 = pneg %p165
    %p172 = scmp.eq.s32.totalorder %s12, 1
    %p173 = por %p171, %p172
    %p174 = scmp.ne.s32.totalorder %s166, %s169
    %p175 = scmp.eq.s32.totalorder %s12, 0
    %p176 = por %p174, %p175
    %p177 = scmp.ne.s32.totalorder %s166, %s169
    %p178 = scmp.eq.s32.totalorder %s17, 1
    %p179 = por %p177, %p178
    %p180 = scmp.ne.s32.totalorder %s169, %s170
    %p181 = scmp.eq.s32.totalorder %s17, 0
    %p182 = por %p180, %p181
    %p183 = scmp.ne.s32.totalorder %s169, %s170
    %p184 = scmp.eq.s32.totalorder %s18, 1
    %p185 = por %p183, %p184
    %p187 = scmp.ne.s32.totalorder %s170, %s186
    %p188 = scmp.eq.s32.totalorder %s18, 0
    %p189 = por %p187, %p188
    %p190 = scmp.le.s32.totalorder 1, %s12
    %p191 = scmp.lt.s32.totalorder %s12, 3
    %p192 = pnand %p190, %p191
    %p193 = pneg %p192
    // Predicated region
    $region9: #{_lambda_.9} parent=5 // pred_check
      _
    $region10: #{_lambda_.9} parent=5 // pred_check_branch
      %195 = sbr.rel (%p192) target = $region12
    $region11: #{_lambda_.9} parent=5 // pred_region
      %s196 = ssub.s32 %s12, 1
      // Predicated region
      $region13: #{_lambda_.9} parent=11 // pred_check
        %p197 = pneg %p105
      $region14: #{_lambda_.9} parent=11 // pred_check_branch
        %199 = sbr.rel (%p197) target = $region16
      $region15: #{_lambda_.9} parent=11 // pred_region
        _
      $region16: #{_lambda_.9} parent=11 // pred_fallthru
        _
      // Predicated region
      $region17: #{_lambda_.9} parent=11 // pred_check
        %p200 = pneg %p126
      $region18: #{_lambda_.9} parent=11 // pred_check_branch
        %202 = sbr.rel (%p200) target = $region20
      $region19: #{_lambda_.9} parent=11 // pred_region
        _
      $region20: #{_lambda_.9} parent=11 // pred_fallthru
        _
    $region12: #{_lambda_.9} parent=5 // pred_fallthru
      _
    %p203 = scmp.lt.s32.totalorder %s12, 2
    // Predicated region
    $region21: #{_lambda_.9} parent=5 // pred_check
      %p204 = pneg %p203
    $region22: #{_lambda_.9} parent=5 // pred_check_branch
      %206 = sbr.rel (%p204) target = $region24
    $region23: #{_lambda_.9} parent=5 // pred_region
      // Predicated region
      $region25: #{_lambda_.9} parent=23 // pred_check
        %p207 = pneg %p46
      $region26: #{_lambda_.9} parent=23 // pred_check_branch
        %209 = sbr.rel (%p207) target = $region28
      $region27: #{_lambda_.9} parent=23 // pred_region
        %s210 = smul.u32 6, %s20
        %s211 = ssub.s32 8, %s210
        %p212 = scmp.lt.s32.totalorder %s211, 6
        %s213 = scalar_select %p212, %s211, 6
        %s214 = smul.u32 128, %s213
        %s215 = smul.u32 %s214, 2
        %p216 = scmp.lt.s32.totalorder %s19, 1
        %s217 = scalar_select %p216, %s19, 1
        %p218 = scmp.lt.s32.totalorder %s210, 7
        %s219 = scalar_select %p218, %s210, 7
        %s220 = smul.addr %s219, 2
        %s221 = smul.addr %s217, 16
        %s222 = sadd.s32 %s220, %s221
        %s223 = smul.addr %s222, 8
        %s224 = scalar_lea.vmem %s0, %s223
        %s225 = smul.u32 6, %s20
        %s226 = ssub.s32 8, %s225
        %p227 = scmp.lt.s32.totalorder %s226, 6
        %s228 = scalar_select %p227, %s226, 6
        %s229 = smul.u32 128, %s228
        %s230 = smul.u32 %s229, 2
      $region28: #{_lambda_.9} parent=23 // pred_fallthru
        _
      // Predicated region
      $region29: #{_lambda_.9} parent=23 // pred_check
        %p231 = pneg %p78
      $region30: #{_lambda_.9} parent=23 // pred_check_branch
        %233 = sbr.rel (%p231) target = $region32
      $region31: #{_lambda_.9} parent=23 // pred_region
        %s234 = sadd.s32 %s20, 1
        %s235 = smul.u32 %s234, 3
        %s236 = smul.u32 2, %s235
        %p237 = scmp.lt.s32.totalorder %s19, 1
        %s238 = scalar_select %p237, %s19, 1
        %p239 = scmp.lt.s32.totalorder %s236, 7
        %s240 = scalar_select %p239, %s236, 7
        %s241 = smul.addr %s240, 2
        %s242 = smul.addr %s238, 16
        %s243 = sadd.s32 %s241, %s242
        %s244 = smul.addr %s243, 8
        %s245 = scalar_lea.vmem %s1, %s244
        %s246 = sadd.s32 %s20, 1
        %s247 = smul.u32 %s246, 3
        %s248 = smul.u32 2, %s247
      $region32: #{_lambda_.9} parent=23 // pred_fallthru
        _
    $region24: #{_lambda_.9} parent=5 // pred_fallthru
      _
    %p249 = scmp.le.s32.totalorder 1, %s12
    %p250 = scmp.lt.s32.totalorder %s12, 3
    %p251 = pnand %p249, %p250
    %p252 = pneg %p251
    // Predicated region
    $region33: #{_lambda_.9} parent=5 // pred_check
      _
    $region34: #{_lambda_.9} parent=5 // pred_check_branch
      %254 = sbr.rel (%p251) target = $region36
    $region35: #{_lambda_.9} parent=5 // pred_region
      %s255 = ssub.s32 %s12, 1
      %s256 = smul.u32 6, %s22
      %s257 = ssub.s32 8, %s256
      %p258 = scmp.lt.s32.totalorder %s257, 6
      %s259 = scalar_select %p258, %s257, 6
      %s260 = smul.u32 128, %s259
      %s261 = smul.u32 %s260, 2
      %p262 = scmp.lt.s32.totalorder %s21, 1
      %s263 = scalar_select %p262, %s21, 1
      %p264 = scmp.lt.s32.totalorder %s256, 7
      %s265 = scalar_select %p264, %s256, 7
      %s266 = smul.addr %s265, 2
      %s267 = smul.addr %s263, 16
      %s268 = sadd.s32 %s266, %s267
      %s269 = smul.addr %s268, 8
      %s270 = scalar_lea.vmem %s0, %s269
      %p271 = pneg %p52
      %p272 = pneg %p49
      %s273 = sadd.s32 %s22, 1
      %s274 = smul.u32 %s273, 3
      %s275 = smul.u32 2, %s274
      %p276 = scmp.lt.s32.totalorder %s21, 1
      %s277 = scalar_select %p276, %s21, 1
      %p278 = scmp.lt.s32.totalorder %s275, 7
      %s279 = scalar_select %p278, %s275, 7
      %s280 = smul.addr %s279, 2
      %s281 = smul.addr %s277, 16
      %s282 = sadd.s32 %s280, %s281
      %s283 = smul.addr %s282, 8
      %s284 = scalar_lea.vmem %s1, %s283
      %p285 = pneg %p84
      %p286 = pneg %p81
      %p287 = pneg %p105
      %p288 = pneg %p102
      %p289 = pneg %p126
      %p290 = pneg %p123
      %p291 = pneg %p154
      %p292 = pneg %p151
      %s293 = smul.u32 6, %s22
      %p294 = scmp.lt.s32.totalorder %s21, 1
      %s295 = scalar_select %p294, %s21, 1
      %p296 = scmp.lt.s32.totalorder %s293, 5
      %s297 = scalar_select %p296, %s293, 5
      %s298 = smul.addr %s295, 6
      %s299 = sadd.s32 %s297, %s298
      %s300 = smul.addr %s299, 8
      %s301 = scalar_lea.vmem %s4, %s300
      %p302 = pneg %p182
      %p303 = pneg %p179
      %s304 = smul.u32 6, %s22
      %p305 = scmp.lt.s32.totalorder %s21, 1
      %s306 = scalar_select %p305, %s21, 1
      %p307 = scmp.lt.s32.totalorder %s304, 5
      %s308 = scalar_select %p307, %s304, 5
      %s309 = smul.addr %s306, 6
      %s310 = sadd.s32 %s308, %s309
      %s311 = smul.addr %s310, 8
      %s312 = scalar_lea.vmem %s5, %s311
      %s313 = smul.u32 6, %s22
      %s314 = ssub.s32 8, %s313
      %p315 = scmp.lt.s32.totalorder %s314, 6
      %s316 = scalar_select %p315, %s314, 6
      %s317 = smul.u32 128, %s316
      %s318 = smul.u32 %s317, 2
      %p319 = scmp.lt.s32.totalorder %s21, 1
      %s320 = scalar_select %p319, %s21, 1
      %p321 = scmp.lt.s32.totalorder %s313, 7
      %s322 = scalar_select %p321, %s313, 7
      %s323 = smul.addr %s322, 2
      %s324 = smul.addr %s320, 16
      %s325 = sadd.s32 %s323, %s324
      %s326 = smul.addr %s325, 8
      %s327 = scalar_lea.vmem %s0, %s326
      %s328 = smul.u32 6, %s22
      %s329 = ssub.s32 8, %s328
      %p330 = scmp.lt.s32.totalorder %s329, 6
      %s331 = scalar_select %p330, %s329, 6
      %s332 = smul.u32 128, %s331
      %s333 = smul.u32 %s332, 2
      %s334 = sadd.s32 %s22, 1
      %s335 = smul.u32 %s334, 3
      %s336 = smul.u32 2, %s335
      %p337 = scmp.lt.s32.totalorder %s21, 1
      %s338 = scalar_select %p337, %s21, 1
      %p339 = scmp.lt.s32.totalorder %s336, 7
      %s340 = scalar_select %p339, %s336, 7
      %s341 = smul.addr %s340, 2
      %s342 = smul.addr %s338, 16
      %s343 = sadd.s32 %s341, %s342
      %s344 = smul.addr %s343, 8
      %s345 = scalar_lea.vmem %s1, %s344
      %s346 = sadd.s32 %s22, 1
      %s347 = smul.u32 %s346, 3
      %s348 = smul.u32 2, %s347
      %s349 = smul.u32 6, %s22
      %p350 = scmp.lt.s32.totalorder %s21, 1
      %s351 = scalar_select %p350, %s21, 1
      %p352 = scmp.lt.s32.totalorder %s349, 5
      %s353 = scalar_select %p352, %s349, 5
      %s354 = smul.addr %s351, 6
      %s355 = sadd.s32 %s353, %s354
      %s356 = smul.addr %s355, 8
      %s357 = scalar_lea.vmem %s4, %s356
      %s358 = smul.u32 6, %s22
      %s359 = smul.u32 6, %s22
      %p360 = scmp.lt.s32.totalorder %s21, 1
      %s361 = scalar_select %p360, %s21, 1
      %p362 = scmp.lt.s32.totalorder %s359, 5
      %s363 = scalar_select %p362, %s359, 5
      %s364 = smul.addr %s361, 6
      %s365 = sadd.s32 %s363, %s364
      %s366 = smul.addr %s365, 8
      %s367 = scalar_lea.vmem %s5, %s366
      %s368 = smul.u32 6, %s22
      %v369 = vld [vmem:[%s327] sm:$0xff]
      %v370 = vld [vmem:[%s327 + $0x8] sm:$0xff]
      %v371 = vld [vmem:[%s327 + $0x10] sm:$0xff]
      %v372 = vld [vmem:[%s327 + $0x18] sm:$0xff]
      %v373 = vld [vmem:[%s327 + $0x20] sm:$0xff]
      %v374 = vld [vmem:[%s327 + $0x28] sm:$0xff]
      %v375 = vld [vmem:[%s327 + $0x30] sm:$0xff]
      %v376 = vld [vmem:[%s327 + $0x38] sm:$0xff]
      %v377 = vld [vmem:[%s327 + $0x40] sm:$0xff]
      %v378 = vld [vmem:[%s327 + $0x48] sm:$0xff]
      %v379 = vld [vmem:[%s327 + $0x50] sm:$0xff]
      %v380 = vld [vmem:[%s327 + $0x58] sm:$0xff]
      %381 = vst [vmem:[#allocation2] sm:$0xff] %v369
      %382 = vst [vmem:[#allocation2 + $0x8] sm:$0xff] %v370
      %383 = vst [vmem:[#allocation2 + $0x10] sm:$0xff] %v371
      %384 = vst [vmem:[#allocation2 + $0x18] sm:$0xff] %v372
      %385 = vst [vmem:[#allocation2 + $0x20] sm:$0xff] %v373
      %386 = vst [vmem:[#allocation2 + $0x28] sm:$0xff] %v374
      %387 = vst [vmem:[#allocation2 + $0x30] sm:$0xff] %v375
      %388 = vst [vmem:[#allocation2 + $0x38] sm:$0xff] %v376
      %389 = vst [vmem:[#allocation2 + $0x40] sm:$0xff] %v377
      %390 = vst [vmem:[#allocation2 + $0x48] sm:$0xff] %v378
      %391 = vst [vmem:[#allocation2 + $0x50] sm:$0xff] %v379
      %392 = vst [vmem:[#allocation2 + $0x58] sm:$0xff] %v380
      %v393 = vld [vmem:[%s345] sm:$0xff]
      %v394 = vld [vmem:[%s345 + $0x8] sm:$0xff]
      %v395 = vld [vmem:[%s345 + $0x10] sm:$0xff]
      %v396 = vld [vmem:[%s345 + $0x18] sm:$0xff]
      %397 = vst [vmem:[#allocation2 + $0x60] sm:$0xff] %v393
      %398 = vst [vmem:[#allocation2 + $0x68] sm:$0xff] %v394
      %399 = vst [vmem:[#allocation2 + $0x70] sm:$0xff] %v395
      %400 = vst [vmem:[#allocation2 + $0x78] sm:$0xff] %v396
      %v401 = vld [vmem:[%s2] sm:$0xff]
      %v402 = vld [vmem:[%s2 + $0x8] sm:$0xff]
      %v403 = vld [vmem:[%s2 + $0x10] sm:$0xff]
      %v404 = vld [vmem:[%s2 + $0x18] sm:$0xff]
      %v405 = vld [vmem:[%s2 + $0x20] sm:$0xff]
      %v406 = vld [vmem:[%s2 + $0x28] sm:$0xff]
      %v407 = vld [vmem:[%s2 + $0x30] sm:$0xff]
      %v408 = vld [vmem:[%s2 + $0x38] sm:$0xff]
      %v409 = vld [vmem:[%s2 + $0x40] sm:$0xff]
      %v410 = vld [vmem:[%s2 + $0x48] sm:$0xff]
      %v411 = vld [vmem:[%s2 + $0x50] sm:$0xff]
      %v412 = vld [vmem:[%s2 + $0x58] sm:$0xff]
      %v413 = vld [vmem:[%s2 + $0x60] sm:$0xff]
      %v414 = vld [vmem:[%s2 + $0x68] sm:$0xff]
      %v415 = vld [vmem:[%s2 + $0x70] sm:$0xff]
      %v416 = vld [vmem:[%s2 + $0x78] sm:$0xff]
      %v417 = vld [vmem:[%s2 + $0x80] sm:$0xff]
      %v418 = vld [vmem:[%s2 + $0x88] sm:$0xff]
      %v419 = vld [vmem:[%s2 + $0x90] sm:$0xff]
      %v420 = vld [vmem:[%s2 + $0x98] sm:$0xff]
      %v421 = vld [vmem:[%s2 + $0xa0] sm:$0xff]
      %v422 = vld [vmem:[%s2 + $0xa8] sm:$0xff]
      %v423 = vld [vmem:[%s2 + $0xb0] sm:$0xff]
      %v424 = vld [vmem:[%s2 + $0xb8] sm:$0xff]
      %v425 = vld [vmem:[%s2 + $0xc0] sm:$0xff]
      %v426 = vld [vmem:[%s2 + $0xc8] sm:$0xff]
      %v427 = vld [vmem:[%s2 + $0xd0] sm:$0xff]
      %v428 = vld [vmem:[%s2 + $0xd8] sm:$0xff]
      %v429 = vld [vmem:[%s2 + $0xe0] sm:$0xff]
      %v430 = vld [vmem:[%s2 + $0xe8] sm:$0xff]
      %v431 = vld [vmem:[%s2 + $0xf0] sm:$0xff]
      %v432 = vld [vmem:[%s2 + $0xf8] sm:$0xff]
      %v433 = vld [vmem:[#allocation2] sm:$0xfe]
      %v434 = vld [vmem:[#allocation2 + $0x8] sm:$0xfe]
      %v435 = vld [vmem:[#allocation2 + $0x10] sm:$0xff]
      %v436 = vld [vmem:[#allocation2 + $0x18] sm:$0xff]
      %v437 = vld [vmem:[#allocation2 + $0x20] sm:$0xff]
      %v438 = vld [vmem:[#allocation2 + $0x28] sm:$0xff]
      %v439 = vld [vmem:[#allocation2 + $0x30] sm:$0xff]
      %v440 = vld [vmem:[#allocation2 + $0x38] sm:$0xff]
      %v441 = vld [vmem:[#allocation2 + $0x40] sm:$0xff]
      %v442 = vld [vmem:[#allocation2 + $0x48] sm:$0xff]
      %v443 = vld [vmem:[#allocation2 + $0x50] sm:$0xff]
      %v444 = vld [vmem:[#allocation2 + $0x58] sm:$0xff]
      %v445 = vld [vmem:[#allocation2 + $0x60] sm:$0x1]
      %v446 = vld [vmem:[#allocation2 + $0x68] sm:$0x1]
      %s447 = scalar_lea.vmem %s2, 256
      %v448 = vld [vmem:[%s447] sm:$0xff]
      %v449 = vld [vmem:[%s447 + $0x8] sm:$0xff]
      %v450 = vld [vmem:[%s447 + $0x10] sm:$0xff]
      %v451 = vld [vmem:[%s447 + $0x18] sm:$0xff]
      %v452 = vld [vmem:[%s447 + $0x20] sm:$0xff]
      %v453 = vld [vmem:[%s447 + $0x28] sm:$0xff]
      %v454 = vld [vmem:[%s447 + $0x30] sm:$0xff]
      %v455 = vld [vmem:[%s447 + $0x38] sm:$0xff]
      %v456 = vld [vmem:[%s447 + $0x40] sm:$0xff]
      %v457 = vld [vmem:[%s447 + $0x48] sm:$0xff]
      %v458 = vld [vmem:[%s447 + $0x50] sm:$0xff]
      %v459 = vld [vmem:[%s447 + $0x58] sm:$0xff]
      %v460 = vld [vmem:[%s447 + $0x60] sm:$0xff]
      %v461 = vld [vmem:[%s447 + $0x68] sm:$0xff]
      %v462 = vld [vmem:[%s447 + $0x70] sm:$0xff]
      %v463 = vld [vmem:[%s447 + $0x78] sm:$0xff]
      %v464 = vld [vmem:[%s447 + $0x80] sm:$0xff]
      %v465 = vld [vmem:[%s447 + $0x88] sm:$0xff]
      %v466 = vld [vmem:[%s447 + $0x90] sm:$0xff]
      %v467 = vld [vmem:[%s447 + $0x98] sm:$0xff]
      %v468 = vld [vmem:[%s447 + $0xa0] sm:$0xff]
      %v469 = vld [vmem:[%s447 + $0xa8] sm:$0xff]
      %v470 = vld [vmem:[%s447 + $0xb0] sm:$0xff]
      %v471 = vld [vmem:[%s447 + $0xb8] sm:$0xff]
      %v472 = vld [vmem:[%s447 + $0xc0] sm:$0xff]
      %v473 = vld [vmem:[%s447 + $0xc8] sm:$0xff]
      %v474 = vld [vmem:[%s447 + $0xd0] sm:$0xff]
      %v475 = vld [vmem:[%s447 + $0xd8] sm:$0xff]
      %v476 = vld [vmem:[%s447 + $0xe0] sm:$0xff]
      %v477 = vld [vmem:[%s447 + $0xe8] sm:$0xff]
      %v478 = vld [vmem:[%s447 + $0xf0] sm:$0xff]
      %v479 = vld [vmem:[%s447 + $0xf8] sm:$0xff]
      %vm494 = vcmask 1046528
      %v495 = vrot.slane %v433, 1
      %v496 = vrot.slane %v435, 1
      %v497 = vsel %vm494, %v495, %v496
      %v498 = vrot.slane %v434, 1
      %v499 = vrot.slane %v436, 1
      %v500 = vsel %vm494, %v498, %v499
      %v501 = vrot.slane %v437, 1
      %v502 = vsel %vm494, %v496, %v501
      %v503 = vrot.slane %v438, 1
      %v504 = vsel %vm494, %v499, %v503
      %v505 = vrot.slane %v439, 1
      %v506 = vsel %vm494, %v501, %v505
      %v507 = vrot.slane %v440, 1
      %v508 = vsel %vm494, %v503, %v507
      %v509 = vrot.slane %v441, 1
      %v510 = vsel %vm494, %v505, %v509
      %v511 = vrot.slane %v442, 1
      %v512 = vsel %vm494, %v507, %v511
      %v513 = vrot.slane %v443, 1
      %v514 = vsel %vm494, %v509, %v513
      %v515 = vrot.slane %v444, 1
      %v516 = vsel %vm494, %v511, %v515
      %v517 = vrot.slane %v445, 1
      %v518 = vsel %vm494, %v513, %v517
      %v519 = vrot.slane %v446, 1
      %v520 = vsel %vm494, %v515, %v519
      %533 = vmatprep.subr.mxu0 0.0
      %534 = vmatpush1.msra.mxu0 %v448
      %535 = vmatprep.subr.mxu0 0.0
      %536 = vmatpush1.msra.mxu0 %v449
      %537 = vmatprep.subr.mxu0 0.0
      %538 = vmatpush1.msra.mxu0 %v450
      %539 = vmatprep.subr.mxu0 0.0
      %540 = vmatpush1.msra.mxu0 %v451
      %541 = vmatprep.subr.mxu0 0.0
      %542 = vmatpush1.msra.mxu0 %v452
      %543 = vmatprep.subr.mxu0 0.0
      %544 = vmatpush1.msra.mxu0 %v453
      %545 = vmatprep.subr.mxu0 0.0
      %546 = vmatpush1.msra.mxu0 %v454
      %547 = vmatprep.subr.mxu0 0.0
      %548 = vmatpush1.msra.mxu0 %v455
      %549 = vmatprep.subr.mxu0 0.0
      %550 = vmatpush1.msra.mxu0 %v456
      %551 = vmatprep.subr.mxu0 0.0
      %552 = vmatpush1.msra.mxu0 %v457
      %553 = vmatprep.subr.mxu0 0.0
      %554 = vmatpush1.msra.mxu0 %v458
      %555 = vmatprep.subr.mxu0 0.0
      %556 = vmatpush1.msra.mxu0 %v459
      %557 = vmatprep.subr.mxu0 0.0
      %558 = vmatpush1.msra.mxu0 %v460
      %559 = vmatprep.subr.mxu0 0.0
      %560 = vmatpush1.msra.mxu0 %v461
      %561 = vmatprep.subr.mxu0 0.0
      %562 = vmatpush1.msra.mxu0 %v462
      %563 = vmatprep.subr.mxu0 0.0
      %564 = vmatpush1.msra.mxu0 %v463
      %565 = vmatprep.subr.mxu0 0.0
      %566 = vmatpush1.msra.mxu0 %v464
      %567 = vmatprep.subr.mxu0 0.0
      %568 = vmatpush1.msra.mxu0 %v465
      %569 = vmatprep.subr.mxu0 0.0
      %570 = vmatpush1.msra.mxu0 %v466
      %571 = vmatprep.subr.mxu0 0.0
      %572 = vmatpush1.msra.mxu0 %v467
      %573 = vmatprep.subr.mxu0 0.0
      %574 = vmatpush1.msra.mxu0 %v468
      %575 = vmatprep.subr.mxu0 0.0
      %576 = vmatpush1.msra.mxu0 %v469
      %577 = vmatprep.subr.mxu0 0.0
      %578 = vmatpush1.msra.mxu0 %v470
      %579 = vmatprep.subr.mxu0 0.0
      %580 = vmatpush1.msra.mxu0 %v471
      %581 = vmatprep.subr.mxu0 0.0
      %582 = vmatpush1.msra.mxu0 %v472
      %583 = vmatprep.subr.mxu0 0.0
      %584 = vmatpush1.msra.mxu0 %v473
      %585 = vmatprep.subr.mxu0 0.0
      %586 = vmatpush1.msra.mxu0 %v474
      %587 = vmatprep.subr.mxu0 0.0
      %588 = vmatpush1.msra.mxu0 %v475
      %589 = vmatprep.subr.mxu0 0.0
      %590 = vmatpush1.msra.mxu0 %v476
      %591 = vmatprep.subr.mxu0 0.0
      %592 = vmatpush1.msra.mxu0 %v477
      %593 = vmatprep.subr.mxu0 0.0
      %594 = vmatpush1.msra.mxu0 %v478
      %595 = vmatprep.subr.mxu0 0.0
      %596 = vmatpush1.msra.mxu0 %v479
      %597 = vmatprep.mubr.f32.mxu0 %v500
      %598 = vmatmul.mubr.f32.gmra.mrb[0].mxu0 %v497
      %v599 = vpop.f32.mrb[0].mxu0
      %v600 = vadd.f32 0.0, %v599
      %v601 = vpop.f32.mrb[0].mxu0
      %602 = vmatprep.mubr.f32.mxu0 %v504
      %603 = vmatmul.mubr.f32.gmra.mrb[0].mxu0 %v502
      %v604 = vpop.f32.mrb[0].mxu0
      %v605 = vadd.f32 0.0, %v604
      %v606 = vpop.f32.mrb[0].mxu0
      %607 = vmatprep.mubr.f32.mxu0 %v508
      %608 = vmatmul.mubr.f32.gmra.mrb[0].mxu0 %v506
      %v609 = vpop.f32.mrb[0].mxu0
      %v610 = vadd.f32 0.0, %v609
      %v611 = vpop.f32.mrb[0].mxu0
      %612 = vmatprep.mubr.f32.mxu0 %v512
      %613 = vmatmul.mubr.f32.gmra.mrb[0].mxu0 %v510
      %v614 = vpop.f32.mrb[0].mxu0
      %v615 = vadd.f32 0.0, %v614
      %v616 = vpop.f32.mrb[0].mxu0
      %617 = vmatprep.mubr.f32.mxu0 %v516
      %618 = vmatmul.mubr.f32.gmra.mrb[0].mxu0 %v514
      %v619 = vpop.f32.mrb[0].mxu0
      %v620 = vadd.f32 0.0, %v619
      %v621 = vpop.f32.mrb[0].mxu0
      %622 = vmatprep.mubr.f32.mxu0 %v520
      %623 = vmatmul.mubr.f32.gmra.mrb[0].mxu0 %v518
      %v624 = vpop.f32.mrb[0].mxu0
      %v625 = vadd.f32 0.0, %v624
      %v626 = vpop.f32.mrb[0].mxu0
      %627 = vdwg.mxu0
      %628 = vmatprep.subr.mxu0 0.0
      %629 = vmatpush1.msra.mxu0 %v401
      %630 = vmatprep.subr.mxu0 0.0
      %631 = vmatpush1.msra.mxu0 %v402
      %632 = vmatprep.subr.mxu0 0.0
      %633 = vmatpush1.msra.mxu0 %v403
      %634 = vmatprep.subr.mxu0 0.0
      %635 = vmatpush1.msra.mxu0 %v404
      %636 = vmatprep.subr.mxu0 0.0
      %637 = vmatpush1.msra.mxu0 %v405
      %638 = vmatprep.subr.mxu0 0.0
      %639 = vmatpush1.msra.mxu0 %v406
      %640 = vmatprep.subr.mxu0 0.0
      %641 = vmatpush1.msra.mxu0 %v407
      %642 = vmatprep.subr.mxu0 0.0
      %643 = vmatpush1.msra.mxu0 %v408
      %644 = vmatprep.subr.mxu0 0.0
      %645 = vmatpush1.msra.mxu0 %v409
      %646 = vmatprep.subr.mxu0 0.0
      %647 = vmatpush1.msra.mxu0 %v410
      %648 = vmatprep.subr.mxu0 0.0
      %649 = vmatpush1.msra.mxu0 %v411
      %650 = vmatprep.subr.mxu0 0.0
      %651 = vmatpush1.msra.mxu0 %v412
      %652 = vmatprep.subr.mxu0 0.0
      %653 = vmatpush1.msra.mxu0 %v413
      %654 = vmatprep.subr.mxu0 0.0
      %655 = vmatpush1.msra.mxu0 %v414
      %656 = vmatprep.subr.mxu0 0.0
      %657 = vmatpush1.msra.mxu0 %v415
      %658 = vmatprep.subr.mxu0 0.0
      %659 = vmatpush1.msra.mxu0 %v416
      %660 = vmatprep.subr.mxu0 0.0
      %661 = vmatpush1.msra.mxu0 %v417
      %662 = vmatprep.subr.mxu0 0.0
      %663 = vmatpush1.msra.mxu0 %v418
      %664 = vmatprep.subr.mxu0 0.0
      %665 = vmatpush1.msra.mxu0 %v419
      %666 = vmatprep.subr.mxu0 0.0
      %667 = vmatpush1.msra.mxu0 %v420
      %668 = vmatprep.subr.mxu0 0.0
      %669 = vmatpush1.msra.mxu0 %v421
      %670 = vmatprep.subr.mxu0 0.0
      %671 = vmatpush1.msra.mxu0 %v422
      %672 = vmatprep.subr.mxu0 0.0
      %673 = vmatpush1.msra.mxu0 %v423
      %674 = vmatprep.subr.mxu0 0.0
      %675 = vmatpush1.msra.mxu0 %v424
      %676 = vmatprep.subr.mxu0 0.0
      %677 = vmatpush1.msra.mxu0 %v425
      %678 = vmatprep.subr.mxu0 0.0
      %679 = vmatpush1.msra.mxu0 %v426
      %680 = vmatprep.subr.mxu0 0.0
      %681 = vmatpush1.msra.mxu0 %v427
      %682 = vmatprep.subr.mxu0 0.0
      %683 = vmatpush1.msra.mxu0 %v428
      %684 = vmatprep.subr.mxu0 0.0
      %685 = vmatpush1.msra.mxu0 %v429
      %686 = vmatprep.subr.mxu0 0.0
      %687 = vmatpush1.msra.mxu0 %v430
      %688 = vmatprep.subr.mxu0 0.0
      %689 = vmatpush1.msra.mxu0 %v431
      %690 = vmatprep.subr.mxu0 0.0
      %691 = vmatpush1.msra.mxu0 %v432
      %692 = vmatprep.mubr.f32.mxu0 %v370
      %693 = vmatmul.mubr.f32.gmra.mrb[0].mxu0 %v369
      %v694 = vpop.f32.mrb[0].mxu0
      %v695 = vadd.f32 %v600, %v694
      %v696 = vpop.f32.mrb[0].mxu0
      %697 = vmatprep.mubr.f32.mxu0 %v372
      %698 = vmatmul.mubr.f32.gmra.mrb[0].mxu0 %v371
      %v699 = vpop.f32.mrb[0].mxu0
      %v700 = vadd.f32 %v605, %v699
      %v701 = vpop.f32.mrb[0].mxu0
      %702 = vmatprep.mubr.f32.mxu0 %v374
      %703 = vmatmul.mubr.f32.gmra.mrb[0].mxu0 %v373
      %v704 = vpop.f32.mrb[0].mxu0
      %v705 = vadd.f32 %v610, %v704
      %v706 = vpop.f32.mrb[0].mxu0
      %707 = vmatprep.mubr.f32.mxu0 %v376
      %708 = vmatmul.mubr.f32.gmra.mrb[0].mxu0 %v375
      %v709 = vpop.f32.mrb[0].mxu0
      %v710 = vadd.f32 %v615, %v709
      %v711 = vpop.f32.mrb[0].mxu0
      %712 = vmatprep.mubr.f32.mxu0 %v378
      %713 = vmatmul.mubr.f32.gmra.mrb[0].mxu0 %v377
      %v714 = vpop.f32.mrb[0].mxu0
      %v715 = vadd.f32 %v620, %v714
      %v716 = vpop.f32.mrb[0].mxu0
      %717 = vmatprep.mubr.f32.mxu0 %v380
      %718 = vmatmul.mubr.f32.gmra.mrb[0].mxu0 %v379
      %v719 = vpop.f32.mrb[0].mxu0
      %v720 = vadd.f32 %v625, %v719
      %v721 = vpop.f32.mrb[0].mxu0
      %722 = vdwg.mxu0
      %v723 = vld [vmem:[%s3] sm:$0x1]
      %v725 = vlaneseq
      %v726 = vshrl.u32 %v725, 7
      %v727 = vsub.s32 0, %v726
      %v728 = vrot.slane %v723, %v727
      %v730 = vadd.f32 %v695, %v728
      %v731 = vadd.f32 %v700, %v728
      %v732 = vadd.f32 %v705, %v728
      %v733 = vadd.f32 %v710, %v728
      %v734 = vadd.f32 %v715, %v728
      %v735 = vadd.f32 %v720, %v728
      %736 = vst [vmem:[%s357] sm:$0xff] %v730
      %737 = vst [vmem:[%s357 + $0x8] sm:$0xff] %v731
      %738 = vst [vmem:[%s357 + $0x10] sm:$0xff] %v732
      %739 = vst [vmem:[%s357 + $0x18] sm:$0xff] %v733
      %740 = vst [vmem:[%s357 + $0x20] sm:$0xff] %v734
      %741 = vst [vmem:[%s357 + $0x28] sm:$0xff] %v735
      %vm742 = vcmp.gt.f32.partialorder %v730, 0.0
      %vm743 = vcmp.gt.f32.partialorder %v731, 0.0
      %vm744 = vcmp.gt.f32.partialorder %v732, 0.0
      %vm745 = vcmp.gt.f32.partialorder %v733, 0.0
      %vm746 = vcmp.gt.f32.partialorder %v734, 0.0
      %vm747 = vcmp.gt.f32.partialorder %v735, 0.0
      %v748 = vmul.f32 %v730, 0.1
      %v749 = vmul.f32 %v731, 0.1
      %v750 = vmul.f32 %v732, 0.1
      %v751 = vmul.f32 %v733, 0.1
      %v752 = vmul.f32 %v734, 0.1
      %v753 = vmul.f32 %v735, 0.1
      %v754 = vsel %vm742, %v730, %v748
      %v755 = vsel %vm743, %v731, %v749
      %v756 = vsel %vm744, %v732, %v750
      %v757 = vsel %vm745, %v733, %v751
      %v758 = vsel %vm746, %v734, %v752
      %v759 = vsel %vm747, %v735, %v753
      %760 = vst [vmem:[%s367] sm:$0xff] %v754
      %761 = vst [vmem:[%s367 + $0x8] sm:$0xff] %v755
      %762 = vst [vmem:[%s367 + $0x10] sm:$0xff] %v756
      %763 = vst [vmem:[%s367 + $0x18] sm:$0xff] %v757
      %764 = vst [vmem:[%s367 + $0x20] sm:$0xff] %v758
      %765 = vst [vmem:[%s367 + $0x28] sm:$0xff] %v759
      %s766 = smul.u32 6, %s22
      %p767 = scmp.lt.s32.totalorder %s21, 1
      %s768 = scalar_select %p767, %s21, 1
      %p769 = scmp.lt.s32.totalorder %s766, 5
      %s770 = scalar_select %p769, %s766, 5
      %s771 = smul.addr %s768, 6
      %s772 = sadd.s32 %s770, %s771
      %s773 = smul.addr %s772, 8
      %s774 = scalar_lea.vmem %s4, %s773
      %s775 = smul.u32 6, %s22
      %p776 = scmp.lt.s32.totalorder %s21, 1
      %s777 = scalar_select %p776, %s21, 1
      %p778 = scmp.lt.s32.totalorder %s775, 5
      %s779 = scalar_select %p778, %s775, 5
      %s780 = smul.addr %s777, 6
      %s781 = sadd.s32 %s779, %s780
      %s782 = smul.addr %s781, 8
      %s783 = scalar_lea.vmem %s5, %s782
      // Predicated region
      $region37: #{_lambda_.9} parent=35 // pred_check
        %p784 = pneg %p151
      $region38: #{_lambda_.9} parent=35 // pred_check_branch
        %786 = sbr.rel (%p784) target = $region40
      $region39: #{_lambda_.9} parent=35 // pred_region
        %s787 = smul.u32 6, %s22
      $region40: #{_lambda_.9} parent=35 // pred_fallthru
        _
      // Predicated region
      $region41: #{_lambda_.9} parent=35 // pred_check
        %p788 = pneg %p179
      $region42: #{_lambda_.9} parent=35 // pred_check_branch
        %790 = sbr.rel (%p788) target = $region44
      $region43: #{_lambda_.9} parent=35 // pred_region
        %s791 = smul.u32 6, %s22
      $region44: #{_lambda_.9} parent=35 // pred_fallthru
        _
    $region36: #{_lambda_.9} parent=5 // pred_fallthru
      _
    %p792 = scmp.le.s32.totalorder 2, %s12
    // Predicated region
    $region45: #{_lambda_.9} parent=5 // pred_check
      %p793 = pneg %p792
    $region46: #{_lambda_.9} parent=5 // pred_check_branch
      %795 = sbr.rel (%p793) target = $region48
    $region47: #{_lambda_.9} parent=5 // pred_region
      %s796 = ssub.s32 %s12, 2
      // Predicated region
      $region49: #{_lambda_.9} parent=47 // pred_check
        %p797 = pneg %p157
      $region50: #{_lambda_.9} parent=47 // pred_check_branch
        %799 = sbr.rel (%p797) target = $region52
      $region51: #{_lambda_.9} parent=47 // pred_region
        %s800 = smul.u32 6, %s24
        %p801 = scmp.lt.s32.totalorder %s23, 1
        %s802 = scalar_select %p801, %s23, 1
        %p803 = scmp.lt.s32.totalorder %s800, 5
        %s804 = scalar_select %p803, %s800, 5
        %s805 = smul.addr %s802, 6
        %s806 = sadd.s32 %s804, %s805
        %s807 = smul.addr %s806, 8
        %s808 = scalar_lea.vmem %s4, %s807
      $region52: #{_lambda_.9} parent=47 // pred_fallthru
        _
      // Predicated region
      $region53: #{_lambda_.9} parent=47 // pred_check
        %p809 = pneg %p185
      $region54: #{_lambda_.9} parent=47 // pred_check_branch
        %811 = sbr.rel (%p809) target = $region56
      $region55: #{_lambda_.9} parent=47 // pred_region
        %s812 = smul.u32 6, %s24
        %p813 = scmp.lt.s32.totalorder %s23, 1
        %s814 = scalar_select %p813, %s23, 1
        %p815 = scmp.lt.s32.totalorder %s812, 5
        %s816 = scalar_select %p815, %s812, 5
        %s817 = smul.addr %s814, 6
        %s818 = sadd.s32 %s816, %s817
        %s819 = smul.addr %s818, 8
        %s820 = scalar_lea.vmem %s5, %s819
      $region56: #{_lambda_.9} parent=47 // pred_fallthru
        _
    $region48: #{_lambda_.9} parent=5 // pred_fallthru
      _
  $region6: #{_lambda_.9} parent=0 // loop_footer
    %s16 = sadd.s32 1, %s12
  $region7: #{_lambda_.9} parent=0 // loop_footer_branch
    %11 = sbr.rel target = $region3
  $region8: #{_lambda_.9} parent=0 // loop_exit
    _

// kernel: _lambda_.8
$region0: #{_lambda_.8}
  #allocation0 [shape = 'u32[]', space=smem, size = 0x4, offset = 0x4, fixed_abs, tag = 'smem constant byte address 0x4 - core index']
  #allocation1 [shape = 'u32[144,128]{1,0:T(1,128)}', space=vmem, size = 0x12000, scoped, tag = 'internal scratch']
  #allocation2 [shape = 'f32[80,1]{1,0:T(8,128)}', space=vmem, size = 0xa000, scoped, tag = 'scratch operand']
  %s0 = inlined_call_operand.vmem [shape: f32[2,80,1], index: 0, kind: input, shape index: {}, may-alias: {0,1}]
  %s1 = inlined_call_operand.vmem [shape: f32[2,80,1], index: 1, kind: input, shape index: {}, may-alias: {0,1}]
  %s2 = inlined_call_operand.vmem [shape: f32[15,1,128], index: 2, kind: input, shape index: {}]
  %s3 = inlined_call_operand.vmem [shape: f32[1,128], index: 3, kind: input, shape index: {}]
  %s4 = inlined_call_operand.vmem [shape: f32[2,64,128], index: 4, kind: output, shape index: {0}]
  %s5 = inlined_call_operand.vmem [shape: f32[2,64,128], index: 5, kind: output, shape index: {1}]
  %6 = xla_tuple %s4, %s5
  %s7 = sld [smem:[#allocation0]]
  $region57: #{_lambda_.8} parent=0
    _
  %s9 = ssub.s32 1, %s7
  %s10 = scalar_select 0, %s9, %s7
  loop: start=0, step=1, limit=4
  $region2: #{_lambda_.8} parent=0 // loop_pre_header
    _
  $region3: #{_lambda_.8} parent=0 // loop_header
    %s12 = sphi 0, %s16
    %p13 = scmp.ge.s32.totalorder %s12, 4
    %s19 = sphi 0, %s31
    %s20 = sphi 0, %s27
    %s21 = sphi 0, %s19
    %s22 = sphi 0, %s20
    %s23 = sphi 0, %s21
    %s24 = sphi 0, %s22
    %s36 = sphi 0, %s38
    %s39 = sphi 0, %s36
    %s40 = sphi 0, %s39
    %s56 = sphi 0, %s40
    %s68 = sphi 0, %s70
    %s71 = sphi 0, %s68
    %s72 = sphi 0, %s71
    %s88 = sphi 0, %s72
    %s92 = sphi 0, %s92
    %s94 = sphi 0, %s92
    %s95 = sphi 0, %s94
    %s109 = sphi 0, %s95
    %s113 = sphi 0, %s113
    %s115 = sphi 0, %s113
    %s116 = sphi 0, %s115
    %s130 = sphi 0, %s116
    %s138 = sphi 0, %s140
    %s141 = sphi 0, %s138
    %s142 = sphi 0, %s141
    %s158 = sphi 0, %s142
    %s166 = sphi 0, %s168
    %s169 = sphi 0, %s166
    %s170 = sphi 0, %s169
    %s186 = sphi 0, %s170
  $region4: #{_lambda_.8} parent=0 // loop_header_branch
    %15 = sbr.rel (%p13) target = $region8
  $region5: #{_lambda_.8} parent=0 // loop_body
    %s17 = ssub.s32 %s12, 1
    %s18 = ssub.s32 %s12, 2
    %s25 = sadd.s32 1, %s20
    %p26 = scmp.ge.s32.totalorder %s25, 1
    %s27 = scalar_select %p26, 0, %s25
    %s28 = sadd.s32 1, %s19
    %s29 = scalar_select %p26, %s28, %s19
    %p30 = scmp.ge.s32.totalorder %s29, 2
    %s31 = scalar_select %p30, 0, %s29
    %s32 = ssub.s32 %s19, %s31
    %s33 = ssub.s32 %s20, %s27
    %s34 = sor.u32 %s32, %s33
    %p35 = scmp.eq.s32.totalorder %s34, 0
    %s37 = sadd.s32 %s36, 1
    %s38 = scalar_select %p35, %s36, %s37
    %p41 = pneg %p35
    %p42 = scmp.eq.s32.totalorder %s12, 1
    %p43 = por %p41, %p42
    %p44 = scmp.ne.s32.totalorder %s36, %s39
    %p45 = scmp.eq.s32.totalorder %s12, 0
    %p46 = por %p44, %p45
    %p47 = scmp.ne.s32.totalorder %s36, %s39
    %p48 = scmp.eq.s32.totalorder %s17, 1
    %p49 = por %p47, %p48
    %p50 = scmp.ne.s32.totalorder %s39, %s40
    %p51 = scmp.eq.s32.totalorder %s17, 0
    %p52 = por %p50, %p51
    %p53 = scmp.ne.s32.totalorder %s39, %s40
    %p54 = scmp.eq.s32.totalorder %s18, 1
    %p55 = por %p53, %p54
    %p57 = scmp.ne.s32.totalorder %s40, %s56
    %p58 = scmp.eq.s32.totalorder %s18, 0
    %p59 = por %p57, %p58
    %s60 = sadd.s32 %s20, 1
    %s61 = smul.u32 %s60, 4
    %s62 = sadd.s32 %s27, 1
    %s63 = smul.u32 %s62, 4
    %s64 = ssub.s32 %s19, %s31
    %s65 = ssub.s32 %s61, %s63
    %s66 = sor.u32 %s64, %s65
    %p67 = scmp.eq.s32.totalorder %s66, 0
    %s69 = sadd.s32 %s68, 1
    %s70 = scalar_select %p67, %s68, %s69
    %p73 = pneg %p67
    %p74 = scmp.eq.s32.totalorder %s12, 1
    %p75 = por %p73, %p74
    %p76 = scmp.ne.s32.totalorder %s68, %s71
    %p77 = scmp.eq.s32.totalorder %s12, 0
    %p78 = por %p76, %p77
    %p79 = scmp.ne.s32.totalorder %s68, %s71
    %p80 = scmp.eq.s32.totalorder %s17, 1
    %p81 = por %p79, %p80
    %p82 = scmp.ne.s32.totalorder %s71, %s72
    %p83 = scmp.eq.s32.totalorder %s17, 0
    %p84 = por %p82, %p83
    %p85 = scmp.ne.s32.totalorder %s71, %s72
    %p86 = scmp.eq.s32.totalorder %s18, 1
    %p87 = por %p85, %p86
    %p89 = scmp.ne.s32.totalorder %s72, %s88
    %p90 = scmp.eq.s32.totalorder %s18, 0
    %p91 = por %p89, %p90
    %s93 = sadd.s32 %s92, 1
    %p96 = scmp.eq.s32.totalorder %s12, 1
    %p97 = scmp.ne.s32.totalorder %s92, %s94
    %p98 = scmp.eq.s32.totalorder %s12, 0
    %p99 = por %p97, %p98
    %p100 = scmp.ne.s32.totalorder %s92, %s94
    %p101 = scmp.eq.s32.totalorder %s17, 1
    %p102 = por %p100, %p101
    %p103 = scmp.ne.s32.totalorder %s94, %s95
    %p104 = scmp.eq.s32.totalorder %s17, 0
    %p105 = por %p103, %p104
    %p106 = scmp.ne.s32.totalorder %s94, %s95
    %p107 = scmp.eq.s32.totalorder %s18, 1
    %p108 = por %p106, %p107
    %p110 = scmp.ne.s32.totalorder %s95, %s109
    %p111 = scmp.eq.s32.totalorder %s18, 0
    %p112 = por %p110, %p111
    %s114 = sadd.s32 %s113, 1
    %p117 = scmp.eq.s32.totalorder %s12, 1
    %p118 = scmp.ne.s32.totalorder %s113, %s115
    %p119 = scmp.eq.s32.totalorder %s12, 0
    %p120 = por %p118, %p119
    %p121 = scmp.ne.s32.totalorder %s113, %s115
    %p122 = scmp.eq.s32.totalorder %s17, 1
    %p123 = por %p121, %p122
    %p124 = scmp.ne.s32.totalorder %s115, %s116
    %p125 = scmp.eq.s32.totalorder %s17, 0
    %p126 = por %p124, %p125
    %p127 = scmp.ne.s32.totalorder %s115, %s116
    %p128 = scmp.eq.s32.totalorder %s18, 1
    %p129 = por %p127, %p128
    %p131 = scmp.ne.s32.totalorder %s116, %s130
    %p132 = scmp.eq.s32.totalorder %s18, 0
    %p133 = por %p131, %p132
    %s134 = ssub.s32 %s19, %s31
    %s135 = ssub.s32 %s20, %s27
    %s136 = sor.u32 %s134, %s135
    %p137 = scmp.eq.s32.totalorder %s136, 0
    %s139 = sadd.s32 %s138, 1
    %s140 = scalar_select %p137, %s138, %s139
    %p143 = pneg %p137
    %p144 = scmp.eq.s32.totalorder %s12, 1
    %p145 = por %p143, %p144
    %p146 = scmp.ne.s32.totalorder %s138, %s141
    %p147 = scmp.eq.s32.totalorder %s12, 0
    %p148 = por %p146, %p147
    %p149 = scmp.ne.s32.totalorder %s138, %s141
    %p150 = scmp.eq.s32.totalorder %s17, 1
    %p151 = por %p149, %p150
    %p152 = scmp.ne.s32.totalorder %s141, %s142
    %p153 = scmp.eq.s32.totalorder %s17, 0
    %p154 = por %p152, %p153
    %p155 = scmp.ne.s32.totalorder %s141, %s142
    %p156 = scmp.eq.s32.totalorder %s18, 1
    %p157 = por %p155, %p156
    %p159 = scmp.ne.s32.totalorder %s142, %s158
    %p160 = scmp.eq.s32.totalorder %s18, 0
    %p161 = por %p159, %p160
    %s162 = ssub.s32 %s19, %s31
    %s163 = ssub.s32 %s20, %s27
    %s164 = sor.u32 %s162, %s163
    %p165 = scmp.eq.s32.totalorder %s164, 0
    %s167 = sadd.s32 %s166, 1
    %s168 = scalar_select %p165, %s166, %s167
    %p171 = pneg %p165
    %p172 = scmp.eq.s32.totalorder %s12, 1
    %p173 = por %p171, %p172
    %p174 = scmp.ne.s32.totalorder %s166, %s169
    %p175 = scmp.eq.s32.totalorder %s12, 0
    %p176 = por %p174, %p175
    %p177 = scmp.ne.s32.totalorder %s166, %s169
    %p178 = scmp.eq.s32.totalorder %s17, 1
    %p179 = por %p177, %p178
    %p180 = scmp.ne.s32.totalorder %s169, %s170
    %p181 = scmp.eq.s32.totalorder %s17, 0
    %p182 = por %p180, %p181
    %p183 = scmp.ne.s32.totalorder %s169, %s170
    %p184 = scmp.eq.s32.totalorder %s18, 1
    %p185 = por %p183, %p184
    %p187 = scmp.ne.s32.totalorder %s170, %s186
    %p188 = scmp.eq.s32.totalorder %s18, 0
    %p189 = por %p187, %p188
    %p190 = scmp.le.s32.totalorder 1, %s12
    %p191 = scmp.lt.s32.totalorder %s12, 3
    %p192 = pnand %p190, %p191
    %p193 = pneg %p192
    // Predicated region
    $region9: #{_lambda_.8} parent=5 // pred_check
      _
    $region10: #{_lambda_.8} parent=5 // pred_check_branch
      %195 = sbr.rel (%p192) target = $region12
    $region11: #{_lambda_.8} parent=5 // pred_region
      %s196 = ssub.s32 %s12, 1
      // Predicated region
      $region13: #{_lambda_.8} parent=11 // pred_check
        %p197 = pneg %p105
      $region14: #{_lambda_.8} parent=11 // pred_check_branch
        %199 = sbr.rel (%p197) target = $region16
      $region15: #{_lambda_.8} parent=11 // pred_region
        _
      $region16: #{_lambda_.8} parent=11 // pred_fallthru
        _
      // Predicated region
      $region17: #{_lambda_.8} parent=11 // pred_check
        %p200 = pneg %p126
      $region18: #{_lambda_.8} parent=11 // pred_check_branch
        %202 = sbr.rel (%p200) target = $region20
      $region19: #{_lambda_.8} parent=11 // pred_region
        _
      $region20: #{_lambda_.8} parent=11 // pred_fallthru
        _
    $region12: #{_lambda_.8} parent=5 // pred_fallthru
      _
    %p203 = scmp.lt.s32.totalorder %s12, 2
    // Predicated region
    $region21: #{_lambda_.8} parent=5 // pred_check
      %p204 = pneg %p203
    $region22: #{_lambda_.8} parent=5 // pred_check_branch
      %206 = sbr.rel (%p204) target = $region24
    $region23: #{_lambda_.8} parent=5 // pred_region
      // Predicated region
      $region25: #{_lambda_.8} parent=23 // pred_check
        %p207 = pneg %p46
      $region26: #{_lambda_.8} parent=23 // pred_check_branch
        %209 = sbr.rel (%p207) target = $region28
      $region27: #{_lambda_.8} parent=23 // pred_region
        %s210 = smul.u32 8, %s20
        %s211 = ssub.s32 10, %s210
        %p212 = scmp.lt.s32.totalorder %s211, 8
        %s213 = scalar_select %p212, %s211, 8
        %s214 = smul.u32 128, %s213
        %p215 = scmp.lt.s32.totalorder %s19, 1
        %s216 = scalar_select %p215, %s19, 1
        %p217 = scmp.lt.s32.totalorder %s210, 9
        %s218 = scalar_select %p217, %s210, 9
        %s219 = smul.addr %s216, 10
        %s220 = sadd.s32 %s218, %s219
        %s221 = smul.addr %s220, 8
        %s222 = scalar_lea.vmem %s0, %s221
        %s223 = smul.u32 8, %s20
        %s224 = ssub.s32 10, %s223
        %p225 = scmp.lt.s32.totalorder %s224, 8
        %s226 = scalar_select %p225, %s224, 8
        %s227 = smul.u32 128, %s226
      $region28: #{_lambda_.8} parent=23 // pred_fallthru
        _
      // Predicated region
      $region29: #{_lambda_.8} parent=23 // pred_check
        %p228 = pneg %p78
      $region30: #{_lambda_.8} parent=23 // pred_check_branch
        %230 = sbr.rel (%p228) target = $region32
      $region31: #{_lambda_.8} parent=23 // pred_region
        %s231 = sadd.s32 %s20, 1
        %s232 = smul.u32 %s231, 4
        %s233 = smul.u32 2, %s232
        %p234 = scmp.lt.s32.totalorder %s19, 1
        %s235 = scalar_select %p234, %s19, 1
        %p236 = scmp.lt.s32.totalorder %s233, 9
        %s237 = scalar_select %p236, %s233, 9
        %s238 = smul.addr %s235, 10
        %s239 = sadd.s32 %s237, %s238
        %s240 = smul.addr %s239, 8
        %s241 = scalar_lea.vmem %s1, %s240
        %s242 = sadd.s32 %s20, 1
        %s243 = smul.u32 %s242, 4
        %s244 = smul.u32 2, %s243
      $region32: #{_lambda_.8} parent=23 // pred_fallthru
        _
    $region24: #{_lambda_.8} parent=5 // pred_fallthru
      _
    %p245 = scmp.le.s32.totalorder 1, %s12
    %p246 = scmp.lt.s32.totalorder %s12, 3
    %p247 = pnand %p245, %p246
    %p248 = pneg %p247
    // Predicated region
    $region33: #{_lambda_.8} parent=5 // pred_check
      _
    $region34: #{_lambda_.8} parent=5 // pred_check_branch
      %250 = sbr.rel (%p247) target = $region36
    $region35: #{_lambda_.8} parent=5 // pred_region
      %s251 = ssub.s32 %s12, 1
      %s252 = smul.u32 8, %s22
      %s253 = ssub.s32 10, %s252
      %p254 = scmp.lt.s32.totalorder %s253, 8
      %s255 = scalar_select %p254, %s253, 8
      %s256 = smul.u32 128, %s255
      %p257 = scmp.lt.s32.totalorder %s21, 1
      %s258 = scalar_select %p257, %s21, 1
      %p259 = scmp.lt.s32.totalorder %s252, 9
      %s260 = scalar_select %p259, %s252, 9
      %s261 = smul.addr %s258, 10
      %s262 = sadd.s32 %s260, %s261
      %s263 = smul.addr %s262, 8
      %s264 = scalar_lea.vmem %s0, %s263
      %p265 = pneg %p52
      %p266 = pneg %p49
      %s267 = sadd.s32 %s22, 1
      %s268 = smul.u32 %s267, 4
      %s269 = smul.u32 2, %s268
      %p270 = scmp.lt.s32.totalorder %s21, 1
      %s271 = scalar_select %p270, %s21, 1
      %p272 = scmp.lt.s32.totalorder %s269, 9
      %s273 = scalar_select %p272, %s269, 9
      %s274 = smul.addr %s271, 10
      %s275 = sadd.s32 %s273, %s274
      %s276 = smul.addr %s275, 8
      %s277 = scalar_lea.vmem %s1, %s276
      %p278 = pneg %p84
      %p279 = pneg %p81
      %p280 = pneg %p105
      %p281 = pneg %p102
      %p282 = pneg %p126
      %p283 = pneg %p123
      %p284 = pneg %p154
      %p285 = pneg %p151
      %s286 = smul.u32 8, %s22
      %p287 = scmp.lt.s32.totalorder %s21, 1
      %s288 = scalar_select %p287, %s21, 1
      %p289 = scmp.lt.s32.totalorder %s286, 7
      %s290 = scalar_select %p289, %s286, 7
      %s291 = smul.addr %s288, 8
      %s292 = sadd.s32 %s290, %s291
      %s293 = smul.addr %s292, 8
      %s294 = scalar_lea.vmem %s4, %s293
      %p295 = pneg %p182
      %p296 = pneg %p179
      %s297 = smul.u32 8, %s22
      %p298 = scmp.lt.s32.totalorder %s21, 1
      %s299 = scalar_select %p298, %s21, 1
      %p300 = scmp.lt.s32.totalorder %s297, 7
      %s301 = scalar_select %p300, %s297, 7
      %s302 = smul.addr %s299, 8
      %s303 = sadd.s32 %s301, %s302
      %s304 = smul.addr %s303, 8
      %s305 = scalar_lea.vmem %s5, %s304
      %s306 = smul.u32 8, %s22
      %s307 = ssub.s32 10, %s306
      %p308 = scmp.lt.s32.totalorder %s307, 8
      %s309 = scalar_select %p308, %s307, 8
      %s310 = smul.u32 128, %s309
      %p311 = scmp.lt.s32.totalorder %s21, 1
      %s312 = scalar_select %p311, %s21, 1
      %p313 = scmp.lt.s32.totalorder %s306, 9
      %s314 = scalar_select %p313, %s306, 9
      %s315 = smul.addr %s312, 10
      %s316 = sadd.s32 %s314, %s315
      %s317 = smul.addr %s316, 8
      %s318 = scalar_lea.vmem %s0, %s317
      %s319 = smul.u32 8, %s22
      %s320 = ssub.s32 10, %s319
      %p321 = scmp.lt.s32.totalorder %s320, 8
      %s322 = scalar_select %p321, %s320, 8
      %s323 = smul.u32 128, %s322
      %s324 = sadd.s32 %s22, 1
      %s325 = smul.u32 %s324, 4
      %s326 = smul.u32 2, %s325
      %p327 = scmp.lt.s32.totalorder %s21, 1
      %s328 = scalar_select %p327, %s21, 1
      %p329 = scmp.lt.s32.totalorder %s326, 9
      %s330 = scalar_select %p329, %s326, 9
      %s331 = smul.addr %s328, 10
      %s332 = sadd.s32 %s330, %s331
      %s333 = smul.addr %s332, 8
      %s334 = scalar_lea.vmem %s1, %s333
      %s335 = sadd.s32 %s22, 1
      %s336 = smul.u32 %s335, 4
      %s337 = smul.u32 2, %s336
      %s338 = smul.u32 8, %s22
      %p339 = scmp.lt.s32.totalorder %s21, 1
      %s340 = scalar_select %p339, %s21, 1
      %p341 = scmp.lt.s32.totalorder %s338, 7
      %s342 = scalar_select %p341, %s338, 7
      %s343 = smul.addr %s340, 8
      %s344 = sadd.s32 %s342, %s343
      %s345 = smul.addr %s344, 8
      %s346 = scalar_lea.vmem %s4, %s345
      %s347 = smul.u32 8, %s22
      %s348 = smul.u32 8, %s22
      %p349 = scmp.lt.s32.totalorder %s21, 1
      %s350 = scalar_select %p349, %s21, 1
      %p351 = scmp.lt.s32.totalorder %s348, 7
      %s352 = scalar_select %p351, %s348, 7
      %s353 = smul.addr %s350, 8
      %s354 = sadd.s32 %s352, %s353
      %s355 = smul.addr %s354, 8
      %s356 = scalar_lea.vmem %s5, %s355
      %s357 = smul.u32 8, %s22
      %v358 = vld [vmem:[%s318] sm:$0xff]
      %v359 = vld [vmem:[%s318 + $0x8] sm:$0xff]
      %v360 = vld [vmem:[%s318 + $0x10] sm:$0xff]
      %v361 = vld [vmem:[%s318 + $0x18] sm:$0xff]
      %v362 = vld [vmem:[%s318 + $0x20] sm:$0xff]
      %v363 = vld [vmem:[%s318 + $0x28] sm:$0xff]
      %v364 = vld [vmem:[%s318 + $0x30] sm:$0xff]
      %v365 = vld [vmem:[%s318 + $0x38] sm:$0xff]
      %vm366 = vcmask 7168
      %367 = vst.msk [vmem:[#allocation2] sm:$0xff] %vm366, %v358
      %368 = vst.msk [vmem:[#allocation2 + $0x8] sm:$0xff] %vm366, %v359
      %369 = vst.msk [vmem:[#allocation2 + $0x10] sm:$0xff] %vm366, %v360
      %370 = vst.msk [vmem:[#allocation2 + $0x18] sm:$0xff] %vm366, %v361
      %371 = vst.msk [vmem:[#allocation2 + $0x20] sm:$0xff] %vm366, %v362
      %372 = vst.msk [vmem:[#allocation2 + $0x28] sm:$0xff] %vm366, %v363
      %373 = vst.msk [vmem:[#allocation2 + $0x30] sm:$0xff] %vm366, %v364
      %374 = vst.msk [vmem:[#allocation2 + $0x38] sm:$0xff] %vm366, %v365
      %v375 = vld [vmem:[%s334] sm:$0xff]
      %v376 = vld [vmem:[%s334 + $0x8] sm:$0xff]
      %377 = vst.msk [vmem:[#allocation2 + $0x40] sm:$0xff] %vm366, %v375
      %378 = vst.msk [vmem:[#allocation2 + $0x48] sm:$0xff] %vm366, %v376
      %v379 = vld [vmem:[%s2] sm:$0x1]
      %381 = vset.pattern.permute.xlu0 0
      %382 = vperm.xlu0 %381, %v358
      %v383 = vpop.permute.xlu0 %382
      %386 = vset.pattern.permute.xlu0 0
      %387 = vperm.xlu0 %386, %v359
      %v388 = vpop.permute.xlu0 %387
      %391 = vset.pattern.permute.xlu0 0
      %392 = vperm.xlu0 %391, %v360
      %v393 = vpop.permute.xlu0 %392
      %396 = vset.pattern.permute.xlu0 0
      %397 = vperm.xlu0 %396, %v361
      %v398 = vpop.permute.xlu0 %397
      %401 = vset.pattern.permute.xlu0 0
      %402 = vperm.xlu0 %401, %v362
      %v403 = vpop.permute.xlu0 %402
      %406 = vset.pattern.permute.xlu0 0
      %407 = vperm.xlu0 %406, %v363
      %v408 = vpop.permute.xlu0 %407
      %411 = vset.pattern.permute.xlu0 0
      %412 = vperm.xlu0 %411, %v364
      %v413 = vpop.permute.xlu0 %412
      %416 = vset.pattern.permute.xlu0 0
      %417 = vperm.xlu0 %416, %v365
      %v418 = vpop.permute.xlu0 %417
      %v421 = vlaneseq
      %v422 = vshrl.u32 %v421, 7
      %v423 = vsub.s32 0, %v422
      %v424 = vrot.slane %v379, %v423
      %v426 = vmul.f32 %v383, %v424
      %v427 = vmul.f32 %v388, %v424
      %v428 = vmul.f32 %v393, %v424
      %v429 = vmul.f32 %v398, %v424
      %v430 = vmul.f32 %v403, %v424
      %v431 = vmul.f32 %v408, %v424
      %v432 = vmul.f32 %v413, %v424
      %v433 = vmul.f32 %v418, %v424
      %v434 = vadd.f32 %v426, 0.0
      %v435 = vadd.f32 %v427, 0.0
      %v436 = vadd.f32 %v428, 0.0
      %v437 = vadd.f32 %v429, 0.0
      %v438 = vadd.f32 %v430, 0.0
      %v439 = vadd.f32 %v431, 0.0
      %v440 = vadd.f32 %v432, 0.0
      %v441 = vadd.f32 %v433, 0.0
      %v442 = vld [vmem:[#allocation2 + $0x1] sm:$0xff]
      %v443 = vld [vmem:[#allocation2 + $0x9] sm:$0xff]
      %v444 = vld [vmem:[#allocation2 + $0x11] sm:$0xff]
      %v445 = vld [vmem:[#allocation2 + $0x19] sm:$0xff]
      %v446 = vld [vmem:[#allocation2 + $0x21] sm:$0xff]
      %v447 = vld [vmem:[#allocation2 + $0x29] sm:$0xff]
      %v448 = vld [vmem:[#allocation2 + $0x31] sm:$0xff]
      %v449 = vld [vmem:[#allocation2 + $0x39] sm:$0xff]
      %s450 = scalar_lea.vmem %s2, 1
      %v451 = vld [vmem:[%s450] sm:$0x1]
      %453 = vset.pattern.permute.xlu0 0
      %454 = vperm.xlu0 %453, %v442
      %v455 = vpop.permute.xlu0 %454
      %458 = vset.pattern.permute.xlu0 0
      %459 = vperm.xlu0 %458, %v443
      %v460 = vpop.permute.xlu0 %459
      %463 = vset.pattern.permute.xlu0 0
      %464 = vperm.xlu0 %463, %v444
      %v465 = vpop.permute.xlu0 %464
      %468 = vset.pattern.permute.xlu0 0
      %469 = vperm.xlu0 %468, %v445
      %v470 = vpop.permute.xlu0 %469
      %473 = vset.pattern.permute.xlu0 0
      %474 = vperm.xlu0 %473, %v446
      %v475 = vpop.permute.xlu0 %474
      %478 = vset.pattern.permute.xlu0 0
      %479 = vperm.xlu0 %478, %v447
      %v480 = vpop.permute.xlu0 %479
      %483 = vset.pattern.permute.xlu0 0
      %484 = vperm.xlu0 %483, %v448
      %v485 = vpop.permute.xlu0 %484
      %488 = vset.pattern.permute.xlu0 0
      %489 = vperm.xlu0 %488, %v449
      %v490 = vpop.permute.xlu0 %489
      %v493 = vlaneseq
      %v494 = vshrl.u32 %v493, 7
      %v495 = vsub.s32 0, %v494
      %v496 = vrot.slane %v451, %v495
      %v498 = vmul.f32 %v455, %v496
      %v499 = vmul.f32 %v460, %v496
      %v500 = vmul.f32 %v465, %v496
      %v501 = vmul.f32 %v470, %v496
      %v502 = vmul.f32 %v475, %v496
      %v503 = vmul.f32 %v480, %v496
      %v504 = vmul.f32 %v485, %v496
      %v505 = vmul.f32 %v490, %v496
      %v506 = vadd.f32 %v434, %v498
      %v507 = vadd.f32 %v435, %v499
      %v508 = vadd.f32 %v436, %v500
      %v509 = vadd.f32 %v437, %v501
      %v510 = vadd.f32 %v438, %v502
      %v511 = vadd.f32 %v439, %v503
      %v512 = vadd.f32 %v440, %v504
      %v513 = vadd.f32 %v441, %v505
      %v514 = vld [vmem:[#allocation2 + $0x2] sm:$0xff]
      %v515 = vld [vmem:[#allocation2 + $0xa] sm:$0xff]
      %v516 = vld [vmem:[#allocation2 + $0x12] sm:$0xff]
      %v517 = vld [vmem:[#allocation2 + $0x1a] sm:$0xff]
      %v518 = vld [vmem:[#allocation2 + $0x22] sm:$0xff]
      %v519 = vld [vmem:[#allocation2 + $0x2a] sm:$0xff]
      %v520 = vld [vmem:[#allocation2 + $0x32] sm:$0xff]
      %v521 = vld [vmem:[#allocation2 + $0x3a] sm:$0xff]
      %s522 = scalar_lea.vmem %s2, 2
      %v523 = vld [vmem:[%s522] sm:$0x1]
      %525 = vset.pattern.permute.xlu0 0
      %526 = vperm.xlu0 %525, %v514
      %v527 = vpop.permute.xlu0 %526
      %530 = vset.pattern.permute.xlu0 0
      %531 = vperm.xlu0 %530, %v515
      %v532 = vpop.permute.xlu0 %531
      %535 = vset.pattern.permute.xlu0 0
      %536 = vperm.xlu0 %535, %v516
      %v537 = vpop.permute.xlu0 %536
      %540 = vset.pattern.permute.xlu0 0
      %541 = vperm.xlu0 %540, %v517
      %v542 = vpop.permute.xlu0 %541
      %545 = vset.pattern.permute.xlu0 0
      %546 = vperm.xlu0 %545, %v518
      %v547 = vpop.permute.xlu0 %546
      %550 = vset.pattern.permute.xlu0 0
      %551 = vperm.xlu0 %550, %v519
      %v552 = vpop.permute.xlu0 %551
      %555 = vset.pattern.permute.xlu0 0
      %556 = vperm.xlu0 %555, %v520
      %v557 = vpop.permute.xlu0 %556
      %560 = vset.pattern.permute.xlu0 0
      %561 = vperm.xlu0 %560, %v521
      %v562 = vpop.permute.xlu0 %561
      %v565 = vlaneseq
      %v566 = vshrl.u32 %v565, 7
      %v567 = vsub.s32 0, %v566
      %v568 = vrot.slane %v523, %v567
      %v570 = vmul.f32 %v527, %v568
      %v571 = vmul.f32 %v532, %v568
      %v572 = vmul.f32 %v537, %v568
      %v573 = vmul.f32 %v542, %v568
      %v574 = vmul.f32 %v547, %v568
      %v575 = vmul.f32 %v552, %v568
      %v576 = vmul.f32 %v557, %v568
      %v577 = vmul.f32 %v562, %v568
      %v578 = vadd.f32 %v506, %v570
      %v579 = vadd.f32 %v507, %v571
      %v580 = vadd.f32 %v508, %v572
      %v581 = vadd.f32 %v509, %v573
      %v582 = vadd.f32 %v510, %v574
      %v583 = vadd.f32 %v511, %v575
      %v584 = vadd.f32 %v512, %v576
      %v585 = vadd.f32 %v513, %v577
      %v586 = vld [vmem:[#allocation2 + $0x3] sm:$0xff]
      %v587 = vld [vmem:[#allocation2 + $0xb] sm:$0xff]
      %v588 = vld [vmem:[#allocation2 + $0x13] sm:$0xff]
      %v589 = vld [vmem:[#allocation2 + $0x1b] sm:$0xff]
      %v590 = vld [vmem:[#allocation2 + $0x23] sm:$0xff]
      %v591 = vld [vmem:[#allocation2 + $0x2b] sm:$0xff]
      %v592 = vld [vmem:[#allocation2 + $0x33] sm:$0xff]
      %v593 = vld [vmem:[#allocation2 + $0x3b] sm:$0xff]
      %s594 = scalar_lea.vmem %s2, 3
      %v595 = vld [vmem:[%s594] sm:$0x1]
      %597 = vset.pattern.permute.xlu0 0
      %598 = vperm.xlu0 %597, %v586
      %v599 = vpop.permute.xlu0 %598
      %602 = vset.pattern.permute.xlu0 0
      %603 = vperm.xlu0 %602, %v587
      %v604 = vpop.permute.xlu0 %603
      %607 = vset.pattern.permute.xlu0 0
      %608 = vperm.xlu0 %607, %v588
      %v609 = vpop.permute.xlu0 %608
      %612 = vset.pattern.permute.xlu0 0
      %613 = vperm.xlu0 %612, %v589
      %v614 = vpop.permute.xlu0 %613
      %617 = vset.pattern.permute.xlu0 0
      %618 = vperm.xlu0 %617, %v590
      %v619 = vpop.permute.xlu0 %618
      %622 = vset.pattern.permute.xlu0 0
      %623 = vperm.xlu0 %622, %v591
      %v624 = vpop.permute.xlu0 %623
      %627 = vset.pattern.permute.xlu0 0
      %628 = vperm.xlu0 %627, %v592
      %v629 = vpop.permute.xlu0 %628
      %632 = vset.pattern.permute.xlu0 0
      %633 = vperm.xlu0 %632, %v593
      %v634 = vpop.permute.xlu0 %633
      %v637 = vlaneseq
      %v638 = vshrl.u32 %v637, 7
      %v639 = vsub.s32 0, %v638
      %v640 = vrot.slane %v595, %v639
      %v642 = vmul.f32 %v599, %v640
      %v643 = vmul.f32 %v604, %v640
      %v644 = vmul.f32 %v609, %v640
      %v645 = vmul.f32 %v614, %v640
      %v646 = vmul.f32 %v619, %v640
      %v647 = vmul.f32 %v624, %v640
      %v648 = vmul.f32 %v629, %v640
      %v649 = vmul.f32 %v634, %v640
      %v650 = vadd.f32 %v578, %v642
      %v651 = vadd.f32 %v579, %v643
      %v652 = vadd.f32 %v580, %v644
      %v653 = vadd.f32 %v581, %v645
      %v654 = vadd.f32 %v582, %v646
      %v655 = vadd.f32 %v583, %v647
      %v656 = vadd.f32 %v584, %v648
      %v657 = vadd.f32 %v585, %v649
      %v658 = vld [vmem:[#allocation2 + $0x4] sm:$0xff]
      %v659 = vld [vmem:[#allocation2 + $0xc] sm:$0xff]
      %v660 = vld [vmem:[#allocation2 + $0x14] sm:$0xff]
      %v661 = vld [vmem:[#allocation2 + $0x1c] sm:$0xff]
      %v662 = vld [vmem:[#allocation2 + $0x24] sm:$0xff]
      %v663 = vld [vmem:[#allocation2 + $0x2c] sm:$0xff]
      %v664 = vld [vmem:[#allocation2 + $0x34] sm:$0xff]
      %v665 = vld [vmem:[#allocation2 + $0x3c] sm:$0xff]
      %s666 = scalar_lea.vmem %s2, 4
      %v667 = vld [vmem:[%s666] sm:$0x1]
      %669 = vset.pattern.permute.xlu0 0
      %670 = vperm.xlu0 %669, %v658
      %v671 = vpop.permute.xlu0 %670
      %674 = vset.pattern.permute.xlu0 0
      %675 = vperm.xlu0 %674, %v659
      %v676 = vpop.permute.xlu0 %675
      %679 = vset.pattern.permute.xlu0 0
      %680 = vperm.xlu0 %679, %v660
      %v681 = vpop.permute.xlu0 %680
      %684 = vset.pattern.permute.xlu0 0
      %685 = vperm.xlu0 %684, %v661
      %v686 = vpop.permute.xlu0 %685
      %689 = vset.pattern.permute.xlu0 0
      %690 = vperm.xlu0 %689, %v662
      %v691 = vpop.permute.xlu0 %690
      %694 = vset.pattern.permute.xlu0 0
      %695 = vperm.xlu0 %694, %v663
      %v696 = vpop.permute.xlu0 %695
      %699 = vset.pattern.permute.xlu0 0
      %700 = vperm.xlu0 %699, %v664
      %v701 = vpop.permute.xlu0 %700
      %704 = vset.pattern.permute.xlu0 0
      %705 = vperm.xlu0 %704, %v665
      %v706 = vpop.permute.xlu0 %705
      %v709 = vlaneseq
      %v710 = vshrl.u32 %v709, 7
      %v711 = vsub.s32 0, %v710
      %v712 = vrot.slane %v667, %v711
      %v714 = vmul.f32 %v671, %v712
      %v715 = vmul.f32 %v676, %v712
      %v716 = vmul.f32 %v681, %v712
      %v717 = vmul.f32 %v686, %v712
      %v718 = vmul.f32 %v691, %v712
      %v719 = vmul.f32 %v696, %v712
      %v720 = vmul.f32 %v701, %v712
      %v721 = vmul.f32 %v706, %v712
      %v722 = vadd.f32 %v650, %v714
      %v723 = vadd.f32 %v651, %v715
      %v724 = vadd.f32 %v652, %v716
      %v725 = vadd.f32 %v653, %v717
      %v726 = vadd.f32 %v654, %v718
      %v727 = vadd.f32 %v655, %v719
      %v728 = vadd.f32 %v656, %v720
      %v729 = vadd.f32 %v657, %v721
      %v730 = vld [vmem:[#allocation2 + $0x5] sm:$0xff]
      %v731 = vld [vmem:[#allocation2 + $0xd] sm:$0xff]
      %v732 = vld [vmem:[#allocation2 + $0x15] sm:$0xff]
      %v733 = vld [vmem:[#allocation2 + $0x1d] sm:$0xff]
      %v734 = vld [vmem:[#allocation2 + $0x25] sm:$0xff]
      %v735 = vld [vmem:[#allocation2 + $0x2d] sm:$0xff]
      %v736 = vld [vmem:[#allocation2 + $0x35] sm:$0xff]
      %v737 = vld [vmem:[#allocation2 + $0x3d] sm:$0xff]
      %s738 = scalar_lea.vmem %s2, 5
      %v739 = vld [vmem:[%s738] sm:$0x1]
      %741 = vset.pattern.permute.xlu0 0
      %742 = vperm.xlu0 %741, %v730
      %v743 = vpop.permute.xlu0 %742
      %746 = vset.pattern.permute.xlu0 0
      %747 = vperm.xlu0 %746, %v731
      %v748 = vpop.permute.xlu0 %747
      %751 = vset.pattern.permute.xlu0 0
      %752 = vperm.xlu0 %751, %v732
      %v753 = vpop.permute.xlu0 %752
      %756 = vset.pattern.permute.xlu0 0
      %757 = vperm.xlu0 %756, %v733
      %v758 = vpop.permute.xlu0 %757
      %761 = vset.pattern.permute.xlu0 0
      %762 = vperm.xlu0 %761, %v734
      %v763 = vpop.permute.xlu0 %762
      %766 = vset.pattern.permute.xlu0 0
      %767 = vperm.xlu0 %766, %v735
      %v768 = vpop.permute.xlu0 %767
      %771 = vset.pattern.permute.xlu0 0
      %772 = vperm.xlu0 %771, %v736
      %v773 = vpop.permute.xlu0 %772
      %776 = vset.pattern.permute.xlu0 0
      %777 = vperm.xlu0 %776, %v737
      %v778 = vpop.permute.xlu0 %777
      %v781 = vlaneseq
      %v782 = vshrl.u32 %v781, 7
      %v783 = vsub.s32 0, %v782
      %v784 = vrot.slane %v739, %v783
      %v786 = vmul.f32 %v743, %v784
      %v787 = vmul.f32 %v748, %v784
      %v788 = vmul.f32 %v753, %v784
      %v789 = vmul.f32 %v758, %v784
      %v790 = vmul.f32 %v763, %v784
      %v791 = vmul.f32 %v768, %v784
      %v792 = vmul.f32 %v773, %v784
      %v793 = vmul.f32 %v778, %v784
      %v794 = vadd.f32 %v722, %v786
      %v795 = vadd.f32 %v723, %v787
      %v796 = vadd.f32 %v724, %v788
      %v797 = vadd.f32 %v725, %v789
      %v798 = vadd.f32 %v726, %v790
      %v799 = vadd.f32 %v727, %v791
      %v800 = vadd.f32 %v728, %v792
      %v801 = vadd.f32 %v729, %v793
      %v802 = vld [vmem:[#allocation2 + $0x6] sm:$0xff]
      %v803 = vld [vmem:[#allocation2 + $0xe] sm:$0xff]
      %v804 = vld [vmem:[#allocation2 + $0x16] sm:$0xff]
      %v805 = vld [vmem:[#allocation2 + $0x1e] sm:$0xff]
      %v806 = vld [vmem:[#allocation2 + $0x26] sm:$0xff]
      %v807 = vld [vmem:[#allocation2 + $0x2e] sm:$0xff]
      %v808 = vld [vmem:[#allocation2 + $0x36] sm:$0xff]
      %v809 = vld [vmem:[#allocation2 + $0x3e] sm:$0xff]
      %s810 = scalar_lea.vmem %s2, 6
      %v811 = vld [vmem:[%s810] sm:$0x1]
      %813 = vset.pattern.permute.xlu0 0
      %814 = vperm.xlu0 %813, %v802
      %v815 = vpop.permute.xlu0 %814
      %818 = vset.pattern.permute.xlu0 0
      %819 = vperm.xlu0 %818, %v803
      %v820 = vpop.permute.xlu0 %819
      %823 = vset.pattern.permute.xlu0 0
      %824 = vperm.xlu0 %823, %v804
      %v825 = vpop.permute.xlu0 %824
      %828 = vset.pattern.permute.xlu0 0
      %829 = vperm.xlu0 %828, %v805
      %v830 = vpop.permute.xlu0 %829
      %833 = vset.pattern.permute.xlu0 0
      %834 = vperm.xlu0 %833, %v806
      %v835 = vpop.permute.xlu0 %834
      %838 = vset.pattern.permute.xlu0 0
      %839 = vperm.xlu0 %838, %v807
      %v840 = vpop.permute.xlu0 %839
      %843 = vset.pattern.permute.xlu0 0
      %844 = vperm.xlu0 %843, %v808
      %v845 = vpop.permute.xlu0 %844
      %848 = vset.pattern.permute.xlu0 0
      %849 = vperm.xlu0 %848, %v809
      %v850 = vpop.permute.xlu0 %849
      %v853 = vlaneseq
      %v854 = vshrl.u32 %v853, 7
      %v855 = vsub.s32 0, %v854
      %v856 = vrot.slane %v811, %v855
      %v858 = vmul.f32 %v815, %v856
      %v859 = vmul.f32 %v820, %v856
      %v860 = vmul.f32 %v825, %v856
      %v861 = vmul.f32 %v830, %v856
      %v862 = vmul.f32 %v835, %v856
      %v863 = vmul.f32 %v840, %v856
      %v864 = vmul.f32 %v845, %v856
      %v865 = vmul.f32 %v850, %v856
      %v866 = vadd.f32 %v794, %v858
      %v867 = vadd.f32 %v795, %v859
      %v868 = vadd.f32 %v796, %v860
      %v869 = vadd.f32 %v797, %v861
      %v870 = vadd.f32 %v798, %v862
      %v871 = vadd.f32 %v799, %v863
      %v872 = vadd.f32 %v800, %v864
      %v873 = vadd.f32 %v801, %v865
      %v874 = vld [vmem:[#allocation2 + $0x7] sm:$0xff]
      %v875 = vld [vmem:[#allocation2 + $0xf] sm:$0xff]
      %v876 = vld [vmem:[#allocation2 + $0x17] sm:$0xff]
      %v877 = vld [vmem:[#allocation2 + $0x1f] sm:$0xff]
      %v878 = vld [vmem:[#allocation2 + $0x27] sm:$0xff]
      %v879 = vld [vmem:[#allocation2 + $0x2f] sm:$0xff]
      %v880 = vld [vmem:[#allocation2 + $0x37] sm:$0xff]
      %v881 = vld [vmem:[#allocation2 + $0x3f] sm:$0xff]
      %s882 = scalar_lea.vmem %s2, 7
      %v883 = vld [vmem:[%s882] sm:$0x1]
      %885 = vset.pattern.permute.xlu0 0
      %886 = vperm.xlu0 %885, %v874
      %v887 = vpop.permute.xlu0 %886
      %890 = vset.pattern.permute.xlu0 0
      %891 = vperm.xlu0 %890, %v875
      %v892 = vpop.permute.xlu0 %891
      %895 = vset.pattern.permute.xlu0 0
      %896 = vperm.xlu0 %895, %v876
      %v897 = vpop.permute.xlu0 %896
      %900 = vset.pattern.permute.xlu0 0
      %901 = vperm.xlu0 %900, %v877
      %v902 = vpop.permute.xlu0 %901
      %905 = vset.pattern.permute.xlu0 0
      %906 = vperm.xlu0 %905, %v878
      %v907 = vpop.permute.xlu0 %906
      %910 = vset.pattern.permute.xlu0 0
      %911 = vperm.xlu0 %910, %v879
      %v912 = vpop.permute.xlu0 %911
      %915 = vset.pattern.permute.xlu0 0
      %916 = vperm.xlu0 %915, %v880
      %v917 = vpop.permute.xlu0 %916
      %920 = vset.pattern.permute.xlu0 0
      %921 = vperm.xlu0 %920, %v881
      %v922 = vpop.permute.xlu0 %921
      %v925 = vlaneseq
      %v926 = vshrl.u32 %v925, 7
      %v927 = vsub.s32 0, %v926
      %v928 = vrot.slane %v883, %v927
      %v930 = vmul.f32 %v887, %v928
      %v931 = vmul.f32 %v892, %v928
      %v932 = vmul.f32 %v897, %v928
      %v933 = vmul.f32 %v902, %v928
      %v934 = vmul.f32 %v907, %v928
      %v935 = vmul.f32 %v912, %v928
      %v936 = vmul.f32 %v917, %v928
      %v937 = vmul.f32 %v922, %v928
      %v938 = vadd.f32 %v866, %v930
      %v939 = vadd.f32 %v867, %v931
      %v940 = vadd.f32 %v868, %v932
      %v941 = vadd.f32 %v869, %v933
      %v942 = vadd.f32 %v870, %v934
      %v943 = vadd.f32 %v871, %v935
      %v944 = vadd.f32 %v872, %v936
      %v945 = vadd.f32 %v873, %v937
      %v946 = vld [vmem:[#allocation2 + $0x8] sm:$0xff]
      %v947 = vld [vmem:[#allocation2 + $0x10] sm:$0xff]
      %v948 = vld [vmem:[#allocation2 + $0x18] sm:$0xff]
      %v949 = vld [vmem:[#allocation2 + $0x20] sm:$0xff]
      %v950 = vld [vmem:[#allocation2 + $0x28] sm:$0xff]
      %v951 = vld [vmem:[#allocation2 + $0x30] sm:$0xff]
      %v952 = vld [vmem:[#allocation2 + $0x38] sm:$0xff]
      %v953 = vld [vmem:[#allocation2 + $0x40] sm:$0xff]
      %s954 = scalar_lea.vmem %s2, 8
      %v955 = vld [vmem:[%s954] sm:$0x1]
      %957 = vset.pattern.permute.xlu0 0
      %958 = vperm.xlu0 %957, %v946
      %v959 = vpop.permute.xlu0 %958
      %962 = vset.pattern.permute.xlu0 0
      %963 = vperm.xlu0 %962, %v947
      %v964 = vpop.permute.xlu0 %963
      %967 = vset.pattern.permute.xlu0 0
      %968 = vperm.xlu0 %967, %v948
      %v969 = vpop.permute.xlu0 %968
      %972 = vset.pattern.permute.xlu0 0
      %973 = vperm.xlu0 %972, %v949
      %v974 = vpop.permute.xlu0 %973
      %977 = vset.pattern.permute.xlu0 0
      %978 = vperm.xlu0 %977, %v950
      %v979 = vpop.permute.xlu0 %978
      %982 = vset.pattern.permute.xlu0 0
      %983 = vperm.xlu0 %982, %v951
      %v984 = vpop.permute.xlu0 %983
      %987 = vset.pattern.permute.xlu0 0
      %988 = vperm.xlu0 %987, %v952
      %v989 = vpop.permute.xlu0 %988
      %992 = vset.pattern.permute.xlu0 0
      %993 = vperm.xlu0 %992, %v953
      %v994 = vpop.permute.xlu0 %993
      %v997 = vlaneseq
      %v998 = vshrl.u32 %v997, 7
      %v999 = vsub.s32 0, %v998
      %v1000 = vrot.slane %v955, %v999
      %v1002 = vmul.f32 %v959, %v1000
      %v1003 = vmul.f32 %v964, %v1000
      %v1004 = vmul.f32 %v969, %v1000
      %v1005 = vmul.f32 %v974, %v1000
      %v1006 = vmul.f32 %v979, %v1000
      %v1007 = vmul.f32 %v984, %v1000
      %v1008 = vmul.f32 %v989, %v1000
      %v1009 = vmul.f32 %v994, %v1000
      %v1010 = vadd.f32 %v938, %v1002
      %v1011 = vadd.f32 %v939, %v1003
      %v1012 = vadd.f32 %v940, %v1004
      %v1013 = vadd.f32 %v941, %v1005
      %v1014 = vadd.f32 %v942, %v1006
      %v1015 = vadd.f32 %v943, %v1007
      %v1016 = vadd.f32 %v944, %v1008
      %v1017 = vadd.f32 %v945, %v1009
      %v1018 = vld [vmem:[#allocation2 + $0x9] sm:$0xff]
      %v1019 = vld [vmem:[#allocation2 + $0x11] sm:$0xff]
      %v1020 = vld [vmem:[#allocation2 + $0x19] sm:$0xff]
      %v1021 = vld [vmem:[#allocation2 + $0x21] sm:$0xff]
      %v1022 = vld [vmem:[#allocation2 + $0x29] sm:$0xff]
      %v1023 = vld [vmem:[#allocation2 + $0x31] sm:$0xff]
      %v1024 = vld [vmem:[#allocation2 + $0x39] sm:$0xff]
      %v1025 = vld [vmem:[#allocation2 + $0x41] sm:$0xff]
      %s1026 = scalar_lea.vmem %s2, 9
      %v1027 = vld [vmem:[%s1026] sm:$0x1]
      %1029 = vset.pattern.permute.xlu0 0
      %1030 = vperm.xlu0 %1029, %v1018
      %v1031 = vpop.permute.xlu0 %1030
      %1034 = vset.pattern.permute.xlu0 0
      %1035 = vperm.xlu0 %1034, %v1019
      %v1036 = vpop.permute.xlu0 %1035
      %1039 = vset.pattern.permute.xlu0 0
      %1040 = vperm.xlu0 %1039, %v1020
      %v1041 = vpop.permute.xlu0 %1040
      %1044 = vset.pattern.permute.xlu0 0
      %1045 = vperm.xlu0 %1044, %v1021
      %v1046 = vpop.permute.xlu0 %1045
      %1049 = vset.pattern.permute.xlu0 0
      %1050 = vperm.xlu0 %1049, %v1022
      %v1051 = vpop.permute.xlu0 %1050
      %1054 = vset.pattern.permute.xlu0 0
      %1055 = vperm.xlu0 %1054, %v1023
      %v1056 = vpop.permute.xlu0 %1055
      %1059 = vset.pattern.permute.xlu0 0
      %1060 = vperm.xlu0 %1059, %v1024
      %v1061 = vpop.permute.xlu0 %1060
      %1064 = vset.pattern.permute.xlu0 0
      %1065 = vperm.xlu0 %1064, %v1025
      %v1066 = vpop.permute.xlu0 %1065
      %v1069 = vlaneseq
      %v1070 = vshrl.u32 %v1069, 7
      %v1071 = vsub.s32 0, %v1070
      %v1072 = vrot.slane %v1027, %v1071
      %v1074 = vmul.f32 %v1031, %v1072
      %v1075 = vmul.f32 %v1036, %v1072
      %v1076 = vmul.f32 %v1041, %v1072
      %v1077 = vmul.f32 %v1046, %v1072
      %v1078 = vmul.f32 %v1051, %v1072
      %v1079 = vmul.f32 %v1056, %v1072
      %v1080 = vmul.f32 %v1061, %v1072
      %v1081 = vmul.f32 %v1066, %v1072
      %v1082 = vadd.f32 %v1010, %v1074
      %v1083 = vadd.f32 %v1011, %v1075
      %v1084 = vadd.f32 %v1012, %v1076
      %v1085 = vadd.f32 %v1013, %v1077
      %v1086 = vadd.f32 %v1014, %v1078
      %v1087 = vadd.f32 %v1015, %v1079
      %v1088 = vadd.f32 %v1016, %v1080
      %v1089 = vadd.f32 %v1017, %v1081
      %v1090 = vld [vmem:[#allocation2 + $0xa] sm:$0xff]
      %v1091 = vld [vmem:[#allocation2 + $0x12] sm:$0xff]
      %v1092 = vld [vmem:[#allocation2 + $0x1a] sm:$0xff]
      %v1093 = vld [vmem:[#allocation2 + $0x22] sm:$0xff]
      %v1094 = vld [vmem:[#allocation2 + $0x2a] sm:$0xff]
      %v1095 = vld [vmem:[#allocation2 + $0x32] sm:$0xff]
      %v1096 = vld [vmem:[#allocation2 + $0x3a] sm:$0xff]
      %v1097 = vld [vmem:[#allocation2 + $0x42] sm:$0xff]
      %s1098 = scalar_lea.vmem %s2, 10
      %v1099 = vld [vmem:[%s1098] sm:$0x1]
      %1101 = vset.pattern.permute.xlu0 0
      %1102 = vperm.xlu0 %1101, %v1090
      %v1103 = vpop.permute.xlu0 %1102
      %1106 = vset.pattern.permute.xlu0 0
      %1107 = vperm.xlu0 %1106, %v1091
      %v1108 = vpop.permute.xlu0 %1107
      %1111 = vset.pattern.permute.xlu0 0
      %1112 = vperm.xlu0 %1111, %v1092
      %v1113 = vpop.permute.xlu0 %1112
      %1116 = vset.pattern.permute.xlu0 0
      %1117 = vperm.xlu0 %1116, %v1093
      %v1118 = vpop.permute.xlu0 %1117
      %1121 = vset.pattern.permute.xlu0 0
      %1122 = vperm.xlu0 %1121, %v1094
      %v1123 = vpop.permute.xlu0 %1122
      %1126 = vset.pattern.permute.xlu0 0
      %1127 = vperm.xlu0 %1126, %v1095
      %v1128 = vpop.permute.xlu0 %1127
      %1131 = vset.pattern.permute.xlu0 0
      %1132 = vperm.xlu0 %1131, %v1096
      %v1133 = vpop.permute.xlu0 %1132
      %1136 = vset.pattern.permute.xlu0 0
      %1137 = vperm.xlu0 %1136, %v1097
      %v1138 = vpop.permute.xlu0 %1137
      %v1141 = vlaneseq
      %v1142 = vshrl.u32 %v1141, 7
      %v1143 = vsub.s32 0, %v1142
      %v1144 = vrot.slane %v1099, %v1143
      %v1146 = vmul.f32 %v1103, %v1144
      %v1147 = vmul.f32 %v1108, %v1144
      %v1148 = vmul.f32 %v1113, %v1144
      %v1149 = vmul.f32 %v1118, %v1144
      %v1150 = vmul.f32 %v1123, %v1144
      %v1151 = vmul.f32 %v1128, %v1144
      %v1152 = vmul.f32 %v1133, %v1144
      %v1153 = vmul.f32 %v1138, %v1144
      %v1154 = vadd.f32 %v1082, %v1146
      %v1155 = vadd.f32 %v1083, %v1147
      %v1156 = vadd.f32 %v1084, %v1148
      %v1157 = vadd.f32 %v1085, %v1149
      %v1158 = vadd.f32 %v1086, %v1150
      %v1159 = vadd.f32 %v1087, %v1151
      %v1160 = vadd.f32 %v1088, %v1152
      %v1161 = vadd.f32 %v1089, %v1153
      %v1162 = vld [vmem:[#allocation2 + $0xb] sm:$0xff]
      %v1163 = vld [vmem:[#allocation2 + $0x13] sm:$0xff]
      %v1164 = vld [vmem:[#allocation2 + $0x1b] sm:$0xff]
      %v1165 = vld [vmem:[#allocation2 + $0x23] sm:$0xff]
      %v1166 = vld [vmem:[#allocation2 + $0x2b] sm:$0xff]
      %v1167 = vld [vmem:[#allocation2 + $0x33] sm:$0xff]
      %v1168 = vld [vmem:[#allocation2 + $0x3b] sm:$0xff]
      %v1169 = vld [vmem:[#allocation2 + $0x43] sm:$0xff]
      %s1170 = scalar_lea.vmem %s2, 11
      %v1171 = vld [vmem:[%s1170] sm:$0x1]
      %1173 = vset.pattern.permute.xlu0 0
      %1174 = vperm.xlu0 %1173, %v1162
      %v1175 = vpop.permute.xlu0 %1174
      %1178 = vset.pattern.permute.xlu0 0
      %1179 = vperm.xlu0 %1178, %v1163
      %v1180 = vpop.permute.xlu0 %1179
      %1183 = vset.pattern.permute.xlu0 0
      %1184 = vperm.xlu0 %1183, %v1164
      %v1185 = vpop.permute.xlu0 %1184
      %1188 = vset.pattern.permute.xlu0 0
      %1189 = vperm.xlu0 %1188, %v1165
      %v1190 = vpop.permute.xlu0 %1189
      %1193 = vset.pattern.permute.xlu0 0
      %1194 = vperm.xlu0 %1193, %v1166
      %v1195 = vpop.permute.xlu0 %1194
      %1198 = vset.pattern.permute.xlu0 0
      %1199 = vperm.xlu0 %1198, %v1167
      %v1200 = vpop.permute.xlu0 %1199
      %1203 = vset.pattern.permute.xlu0 0
      %1204 = vperm.xlu0 %1203, %v1168
      %v1205 = vpop.permute.xlu0 %1204
      %1208 = vset.pattern.permute.xlu0 0
      %1209 = vperm.xlu0 %1208, %v1169
      %v1210 = vpop.permute.xlu0 %1209
      %v1213 = vlaneseq
      %v1214 = vshrl.u32 %v1213, 7
      %v1215 = vsub.s32 0, %v1214
      %v1216 = vrot.slane %v1171, %v1215
      %v1218 = vmul.f32 %v1175, %v1216
      %v1219 = vmul.f32 %v1180, %v1216
      %v1220 = vmul.f32 %v1185, %v1216
      %v1221 = vmul.f32 %v1190, %v1216
      %v1222 = vmul.f32 %v1195, %v1216
      %v1223 = vmul.f32 %v1200, %v1216
      %v1224 = vmul.f32 %v1205, %v1216
      %v1225 = vmul.f32 %v1210, %v1216
      %v1226 = vadd.f32 %v1154, %v1218
      %v1227 = vadd.f32 %v1155, %v1219
      %v1228 = vadd.f32 %v1156, %v1220
      %v1229 = vadd.f32 %v1157, %v1221
      %v1230 = vadd.f32 %v1158, %v1222
      %v1231 = vadd.f32 %v1159, %v1223
      %v1232 = vadd.f32 %v1160, %v1224
      %v1233 = vadd.f32 %v1161, %v1225
      %v1234 = vld [vmem:[#allocation2 + $0xc] sm:$0xff]
      %v1235 = vld [vmem:[#allocation2 + $0x14] sm:$0xff]
      %v1236 = vld [vmem:[#allocation2 + $0x1c] sm:$0xff]
      %v1237 = vld [vmem:[#allocation2 + $0x24] sm:$0xff]
      %v1238 = vld [vmem:[#allocation2 + $0x2c] sm:$0xff]
      %v1239 = vld [vmem:[#allocation2 + $0x34] sm:$0xff]
      %v1240 = vld [vmem:[#allocation2 + $0x3c] sm:$0xff]
      %v1241 = vld [vmem:[#allocation2 + $0x44] sm:$0xff]
      %s1242 = scalar_lea.vmem %s2, 12
      %v1243 = vld [vmem:[%s1242] sm:$0x1]
      %1245 = vset.pattern.permute.xlu0 0
      %1246 = vperm.xlu0 %1245, %v1234
      %v1247 = vpop.permute.xlu0 %1246
      %1250 = vset.pattern.permute.xlu0 0
      %1251 = vperm.xlu0 %1250, %v1235
      %v1252 = vpop.permute.xlu0 %1251
      %1255 = vset.pattern.permute.xlu0 0
      %1256 = vperm.xlu0 %1255, %v1236
      %v1257 = vpop.permute.xlu0 %1256
      %1260 = vset.pattern.permute.xlu0 0
      %1261 = vperm.xlu0 %1260, %v1237
      %v1262 = vpop.permute.xlu0 %1261
      %1265 = vset.pattern.permute.xlu0 0
      %1266 = vperm.xlu0 %1265, %v1238
      %v1267 = vpop.permute.xlu0 %1266
      %1270 = vset.pattern.permute.xlu0 0
      %1271 = vperm.xlu0 %1270, %v1239
      %v1272 = vpop.permute.xlu0 %1271
      %1275 = vset.pattern.permute.xlu0 0
      %1276 = vperm.xlu0 %1275, %v1240
      %v1277 = vpop.permute.xlu0 %1276
      %1280 = vset.pattern.permute.xlu0 0
      %1281 = vperm.xlu0 %1280, %v1241
      %v1282 = vpop.permute.xlu0 %1281
      %v1285 = vlaneseq
      %v1286 = vshrl.u32 %v1285, 7
      %v1287 = vsub.s32 0, %v1286
      %v1288 = vrot.slane %v1243, %v1287
      %v1290 = vmul.f32 %v1247, %v1288
      %v1291 = vmul.f32 %v1252, %v1288
      %v1292 = vmul.f32 %v1257, %v1288
      %v1293 = vmul.f32 %v1262, %v1288
      %v1294 = vmul.f32 %v1267, %v1288
      %v1295 = vmul.f32 %v1272, %v1288
      %v1296 = vmul.f32 %v1277, %v1288
      %v1297 = vmul.f32 %v1282, %v1288
      %v1298 = vadd.f32 %v1226, %v1290
      %v1299 = vadd.f32 %v1227, %v1291
      %v1300 = vadd.f32 %v1228, %v1292
      %v1301 = vadd.f32 %v1229, %v1293
      %v1302 = vadd.f32 %v1230, %v1294
      %v1303 = vadd.f32 %v1231, %v1295
      %v1304 = vadd.f32 %v1232, %v1296
      %v1305 = vadd.f32 %v1233, %v1297
      %v1306 = vld [vmem:[#allocation2 + $0xd] sm:$0xff]
      %v1307 = vld [vmem:[#allocation2 + $0x15] sm:$0xff]
      %v1308 = vld [vmem:[#allocation2 + $0x1d] sm:$0xff]
      %v1309 = vld [vmem:[#allocation2 + $0x25] sm:$0xff]
      %v1310 = vld [vmem:[#allocation2 + $0x2d] sm:$0xff]
      %v1311 = vld [vmem:[#allocation2 + $0x35] sm:$0xff]
      %v1312 = vld [vmem:[#allocation2 + $0x3d] sm:$0xff]
      %v1313 = vld [vmem:[#allocation2 + $0x45] sm:$0xff]
      %s1314 = scalar_lea.vmem %s2, 13
      %v1315 = vld [vmem:[%s1314] sm:$0x1]
      %1317 = vset.pattern.permute.xlu0 0
      %1318 = vperm.xlu0 %1317, %v1306
      %v1319 = vpop.permute.xlu0 %1318
      %1322 = vset.pattern.permute.xlu0 0
      %1323 = vperm.xlu0 %1322, %v1307
      %v1324 = vpop.permute.xlu0 %1323
      %1327 = vset.pattern.permute.xlu0 0
      %1328 = vperm.xlu0 %1327, %v1308
      %v1329 = vpop.permute.xlu0 %1328
      %1332 = vset.pattern.permute.xlu0 0
      %1333 = vperm.xlu0 %1332, %v1309
      %v1334 = vpop.permute.xlu0 %1333
      %1337 = vset.pattern.permute.xlu0 0
      %1338 = vperm.xlu0 %1337, %v1310
      %v1339 = vpop.permute.xlu0 %1338
      %1342 = vset.pattern.permute.xlu0 0
      %1343 = vperm.xlu0 %1342, %v1311
      %v1344 = vpop.permute.xlu0 %1343
      %1347 = vset.pattern.permute.xlu0 0
      %1348 = vperm.xlu0 %1347, %v1312
      %v1349 = vpop.permute.xlu0 %1348
      %1352 = vset.pattern.permute.xlu0 0
      %1353 = vperm.xlu0 %1352, %v1313
      %v1354 = vpop.permute.xlu0 %1353
      %v1357 = vlaneseq
      %v1358 = vshrl.u32 %v1357, 7
      %v1359 = vsub.s32 0, %v1358
      %v1360 = vrot.slane %v1315, %v1359
      %v1362 = vmul.f32 %v1319, %v1360
      %v1363 = vmul.f32 %v1324, %v1360
      %v1364 = vmul.f32 %v1329, %v1360
      %v1365 = vmul.f32 %v1334, %v1360
      %v1366 = vmul.f32 %v1339, %v1360
      %v1367 = vmul.f32 %v1344, %v1360
      %v1368 = vmul.f32 %v1349, %v1360
      %v1369 = vmul.f32 %v1354, %v1360
      %v1370 = vadd.f32 %v1298, %v1362
      %v1371 = vadd.f32 %v1299, %v1363
      %v1372 = vadd.f32 %v1300, %v1364
      %v1373 = vadd.f32 %v1301, %v1365
      %v1374 = vadd.f32 %v1302, %v1366
      %v1375 = vadd.f32 %v1303, %v1367
      %v1376 = vadd.f32 %v1304, %v1368
      %v1377 = vadd.f32 %v1305, %v1369
      %v1378 = vld [vmem:[#allocation2 + $0xe] sm:$0xff]
      %v1379 = vld [vmem:[#allocation2 + $0x16] sm:$0xff]
      %v1380 = vld [vmem:[#allocation2 + $0x1e] sm:$0xff]
      %v1381 = vld [vmem:[#allocation2 + $0x26] sm:$0xff]
      %v1382 = vld [vmem:[#allocation2 + $0x2e] sm:$0xff]
      %v1383 = vld [vmem:[#allocation2 + $0x36] sm:$0xff]
      %v1384 = vld [vmem:[#allocation2 + $0x3e] sm:$0xff]
      %v1385 = vld [vmem:[#allocation2 + $0x46] sm:$0xff]
      %s1386 = scalar_lea.vmem %s2, 14
      %v1387 = vld [vmem:[%s1386] sm:$0x1]
      %1389 = vset.pattern.permute.xlu0 0
      %1390 = vperm.xlu0 %1389, %v1378
      %v1391 = vpop.permute.xlu0 %1390
      %1394 = vset.pattern.permute.xlu0 0
      %1395 = vperm.xlu0 %1394, %v1379
      %v1396 = vpop.permute.xlu0 %1395
      %1399 = vset.pattern.permute.xlu0 0
      %1400 = vperm.xlu0 %1399, %v1380
      %v1401 = vpop.permute.xlu0 %1400
      %1404 = vset.pattern.permute.xlu0 0
      %1405 = vperm.xlu0 %1404, %v1381
      %v1406 = vpop.permute.xlu0 %1405
      %1409 = vset.pattern.permute.xlu0 0
      %1410 = vperm.xlu0 %1409, %v1382
      %v1411 = vpop.permute.xlu0 %1410
      %1414 = vset.pattern.permute.xlu0 0
      %1415 = vperm.xlu0 %1414, %v1383
      %v1416 = vpop.permute.xlu0 %1415
      %1419 = vset.pattern.permute.xlu0 0
      %1420 = vperm.xlu0 %1419, %v1384
      %v1421 = vpop.permute.xlu0 %1420
      %1424 = vset.pattern.permute.xlu0 0
      %1425 = vperm.xlu0 %1424, %v1385
      %v1426 = vpop.permute.xlu0 %1425
      %v1429 = vlaneseq
      %v1430 = vshrl.u32 %v1429, 7
      %v1431 = vsub.s32 0, %v1430
      %v1432 = vrot.slane %v1387, %v1431
      %v1434 = vmul.f32 %v1391, %v1432
      %v1435 = vmul.f32 %v1396, %v1432
      %v1436 = vmul.f32 %v1401, %v1432
      %v1437 = vmul.f32 %v1406, %v1432
      %v1438 = vmul.f32 %v1411, %v1432
      %v1439 = vmul.f32 %v1416, %v1432
      %v1440 = vmul.f32 %v1421, %v1432
      %v1441 = vmul.f32 %v1426, %v1432
      %v1442 = vadd.f32 %v1370, %v1434
      %v1443 = vadd.f32 %v1371, %v1435
      %v1444 = vadd.f32 %v1372, %v1436
      %v1445 = vadd.f32 %v1373, %v1437
      %v1446 = vadd.f32 %v1374, %v1438
      %v1447 = vadd.f32 %v1375, %v1439
      %v1448 = vadd.f32 %v1376, %v1440
      %v1449 = vadd.f32 %v1377, %v1441
      %v1450 = vld [vmem:[%s3] sm:$0x1]
      %v1452 = vlaneseq
      %v1453 = vshrl.u32 %v1452, 7
      %v1454 = vsub.s32 0, %v1453
      %v1455 = vrot.slane %v1450, %v1454
      %v1457 = vadd.f32 %v1442, %v1455
      %v1458 = vadd.f32 %v1443, %v1455
      %v1459 = vadd.f32 %v1444, %v1455
      %v1460 = vadd.f32 %v1445, %v1455
      %v1461 = vadd.f32 %v1446, %v1455
      %v1462 = vadd.f32 %v1447, %v1455
      %v1463 = vadd.f32 %v1448, %v1455
      %v1464 = vadd.f32 %v1449, %v1455
      %1465 = vst [vmem:[%s346] sm:$0xff] %v1457
      %1466 = vst [vmem:[%s346 + $0x8] sm:$0xff] %v1458
      %1467 = vst [vmem:[%s346 + $0x10] sm:$0xff] %v1459
      %1468 = vst [vmem:[%s346 + $0x18] sm:$0xff] %v1460
      %1469 = vst [vmem:[%s346 + $0x20] sm:$0xff] %v1461
      %1470 = vst [vmem:[%s346 + $0x28] sm:$0xff] %v1462
      %1471 = vst [vmem:[%s346 + $0x30] sm:$0xff] %v1463
      %1472 = vst [vmem:[%s346 + $0x38] sm:$0xff] %v1464
      %vm1473 = vcmp.gt.f32.partialorder %v1457, 0.0
      %vm1474 = vcmp.gt.f32.partialorder %v1458, 0.0
      %vm1475 = vcmp.gt.f32.partialorder %v1459, 0.0
      %vm1476 = vcmp.gt.f32.partialorder %v1460, 0.0
      %vm1477 = vcmp.gt.f32.partialorder %v1461, 0.0
      %vm1478 = vcmp.gt.f32.partialorder %v1462, 0.0
      %vm1479 = vcmp.gt.f32.partialorder %v1463, 0.0
      %vm1480 = vcmp.gt.f32.partialorder %v1464, 0.0
      %v1481 = vmul.f32 %v1457, 0.1
      %v1482 = vmul.f32 %v1458, 0.1
      %v1483 = vmul.f32 %v1459, 0.1
      %v1484 = vmul.f32 %v1460, 0.1
      %v1485 = vmul.f32 %v1461, 0.1
      %v1486 = vmul.f32 %v1462, 0.1
      %v1487 = vmul.f32 %v1463, 0.1
      %v1488 = vmul.f32 %v1464, 0.1
      %v1489 = vsel %vm1473, %v1457, %v1481
      %v1490 = vsel %vm1474, %v1458, %v1482
      %v1491 = vsel %vm1475, %v1459, %v1483
      %v1492 = vsel %vm1476, %v1460, %v1484
      %v1493 = vsel %vm1477, %v1461, %v1485
      %v1494 = vsel %vm1478, %v1462, %v1486
      %v1495 = vsel %vm1479, %v1463, %v1487
      %v1496 = vsel %vm1480, %v1464, %v1488
      %1497 = vst [vmem:[%s356] sm:$0xff] %v1489
      %1498 = vst [vmem:[%s356 + $0x8] sm:$0xff] %v1490
      %1499 = vst [vmem:[%s356 + $0x10] sm:$0xff] %v1491
      %1500 = vst [vmem:[%s356 + $0x18] sm:$0xff] %v1492
      %1501 = vst [vmem:[%s356 + $0x20] sm:$0xff] %v1493
      %1502 = vst [vmem:[%s356 + $0x28] sm:$0xff] %v1494
      %1503 = vst [vmem:[%s356 + $0x30] sm:$0xff] %v1495
      %1504 = vst [vmem:[%s356 + $0x38] sm:$0xff] %v1496
      %s1505 = smul.u32 8, %s22
      %p1506 = scmp.lt.s32.totalorder %s21, 1
      %s1507 = scalar_select %p1506, %s21, 1
      %p1508 = scmp.lt.s32.totalorder %s1505, 7
      %s1509 = scalar_select %p1508, %s1505, 7
      %s1510 = smul.addr %s1507, 8
      %s1511 = sadd.s32 %s1509, %s1510
      %s1512 = smul.addr %s1511, 8
      %s1513 = scalar_lea.vmem %s4, %s1512
      %s1514 = smul.u32 8, %s22
      %p1515 = scmp.lt.s32.totalorder %s21, 1
      %s1516 = scalar_select %p1515, %s21, 1
      %p1517 = scmp.lt.s32.totalorder %s1514, 7
      %s1518 = scalar_select %p1517, %s1514, 7
      %s1519 = smul.addr %s1516, 8
      %s1520 = sadd.s32 %s1518, %s1519
      %s1521 = smul.addr %s1520, 8
      %s1522 = scalar_lea.vmem %s5, %s1521
      // Predicated region
      $region37: #{_lambda_.8} parent=35 // pred_check
        %p1523 = pneg %p151
      $region38: #{_lambda_.8} parent=35 // pred_check_branch
        %1525 = sbr.rel (%p1523) target = $region40
      $region39: #{_lambda_.8} parent=35 // pred_region
        %s1526 = smul.u32 8, %s22
      $region40: #{_lambda_.8} parent=35 // pred_fallthru
        _
      // Predicated region
      $region41: #{_lambda_.8} parent=35 // pred_check
        %p1527 = pneg %p179
      $region42: #{_lambda_.8} parent=35 // pred_check_branch
        %1529 = sbr.rel (%p1527) target = $region44
      $region43: #{_lambda_.8} parent=35 // pred_region
        %s1530 = smul.u32 8, %s22
      $region44: #{_lambda_.8} parent=35 // pred_fallthru
        _
    $region36: #{_lambda_.8} parent=5 // pred_fallthru
      _
    %p1531 = scmp.le.s32.totalorder 2, %s12
    // Predicated region
    $region45: #{_lambda_.8} parent=5 // pred_check
      %p1532 = pneg %p1531
    $region46: #{_lambda_.8} parent=5 // pred_check_branch
      %1534 = sbr.rel (%p1532) target = $region48
    $region47: #{_lambda_.8} parent=5 // pred_region
      %s1535 = ssub.s32 %s12, 2
      // Predicated region
      $region49: #{_lambda_.8} parent=47 // pred_check
        %p1536 = pneg %p157
      $region50: #{_lambda_.8} parent=47 // pred_check_branch
        %1538 = sbr.rel (%p1536) target = $region52
      $region51: #{_lambda_.8} parent=47 // pred_region
        %s1539 = smul.u32 8, %s24
        %p1540 = scmp.lt.s32.totalorder %s23, 1
        %s1541 = scalar_select %p1540, %s23, 1
        %p1542 = scmp.lt.s32.totalorder %s1539, 7
        %s1543 = scalar_select %p1542, %s1539, 7
        %s1544 = smul.addr %s1541, 8
        %s1545 = sadd.s32 %s1543, %s1544
        %s1546 = smul.addr %s1545, 8
        %s1547 = scalar_lea.vmem %s4, %s1546
      $region52: #{_lambda_.8} parent=47 // pred_fallthru
        _
      // Predicated region
      $region53: #{_lambda_.8} parent=47 // pred_check
        %p1548 = pneg %p185
      $region54: #{_lambda_.8} parent=47 // pred_check_branch
        %1550 = sbr.rel (%p1548) target = $region56
      $region55: #{_lambda_.8} parent=47 // pred_region
        %s1551 = smul.u32 8, %s24
        %p1552 = scmp.lt.s32.totalorder %s23, 1
        %s1553 = scalar_select %p1552, %s23, 1
        %p1554 = scmp.lt.s32.totalorder %s1551, 7
        %s1555 = scalar_select %p1554, %s1551, 7
        %s1556 = smul.addr %s1553, 8
        %s1557 = sadd.s32 %s1555, %s1556
        %s1558 = smul.addr %s1557, 8
        %s1559 = scalar_lea.vmem %s5, %s1558
      $region56: #{_lambda_.8} parent=47 // pred_fallthru
        _
    $region48: #{_lambda_.8} parent=5 // pred_fallthru
      _
  $region6: #{_lambda_.8} parent=0 // loop_footer
    %s16 = sadd.s32 1, %s12
  $region7: #{_lambda_.8} parent=0 // loop_footer_branch
    %11 = sbr.rel target = $region3
  $region8: #{_lambda_.8} parent=0 // loop_exit
    _

// kernel: _lambda_.11
$region0: #{_lambda_.11}
  #allocation0 [shape = 'u32[]', space=smem, size = 0x4, offset = 0x4, fixed_abs, tag = 'smem constant byte address 0x4 - core index']
  #allocation1 [shape = 'u32[144,128]{1,0:T(1,128)}', space=vmem, size = 0x12000, scoped, tag = 'internal scratch']
  #allocation2 [shape = 'f32[32,512]{1,0:T(8,128)}', space=vmem, size = 0x10000, scoped, tag = 'scratch operand']
  %s0 = inlined_call_operand.vmem [shape: f32[2,32,512], index: 0, kind: input, shape index: {}, may-alias: {0,1}]
  %s1 = inlined_call_operand.vmem [shape: f32[2,32,512], index: 1, kind: input, shape index: {}, may-alias: {0,1}]
  %s2 = inlined_call_operand.vmem [shape: f32[1,512,128], index: 2, kind: input, shape index: {}]
  %s3 = inlined_call_operand.vmem [shape: f32[1,128], index: 3, kind: input, shape index: {}]
  %s4 = inlined_call_operand.vmem [shape: f32[2,16,128], index: 4, kind: output, shape index: {0}]
  %s5 = inlined_call_operand.vmem [shape: f32[2,16,128], index: 5, kind: output, shape index: {1}]
  %6 = xla_tuple %s4, %s5
  %s7 = sld [smem:[#allocation0]]
  $region57: #{_lambda_.11} parent=0
    _
  %s9 = ssub.s32 1, %s7
  %s10 = scalar_select 0, %s9, %s7
  loop: start=0, step=1, limit=4
  $region2: #{_lambda_.11} parent=0 // loop_pre_header
    _
  $region3: #{_lambda_.11} parent=0 // loop_header
    %s12 = sphi 0, %s16
    %p13 = scmp.ge.s32.totalorder %s12, 4
    %s19 = sphi 0, %s31
    %s20 = sphi 0, %s27
    %s21 = sphi 0, %s19
    %s22 = sphi 0, %s20
    %s23 = sphi 0, %s21
    %s24 = sphi 0, %s22
    %s36 = sphi 0, %s38
    %s39 = sphi 0, %s36
    %s40 = sphi 0, %s39
    %s56 = sphi 0, %s40
    %s66 = sphi 0, %s68
    %s69 = sphi 0, %s66
    %s70 = sphi 0, %s69
    %s86 = sphi 0, %s70
    %s90 = sphi 0, %s90
    %s92 = sphi 0, %s90
    %s93 = sphi 0, %s92
    %s107 = sphi 0, %s93
    %s111 = sphi 0, %s111
    %s113 = sphi 0, %s111
    %s114 = sphi 0, %s113
    %s128 = sphi 0, %s114
    %s136 = sphi 0, %s138
    %s139 = sphi 0, %s136
    %s140 = sphi 0, %s139
    %s156 = sphi 0, %s140
    %s164 = sphi 0, %s166
    %s167 = sphi 0, %s164
    %s168 = sphi 0, %s167
    %s184 = sphi 0, %s168
  $region4: #{_lambda_.11} parent=0 // loop_header_branch
    %15 = sbr.rel (%p13) target = $region8
  $region5: #{_lambda_.11} parent=0 // loop_body
    %s17 = ssub.s32 %s12, 1
    %s18 = ssub.s32 %s12, 2
    %s25 = sadd.s32 1, %s20
    %p26 = scmp.ge.s32.totalorder %s25, 1
    %s27 = scalar_select %p26, 0, %s25
    %s28 = sadd.s32 1, %s19
    %s29 = scalar_select %p26, %s28, %s19
    %p30 = scmp.ge.s32.totalorder %s29, 2
    %s31 = scalar_select %p30, 0, %s29
    %s32 = ssub.s32 %s19, %s31
    %s33 = ssub.s32 %s20, %s27
    %s34 = sor.u32 %s32, %s33
    %p35 = scmp.eq.s32.totalorder %s34, 0
    %s37 = sadd.s32 %s36, 1
    %s38 = scalar_select %p35, %s36, %s37
    %p41 = pneg %p35
    %p42 = scmp.eq.s32.totalorder %s12, 1
    %p43 = por %p41, %p42
    %p44 = scmp.ne.s32.totalorder %s36, %s39
    %p45 = scmp.eq.s32.totalorder %s12, 0
    %p46 = por %p44, %p45
    %p47 = scmp.ne.s32.totalorder %s36, %s39
    %p48 = scmp.eq.s32.totalorder %s17, 1
    %p49 = por %p47, %p48
    %p50 = scmp.ne.s32.totalorder %s39, %s40
    %p51 = scmp.eq.s32.totalorder %s17, 0
    %p52 = por %p50, %p51
    %p53 = scmp.ne.s32.totalorder %s39, %s40
    %p54 = scmp.eq.s32.totalorder %s18, 1
    %p55 = por %p53, %p54
    %p57 = scmp.ne.s32.totalorder %s40, %s56
    %p58 = scmp.eq.s32.totalorder %s18, 0
    %p59 = por %p57, %p58
    %s60 = sadd.s32 %s20, 1
    %s61 = sadd.s32 %s27, 1
    %s62 = ssub.s32 %s19, %s31
    %s63 = ssub.s32 %s60, %s61
    %s64 = sor.u32 %s62, %s63
    %p65 = scmp.eq.s32.totalorder %s64, 0
    %s67 = sadd.s32 %s66, 1
    %s68 = scalar_select %p65, %s66, %s67
    %p71 = pneg %p65
    %p72 = scmp.eq.s32.totalorder %s12, 1
    %p73 = por %p71, %p72
    %p74 = scmp.ne.s32.totalorder %s66, %s69
    %p75 = scmp.eq.s32.totalorder %s12, 0
    %p76 = por %p74, %p75
    %p77 = scmp.ne.s32.totalorder %s66, %s69
    %p78 = scmp.eq.s32.totalorder %s17, 1
    %p79 = por %p77, %p78
    %p80 = scmp.ne.s32.totalorder %s69, %s70
    %p81 = scmp.eq.s32.totalorder %s17, 0
    %p82 = por %p80, %p81
    %p83 = scmp.ne.s32.totalorder %s69, %s70
    %p84 = scmp.eq.s32.totalorder %s18, 1
    %p85 = por %p83, %p84
    %p87 = scmp.ne.s32.totalorder %s70, %s86
    %p88 = scmp.eq.s32.totalorder %s18, 0
    %p89 = por %p87, %p88
    %s91 = sadd.s32 %s90, 1
    %p94 = scmp.eq.s32.totalorder %s12, 1
    %p95 = scmp.ne.s32.totalorder %s90, %s92
    %p96 = scmp.eq.s32.totalorder %s12, 0
    %p97 = por %p95, %p96
    %p98 = scmp.ne.s32.totalorder %s90, %s92
    %p99 = scmp.eq.s32.totalorder %s17, 1
    %p100 = por %p98, %p99
    %p101 = scmp.ne.s32.totalorder %s92, %s93
    %p102 = scmp.eq.s32.totalorder %s17, 0
    %p103 = por %p101, %p102
    %p104 = scmp.ne.s32.totalorder %s92, %s93
    %p105 = scmp.eq.s32.totalorder %s18, 1
    %p106 = por %p104, %p105
    %p108 = scmp.ne.s32.totalorder %s93, %s107
    %p109 = scmp.eq.s32.totalorder %s18, 0
    %p110 = por %p108, %p109
    %s112 = sadd.s32 %s111, 1
    %p115 = scmp.eq.s32.totalorder %s12, 1
    %p116 = scmp.ne.s32.totalorder %s111, %s113
    %p117 = scmp.eq.s32.totalorder %s12, 0
    %p118 = por %p116, %p117
    %p119 = scmp.ne.s32.totalorder %s111, %s113
    %p120 = scmp.eq.s32.totalorder %s17, 1
    %p121 = por %p119, %p120
    %p122 = scmp.ne.s32.totalorder %s113, %s114
    %p123 = scmp.eq.s32.totalorder %s17, 0
    %p124 = por %p122, %p123
    %p125 = scmp.ne.s32.totalorder %s113, %s114
    %p126 = scmp.eq.s32.totalorder %s18, 1
    %p127 = por %p125, %p126
    %p129 = scmp.ne.s32.totalorder %s114, %s128
    %p130 = scmp.eq.s32.totalorder %s18, 0
    %p131 = por %p129, %p130
    %s132 = ssub.s32 %s19, %s31
    %s133 = ssub.s32 %s20, %s27
    %s134 = sor.u32 %s132, %s133
    %p135 = scmp.eq.s32.totalorder %s134, 0
    %s137 = sadd.s32 %s136, 1
    %s138 = scalar_select %p135, %s136, %s137
    %p141 = pneg %p135
    %p142 = scmp.eq.s32.totalorder %s12, 1
    %p143 = por %p141, %p142
    %p144 = scmp.ne.s32.totalorder %s136, %s139
    %p145 = scmp.eq.s32.totalorder %s12, 0
    %p146 = por %p144, %p145
    %p147 = scmp.ne.s32.totalorder %s136, %s139
    %p148 = scmp.eq.s32.totalorder %s17, 1
    %p149 = por %p147, %p148
    %p150 = scmp.ne.s32.totalorder %s139, %s140
    %p151 = scmp.eq.s32.totalorder %s17, 0
    %p152 = por %p150, %p151
    %p153 = scmp.ne.s32.totalorder %s139, %s140
    %p154 = scmp.eq.s32.totalorder %s18, 1
    %p155 = por %p153, %p154
    %p157 = scmp.ne.s32.totalorder %s140, %s156
    %p158 = scmp.eq.s32.totalorder %s18, 0
    %p159 = por %p157, %p158
    %s160 = ssub.s32 %s19, %s31
    %s161 = ssub.s32 %s20, %s27
    %s162 = sor.u32 %s160, %s161
    %p163 = scmp.eq.s32.totalorder %s162, 0
    %s165 = sadd.s32 %s164, 1
    %s166 = scalar_select %p163, %s164, %s165
    %p169 = pneg %p163
    %p170 = scmp.eq.s32.totalorder %s12, 1
    %p171 = por %p169, %p170
    %p172 = scmp.ne.s32.totalorder %s164, %s167
    %p173 = scmp.eq.s32.totalorder %s12, 0
    %p174 = por %p172, %p173
    %p175 = scmp.ne.s32.totalorder %s164, %s167
    %p176 = scmp.eq.s32.totalorder %s17, 1
    %p177 = por %p175, %p176
    %p178 = scmp.ne.s32.totalorder %s167, %s168
    %p179 = scmp.eq.s32.totalorder %s17, 0
    %p180 = por %p178, %p179
    %p181 = scmp.ne.s32.totalorder %s167, %s168
    %p182 = scmp.eq.s32.totalorder %s18, 1
    %p183 = por %p181, %p182
    %p185 = scmp.ne.s32.totalorder %s168, %s184
    %p186 = scmp.eq.s32.totalorder %s18, 0
    %p187 = por %p185, %p186
    %p188 = scmp.le.s32.totalorder 1, %s12
    %p189 = scmp.lt.s32.totalorder %s12, 3
    %p190 = pnand %p188, %p189
    %p191 = pneg %p190
    // Predicated region
    $region9: #{_lambda_.11} parent=5 // pred_check
      _
    $region10: #{_lambda_.11} parent=5 // pred_check_branch
      %193 = sbr.rel (%p190) target = $region12
    $region11: #{_lambda_.11} parent=5 // pred_region
      %s194 = ssub.s32 %s12, 1
      // Predicated region
      $region13: #{_lambda_.11} parent=11 // pred_check
        %p195 = pneg %p103
      $region14: #{_lambda_.11} parent=11 // pred_check_branch
        %197 = sbr.rel (%p195) target = $region16
      $region15: #{_lambda_.11} parent=11 // pred_region
        _
      $region16: #{_lambda_.11} parent=11 // pred_fallthru
        _
      // Predicated region
      $region17: #{_lambda_.11} parent=11 // pred_check
        %p198 = pneg %p124
      $region18: #{_lambda_.11} parent=11 // pred_check_branch
        %200 = sbr.rel (%p198) target = $region20
      $region19: #{_lambda_.11} parent=11 // pred_region
        _
      $region20: #{_lambda_.11} parent=11 // pred_fallthru
        _
    $region12: #{_lambda_.11} parent=5 // pred_fallthru
      _
    %p201 = scmp.lt.s32.totalorder %s12, 2
    // Predicated region
    $region21: #{_lambda_.11} parent=5 // pred_check
      %p202 = pneg %p201
    $region22: #{_lambda_.11} parent=5 // pred_check_branch
      %204 = sbr.rel (%p202) target = $region24
    $region23: #{_lambda_.11} parent=5 // pred_region
      // Predicated region
      $region25: #{_lambda_.11} parent=23 // pred_check
        %p205 = pneg %p46
      $region26: #{_lambda_.11} parent=23 // pred_check_branch
        %207 = sbr.rel (%p205) target = $region28
      $region27: #{_lambda_.11} parent=23 // pred_region
        %s208 = smul.u32 2, %s20
        %p209 = scmp.lt.s32.totalorder %s19, 1
        %s210 = scalar_select %p209, %s19, 1
        %p211 = scmp.lt.s32.totalorder %s208, 3
        %s212 = scalar_select %p211, %s208, 3
        %s213 = smul.addr %s212, 4
        %s214 = smul.addr %s210, 16
        %s215 = sadd.s32 %s213, %s214
        %s216 = smul.addr %s215, 8
        %s217 = scalar_lea.vmem %s0, %s216
        %s218 = smul.u32 2, %s20
      $region28: #{_lambda_.11} parent=23 // pred_fallthru
        _
      // Predicated region
      $region29: #{_lambda_.11} parent=23 // pred_check
        %p219 = pneg %p76
      $region30: #{_lambda_.11} parent=23 // pred_check_branch
        %221 = sbr.rel (%p219) target = $region32
      $region31: #{_lambda_.11} parent=23 // pred_region
        %s222 = sadd.s32 %s20, 1
        %s223 = smul.u32 2, %s222
        %p224 = scmp.lt.s32.totalorder %s19, 1
        %s225 = scalar_select %p224, %s19, 1
        %p226 = scmp.lt.s32.totalorder %s223, 3
        %s227 = scalar_select %p226, %s223, 3
        %s228 = smul.addr %s227, 4
        %s229 = smul.addr %s225, 16
        %s230 = sadd.s32 %s228, %s229
        %s231 = smul.addr %s230, 8
        %s232 = scalar_lea.vmem %s1, %s231
        %s233 = sadd.s32 %s20, 1
        %s234 = smul.u32 2, %s233
      $region32: #{_lambda_.11} parent=23 // pred_fallthru
        _
    $region24: #{_lambda_.11} parent=5 // pred_fallthru
      _
    %p235 = scmp.le.s32.totalorder 1, %s12
    %p236 = scmp.lt.s32.totalorder %s12, 3
    %p237 = pnand %p235, %p236
    %p238 = pneg %p237
    // Predicated region
    $region33: #{_lambda_.11} parent=5 // pred_check
      _
    $region34: #{_lambda_.11} parent=5 // pred_check_branch
      %240 = sbr.rel (%p237) target = $region36
    $region35: #{_lambda_.11} parent=5 // pred_region
      %s241 = ssub.s32 %s12, 1
      %s242 = smul.u32 2, %s22
      %p243 = scmp.lt.s32.totalorder %s21, 1
      %s244 = scalar_select %p243, %s21, 1
      %p245 = scmp.lt.s32.totalorder %s242, 3
      %s246 = scalar_select %p245, %s242, 3
      %s247 = smul.addr %s246, 4
      %s248 = smul.addr %s244, 16
      %s249 = sadd.s32 %s247, %s248
      %s250 = smul.addr %s249, 8
      %s251 = scalar_lea.vmem %s0, %s250
      %p252 = pneg %p52
      %p253 = pneg %p49
      %s254 = sadd.s32 %s22, 1
      %s255 = smul.u32 2, %s254
      %p256 = scmp.lt.s32.totalorder %s21, 1
      %s257 = scalar_select %p256, %s21, 1
      %p258 = scmp.lt.s32.totalorder %s255, 3
      %s259 = scalar_select %p258, %s255, 3
      %s260 = smul.addr %s259, 4
      %s261 = smul.addr %s257, 16
      %s262 = sadd.s32 %s260, %s261
      %s263 = smul.addr %s262, 8
      %s264 = scalar_lea.vmem %s1, %s263
      %p265 = pneg %p82
      %p266 = pneg %p79
      %p267 = pneg %p103
      %p268 = pneg %p100
      %p269 = pneg %p124
      %p270 = pneg %p121
      %p271 = pneg %p152
      %p272 = pneg %p149
      %s273 = smul.u32 2, %s22
      %p274 = scmp.lt.s32.totalorder %s21, 1
      %s275 = scalar_select %p274, %s21, 1
      %p276 = scmp.lt.s32.totalorder %s273, 1
      %s277 = scalar_select %p276, %s273, 1
      %s278 = smul.addr %s275, 2
      %s279 = sadd.s32 %s277, %s278
      %s280 = smul.addr %s279, 8
      %s281 = scalar_lea.vmem %s4, %s280
      %p282 = pneg %p180
      %p283 = pneg %p177
      %s284 = smul.u32 2, %s22
      %p285 = scmp.lt.s32.totalorder %s21, 1
      %s286 = scalar_select %p285, %s21, 1
      %p287 = scmp.lt.s32.totalorder %s284, 1
      %s288 = scalar_select %p287, %s284, 1
      %s289 = smul.addr %s286, 2
      %s290 = sadd.s32 %s288, %s289
      %s291 = smul.addr %s290, 8
      %s292 = scalar_lea.vmem %s5, %s291
      %s293 = smul.u32 2, %s22
      %p294 = scmp.lt.s32.totalorder %s21, 1
      %s295 = scalar_select %p294, %s21, 1
      %p296 = scmp.lt.s32.totalorder %s293, 3
      %s297 = scalar_select %p296, %s293, 3
      %s298 = smul.addr %s297, 4
      %s299 = smul.addr %s295, 16
      %s300 = sadd.s32 %s298, %s299
      %s301 = smul.addr %s300, 8
      %s302 = scalar_lea.vmem %s0, %s301
      %s303 = smul.u32 2, %s22
      %s304 = sadd.s32 %s22, 1
      %s305 = smul.u32 2, %s304
      %p306 = scmp.lt.s32.totalorder %s21, 1
      %s307 = scalar_select %p306, %s21, 1
      %p308 = scmp.lt.s32.totalorder %s305, 3
      %s309 = scalar_select %p308, %s305, 3
      %s310 = smul.addr %s309, 4
      %s311 = smul.addr %s307, 16
      %s312 = sadd.s32 %s310, %s311
      %s313 = smul.addr %s312, 8
      %s314 = scalar_lea.vmem %s1, %s313
      %s315 = sadd.s32 %s22, 1
      %s316 = smul.u32 2, %s315
      %s317 = smul.u32 2, %s22
      %p318 = scmp.lt.s32.totalorder %s21, 1
      %s319 = scalar_select %p318, %s21, 1
      %p320 = scmp.lt.s32.totalorder %s317, 1
      %s321 = scalar_select %p320, %s317, 1
      %s322 = smul.addr %s319, 2
      %s323 = sadd.s32 %s321, %s322
      %s324 = smul.addr %s323, 8
      %s325 = scalar_lea.vmem %s4, %s324
      %s326 = smul.u32 2, %s22
      %s327 = smul.u32 2, %s22
      %p328 = scmp.lt.s32.totalorder %s21, 1
      %s329 = scalar_select %p328, %s21, 1
      %p330 = scmp.lt.s32.totalorder %s327, 1
      %s331 = scalar_select %p330, %s327, 1
      %s332 = smul.addr %s329, 2
      %s333 = sadd.s32 %s331, %s332
      %s334 = smul.addr %s333, 8
      %s335 = scalar_lea.vmem %s5, %s334
      %s336 = smul.u32 2, %s22
      %v337 = vld [vmem:[%s302] sm:$0xff]
      %v338 = vld [vmem:[%s302 + $0x8] sm:$0xff]
      %v339 = vld [vmem:[%s302 + $0x10] sm:$0xff]
      %v340 = vld [vmem:[%s302 + $0x18] sm:$0xff]
      %v341 = vld [vmem:[%s302 + $0x20] sm:$0xff]
      %v342 = vld [vmem:[%s302 + $0x28] sm:$0xff]
      %v343 = vld [vmem:[%s302 + $0x30] sm:$0xff]
      %v344 = vld [vmem:[%s302 + $0x38] sm:$0xff]
      %v345 = vld [vmem:[%s2] sm:$0xff]
      %v346 = vld [vmem:[%s2 + $0x8] sm:$0xff]
      %v347 = vld [vmem:[%s2 + $0x10] sm:$0xff]
      %v348 = vld [vmem:[%s2 + $0x18] sm:$0xff]
      %v349 = vld [vmem:[%s2 + $0x20] sm:$0xff]
      %v350 = vld [vmem:[%s2 + $0x28] sm:$0xff]
      %v351 = vld [vmem:[%s2 + $0x30] sm:$0xff]
      %v352 = vld [vmem:[%s2 + $0x38] sm:$0xff]
      %v353 = vld [vmem:[%s2 + $0x40] sm:$0xff]
      %v354 = vld [vmem:[%s2 + $0x48] sm:$0xff]
      %v355 = vld [vmem:[%s2 + $0x50] sm:$0xff]
      %v356 = vld [vmem:[%s2 + $0x58] sm:$0xff]
      %v357 = vld [vmem:[%s2 + $0x60] sm:$0xff]
      %v358 = vld [vmem:[%s2 + $0x68] sm:$0xff]
      %v359 = vld [vmem:[%s2 + $0x70] sm:$0xff]
      %v360 = vld [vmem:[%s2 + $0x78] sm:$0xff]
      %v361 = vld [vmem:[%s2 + $0x80] sm:$0xff]
      %v362 = vld [vmem:[%s2 + $0x88] sm:$0xff]
      %v363 = vld [vmem:[%s2 + $0x90] sm:$0xff]
      %v364 = vld [vmem:[%s2 + $0x98] sm:$0xff]
      %v365 = vld [vmem:[%s2 + $0xa0] sm:$0xff]
      %v366 = vld [vmem:[%s2 + $0xa8] sm:$0xff]
      %v367 = vld [vmem:[%s2 + $0xb0] sm:$0xff]
      %v368 = vld [vmem:[%s2 + $0xb8] sm:$0xff]
      %v369 = vld [vmem:[%s2 + $0xc0] sm:$0xff]
      %v370 = vld [vmem:[%s2 + $0xc8] sm:$0xff]
      %v371 = vld [vmem:[%s2 + $0xd0] sm:$0xff]
      %v372 = vld [vmem:[%s2 + $0xd8] sm:$0xff]
      %v373 = vld [vmem:[%s2 + $0xe0] sm:$0xff]
      %v374 = vld [vmem:[%s2 + $0xe8] sm:$0xff]
      %v375 = vld [vmem:[%s2 + $0xf0] sm:$0xff]
      %v376 = vld [vmem:[%s2 + $0xf8] sm:$0xff]
      %v377 = vld [vmem:[%s2 + $0x100] sm:$0xff]
      %v378 = vld [vmem:[%s2 + $0x108] sm:$0xff]
      %v379 = vld [vmem:[%s2 + $0x110] sm:$0xff]
      %v380 = vld [vmem:[%s2 + $0x118] sm:$0xff]
      %v381 = vld [vmem:[%s2 + $0x120] sm:$0xff]
      %v382 = vld [vmem:[%s2 + $0x128] sm:$0xff]
      %v383 = vld [vmem:[%s2 + $0x130] sm:$0xff]
      %v384 = vld [vmem:[%s2 + $0x138] sm:$0xff]
      %v385 = vld [vmem:[%s2 + $0x140] sm:$0xff]
      %v386 = vld [vmem:[%s2 + $0x148] sm:$0xff]
      %v387 = vld [vmem:[%s2 + $0x150] sm:$0xff]
      %v388 = vld [vmem:[%s2 + $0x158] sm:$0xff]
      %v389 = vld [vmem:[%s2 + $0x160] sm:$0xff]
      %v390 = vld [vmem:[%s2 + $0x168] sm:$0xff]
      %v391 = vld [vmem:[%s2 + $0x170] sm:$0xff]
      %v392 = vld [vmem:[%s2 + $0x178] sm:$0xff]
      %v393 = vld [vmem:[%s2 + $0x180] sm:$0xff]
      %v394 = vld [vmem:[%s2 + $0x188] sm:$0xff]
      %v395 = vld [vmem:[%s2 + $0x190] sm:$0xff]
      %v396 = vld [vmem:[%s2 + $0x198] sm:$0xff]
      %v397 = vld [vmem:[%s2 + $0x1a0] sm:$0xff]
      %v398 = vld [vmem:[%s2 + $0x1a8] sm:$0xff]
      %v399 = vld [vmem:[%s2 + $0x1b0] sm:$0xff]
      %v400 = vld [vmem:[%s2 + $0x1b8] sm:$0xff]
      %v401 = vld [vmem:[%s2 + $0x1c0] sm:$0xff]
      %v402 = vld [vmem:[%s2 + $0x1c8] sm:$0xff]
      %v403 = vld [vmem:[%s2 + $0x1d0] sm:$0xff]
      %v404 = vld [vmem:[%s2 + $0x1d8] sm:$0xff]
      %v405 = vld [vmem:[%s2 + $0x1e0] sm:$0xff]
      %v406 = vld [vmem:[%s2 + $0x1e8] sm:$0xff]
      %v407 = vld [vmem:[%s2 + $0x1f0] sm:$0xff]
      %v408 = vld [vmem:[%s2 + $0x1f8] sm:$0xff]
      %v409 = vld [vmem:[%s3] sm:$0x1]
      %v411 = vlaneseq
      %v412 = vshrl.u32 %v411, 7
      %v413 = vsub.s32 0, %v412
      %v414 = vrot.slane %v409, %v413
      %416 = vmatprep.subr.mxu0 0.0
      %417 = vmatpush1.msra.mxu0 %v345
      %418 = vmatprep.subr.mxu0 0.0
      %419 = vmatpush1.msra.mxu0 %v346
      %420 = vmatprep.subr.mxu0 0.0
      %421 = vmatpush1.msra.mxu0 %v347
      %422 = vmatprep.subr.mxu0 0.0
      %423 = vmatpush1.msra.mxu0 %v348
      %424 = vmatprep.subr.mxu0 0.0
      %425 = vmatpush1.msra.mxu0 %v349
      %426 = vmatprep.subr.mxu0 0.0
      %427 = vmatpush1.msra.mxu0 %v350
      %428 = vmatprep.subr.mxu0 0.0
      %429 = vmatpush1.msra.mxu0 %v351
      %430 = vmatprep.subr.mxu0 0.0
      %431 = vmatpush1.msra.mxu0 %v352
      %432 = vmatprep.subr.mxu0 0.0
      %433 = vmatpush1.msra.mxu0 %v353
      %434 = vmatprep.subr.mxu0 0.0
      %435 = vmatpush1.msra.mxu0 %v354
      %436 = vmatprep.subr.mxu0 0.0
      %437 = vmatpush1.msra.mxu0 %v355
      %438 = vmatprep.subr.mxu0 0.0
      %439 = vmatpush1.msra.mxu0 %v356
      %440 = vmatprep.subr.mxu0 0.0
      %441 = vmatpush1.msra.mxu0 %v357
      %442 = vmatprep.subr.mxu0 0.0
      %443 = vmatpush1.msra.mxu0 %v358
      %444 = vmatprep.subr.mxu0 0.0
      %445 = vmatpush1.msra.mxu0 %v359
      %446 = vmatprep.subr.mxu0 0.0
      %447 = vmatpush1.msra.mxu0 %v360
      %448 = vmatprep.subr.mxu0 0.0
      %449 = vmatpush1.msra.mxu0 %v361
      %450 = vmatprep.subr.mxu0 0.0
      %451 = vmatpush1.msra.mxu0 %v362
      %452 = vmatprep.subr.mxu0 0.0
      %453 = vmatpush1.msra.mxu0 %v363
      %454 = vmatprep.subr.mxu0 0.0
      %455 = vmatpush1.msra.mxu0 %v364
      %456 = vmatprep.subr.mxu0 0.0
      %457 = vmatpush1.msra.mxu0 %v365
      %458 = vmatprep.subr.mxu0 0.0
      %459 = vmatpush1.msra.mxu0 %v366
      %460 = vmatprep.subr.mxu0 0.0
      %461 = vmatpush1.msra.mxu0 %v367
      %462 = vmatprep.subr.mxu0 0.0
      %463 = vmatpush1.msra.mxu0 %v368
      %464 = vmatprep.subr.mxu0 0.0
      %465 = vmatpush1.msra.mxu0 %v369
      %466 = vmatprep.subr.mxu0 0.0
      %467 = vmatpush1.msra.mxu0 %v370
      %468 = vmatprep.subr.mxu0 0.0
      %469 = vmatpush1.msra.mxu0 %v371
      %470 = vmatprep.subr.mxu0 0.0
      %471 = vmatpush1.msra.mxu0 %v372
      %472 = vmatprep.subr.mxu0 0.0
      %473 = vmatpush1.msra.mxu0 %v373
      %474 = vmatprep.subr.mxu0 0.0
      %475 = vmatpush1.msra.mxu0 %v374
      %476 = vmatprep.subr.mxu0 0.0
      %477 = vmatpush1.msra.mxu0 %v375
      %478 = vmatprep.subr.mxu0 0.0
      %479 = vmatpush1.msra.mxu0 %v376
      %480 = vmatprep.mubr.f32.mxu0 %v338
      %481 = vmatmul.mubr.f32.gmra.mrb[0].mxu0 %v337
      %v482 = vpop.f32.mrb[0].mxu0
      %v483 = vadd.f32 %v414, %v482
      %v484 = vpop.f32.mrb[0].mxu0
      %485 = vmatprep.mubr.f32.mxu0 %v342
      %486 = vmatmul.mubr.f32.gmra.mrb[0].mxu0 %v341
      %v487 = vpop.f32.mrb[0].mxu0
      %v488 = vadd.f32 %v414, %v487
      %v489 = vpop.f32.mrb[0].mxu0
      %490 = vdwg.mxu0
      %491 = vmatprep.subr.mxu0 0.0
      %492 = vmatpush1.msra.mxu0 %v377
      %493 = vmatprep.subr.mxu0 0.0
      %494 = vmatpush1.msra.mxu0 %v378
      %495 = vmatprep.subr.mxu0 0.0
      %496 = vmatpush1.msra.mxu0 %v379
      %497 = vmatprep.subr.mxu0 0.0
      %498 = vmatpush1.msra.mxu0 %v380
      %499 = vmatprep.subr.mxu0 0.0
      %500 = vmatpush1.msra.mxu0 %v381
      %501 = vmatprep.subr.mxu0 0.0
      %502 = vmatpush1.msra.mxu0 %v382
      %503 = vmatprep.subr.mxu0 0.0
      %504 = vmatpush1.msra.mxu0 %v383
      %505 = vmatprep.subr.mxu0 0.0
      %506 = vmatpush1.msra.mxu0 %v384
      %507 = vmatprep.subr.mxu0 0.0
      %508 = vmatpush1.msra.mxu0 %v385
      %509 = vmatprep.subr.mxu0 0.0
      %510 = vmatpush1.msra.mxu0 %v386
      %511 = vmatprep.subr.mxu0 0.0
      %512 = vmatpush1.msra.mxu0 %v387
      %513 = vmatprep.subr.mxu0 0.0
      %514 = vmatpush1.msra.mxu0 %v388
      %515 = vmatprep.subr.mxu0 0.0
      %516 = vmatpush1.msra.mxu0 %v389
      %517 = vmatprep.subr.mxu0 0.0
      %518 = vmatpush1.msra.mxu0 %v390
      %519 = vmatprep.subr.mxu0 0.0
      %520 = vmatpush1.msra.mxu0 %v391
      %521 = vmatprep.subr.mxu0 0.0
      %522 = vmatpush1.msra.mxu0 %v392
      %523 = vmatprep.subr.mxu0 0.0
      %524 = vmatpush1.msra.mxu0 %v393
      %525 = vmatprep.subr.mxu0 0.0
      %526 = vmatpush1.msra.mxu0 %v394
      %527 = vmatprep.subr.mxu0 0.0
      %528 = vmatpush1.msra.mxu0 %v395
      %529 = vmatprep.subr.mxu0 0.0
      %530 = vmatpush1.msra.mxu0 %v396
      %531 = vmatprep.subr.mxu0 0.0
      %532 = vmatpush1.msra.mxu0 %v397
      %533 = vmatprep.subr.mxu0 0.0
      %534 = vmatpush1.msra.mxu0 %v398
      %535 = vmatprep.subr.mxu0 0.0
      %536 = vmatpush1.msra.mxu0 %v399
      %537 = vmatprep.subr.mxu0 0.0
      %538 = vmatpush1.msra.mxu0 %v400
      %539 = vmatprep.subr.mxu0 0.0
      %540 = vmatpush1.msra.mxu0 %v401
      %541 = vmatprep.subr.mxu0 0.0
      %542 = vmatpush1.msra.mxu0 %v402
      %543 = vmatprep.subr.mxu0 0.0
      %544 = vmatpush1.msra.mxu0 %v403
      %545 = vmatprep.subr.mxu0 0.0
      %546 = vmatpush1.msra.mxu0 %v404
      %547 = vmatprep.subr.mxu0 0.0
      %548 = vmatpush1.msra.mxu0 %v405
      %549 = vmatprep.subr.mxu0 0.0
      %550 = vmatpush1.msra.mxu0 %v406
      %551 = vmatprep.subr.mxu0 0.0
      %552 = vmatpush1.msra.mxu0 %v407
      %553 = vmatprep.subr.mxu0 0.0
      %554 = vmatpush1.msra.mxu0 %v408
      %555 = vmatprep.mubr.f32.mxu0 %v340
      %556 = vmatmul.mubr.f32.gmra.mrb[0].mxu0 %v339
      %v557 = vpop.f32.mrb[0].mxu0
      %v558 = vadd.f32 %v483, %v557
      %v559 = vpop.f32.mrb[0].mxu0
      %560 = vmatprep.mubr.f32.mxu0 %v344
      %561 = vmatmul.mubr.f32.gmra.mrb[0].mxu0 %v343
      %v562 = vpop.f32.mrb[0].mxu0
      %v563 = vadd.f32 %v488, %v562
      %v564 = vpop.f32.mrb[0].mxu0
      %565 = vdwg.mxu0
      %566 = vst [vmem:[%s325] sm:$0xff] %v558
      %567 = vst [vmem:[%s325 + $0x8] sm:$0xff] %v563
      %vm568 = vcmp.gt.f32.partialorder %v558, 0.0
      %vm569 = vcmp.gt.f32.partialorder %v563, 0.0
      %v570 = vmul.f32 %v558, 0.1
      %v571 = vmul.f32 %v563, 0.1
      %v572 = vsel %vm568, %v558, %v570
      %v573 = vsel %vm569, %v563, %v571
      %574 = vst [vmem:[%s335] sm:$0xff] %v572
      %575 = vst [vmem:[%s335 + $0x8] sm:$0xff] %v573
      %s576 = smul.u32 2, %s22
      %p577 = scmp.lt.s32.totalorder %s21, 1
      %s578 = scalar_select %p577, %s21, 1
      %p579 = scmp.lt.s32.totalorder %s576, 1
      %s580 = scalar_select %p579, %s576, 1
      %s581 = smul.addr %s578, 2
      %s582 = sadd.s32 %s580, %s581
      %s583 = smul.addr %s582, 8
      %s584 = scalar_lea.vmem %s4, %s583
      %s585 = smul.u32 2, %s22
      %p586 = scmp.lt.s32.totalorder %s21, 1
      %s587 = scalar_select %p586, %s21, 1
      %p588 = scmp.lt.s32.totalorder %s585, 1
      %s589 = scalar_select %p588, %s585, 1
      %s590 = smul.addr %s587, 2
      %s591 = sadd.s32 %s589, %s590
      %s592 = smul.addr %s591, 8
      %s593 = scalar_lea.vmem %s5, %s592
      // Predicated region
      $region37: #{_lambda_.11} parent=35 // pred_check
        %p594 = pneg %p149
      $region38: #{_lambda_.11} parent=35 // pred_check_branch
        %596 = sbr.rel (%p594) target = $region40
      $region39: #{_lambda_.11} parent=35 // pred_region
        %s597 = smul.u32 2, %s22
      $region40: #{_lambda_.11} parent=35 // pred_fallthru
        _
      // Predicated region
      $region41: #{_lambda_.11} parent=35 // pred_check
        %p598 = pneg %p177
      $region42: #{_lambda_.11} parent=35 // pred_check_branch
        %600 = sbr.rel (%p598) target = $region44
      $region43: #{_lambda_.11} parent=35 // pred_region
        %s601 = smul.u32 2, %s22
      $region44: #{_lambda_.11} parent=35 // pred_fallthru
        _
    $region36: #{_lambda_.11} parent=5 // pred_fallthru
      _
    %p602 = scmp.le.s32.totalorder 2, %s12
    // Predicated region
    $region45: #{_lambda_.11} parent=5 // pred_check
      %p603 = pneg %p602
    $region46: #{_lambda_.11} parent=5 // pred_check_branch
      %605 = sbr.rel (%p603) target = $region48
    $region47: #{_lambda_.11} parent=5 // pred_region
      %s606 = ssub.s32 %s12, 2
      // Predicated region
      $region49: #{_lambda_.11} parent=47 // pred_check
        %p607 = pneg %p155
      $region50: #{_lambda_.11} parent=47 // pred_check_branch
        %609 = sbr.rel (%p607) target = $region52
      $region51: #{_lambda_.11} parent=47 // pred_region
        %s610 = smul.u32 2, %s24
        %p611 = scmp.lt.s32.totalorder %s23, 1
        %s612 = scalar_select %p611, %s23, 1
        %p613 = scmp.lt.s32.totalorder %s610, 1
        %s614 = scalar_select %p613, %s610, 1
        %s615 = smul.addr %s612, 2
        %s616 = sadd.s32 %s614, %s615
        %s617 = smul.addr %s616, 8
        %s618 = scalar_lea.vmem %s4, %s617
      $region52: #{_lambda_.11} parent=47 // pred_fallthru
        _
      // Predicated region
      $region53: #{_lambda_.11} parent=47 // pred_check
        %p619 = pneg %p183
      $region54: #{_lambda_.11} parent=47 // pred_check_branch
        %621 = sbr.rel (%p619) target = $region56
      $region55: #{_lambda_.11} parent=47 // pred_region
        %s622 = smul.u32 2, %s24
        %p623 = scmp.lt.s32.totalorder %s23, 1
        %s624 = scalar_select %p623, %s23, 1
        %p625 = scmp.lt.s32.totalorder %s622, 1
        %s626 = scalar_select %p625, %s622, 1
        %s627 = smul.addr %s624, 2
        %s628 = sadd.s32 %s626, %s627
        %s629 = smul.addr %s628, 8
        %s630 = scalar_lea.vmem %s5, %s629
      $region56: #{_lambda_.11} parent=47 // pred_fallthru
        _
    $region48: #{_lambda_.11} parent=5 // pred_fallthru
      _
  $region6: #{_lambda_.11} parent=0 // loop_footer
    %s16 = sadd.s32 1, %s12
  $region7: #{_lambda_.11} parent=0 // loop_footer_branch
    %11 = sbr.rel target = $region3
  $region8: #{_lambda_.11} parent=0 // loop_exit
    _

// kernel: _lambda_.13
$region0: #{_lambda_.13}
  #allocation0 [shape = 'u32[]', space=smem, size = 0x4, offset = 0x4, fixed_abs, tag = 'smem constant byte address 0x4 - core index']
  #allocation1 [shape = 'u32[144,128]{1,0:T(1,128)}', space=vmem, size = 0x12000, scoped, tag = 'internal scratch']
  #allocation2 [shape = 'f32[32,128]{1,0:T(8,128)}', space=vmem, size = 0x4000, scoped, tag = 'scratch operand']
  %s0 = inlined_call_operand.vmem [shape: f32[2,32,128], index: 0, kind: input, shape index: {}, may-alias: {0,1}]
  %s1 = inlined_call_operand.vmem [shape: f32[2,32,128], index: 1, kind: input, shape index: {}, may-alias: {0,1}]
  %s2 = inlined_call_operand.vmem [shape: f32[3,128,128], index: 2, kind: input, shape index: {}]
  %s3 = inlined_call_operand.vmem [shape: f32[1,128], index: 3, kind: input, shape index: {}]
  %s4 = inlined_call_operand.vmem [shape: f32[2,16,128], index: 4, kind: output, shape index: {0}]
  %s5 = inlined_call_operand.vmem [shape: f32[2,16,128], index: 5, kind: output, shape index: {1}]
  %6 = xla_tuple %s4, %s5
  %s7 = sld [smem:[#allocation0]]
  $region57: #{_lambda_.13} parent=0
    _
  %s9 = ssub.s32 1, %s7
  %s10 = scalar_select 0, %s9, %s7
  loop: start=0, step=1, limit=4
  $region2: #{_lambda_.13} parent=0 // loop_pre_header
    _
  $region3: #{_lambda_.13} parent=0 // loop_header
    %s12 = sphi 0, %s16
    %p13 = scmp.ge.s32.totalorder %s12, 4
    %s19 = sphi 0, %s31
    %s20 = sphi 0, %s27
    %s21 = sphi 0, %s19
    %s22 = sphi 0, %s20
    %s23 = sphi 0, %s21
    %s24 = sphi 0, %s22
    %s36 = sphi 0, %s38
    %s39 = sphi 0, %s36
    %s40 = sphi 0, %s39
    %s56 = sphi 0, %s40
    %s66 = sphi 0, %s68
    %s69 = sphi 0, %s66
    %s70 = sphi 0, %s69
    %s86 = sphi 0, %s70
    %s90 = sphi 0, %s90
    %s92 = sphi 0, %s90
    %s93 = sphi 0, %s92
    %s107 = sphi 0, %s93
    %s111 = sphi 0, %s111
    %s113 = sphi 0, %s111
    %s114 = sphi 0, %s113
    %s128 = sphi 0, %s114
    %s136 = sphi 0, %s138
    %s139 = sphi 0, %s136
    %s140 = sphi 0, %s139
    %s156 = sphi 0, %s140
    %s164 = sphi 0, %s166
    %s167 = sphi 0, %s164
    %s168 = sphi 0, %s167
    %s184 = sphi 0, %s168
  $region4: #{_lambda_.13} parent=0 // loop_header_branch
    %15 = sbr.rel (%p13) target = $region8
  $region5: #{_lambda_.13} parent=0 // loop_body
    %s17 = ssub.s32 %s12, 1
    %s18 = ssub.s32 %s12, 2
    %s25 = sadd.s32 1, %s20
    %p26 = scmp.ge.s32.totalorder %s25, 1
    %s27 = scalar_select %p26, 0, %s25
    %s28 = sadd.s32 1, %s19
    %s29 = scalar_select %p26, %s28, %s19
    %p30 = scmp.ge.s32.totalorder %s29, 2
    %s31 = scalar_select %p30, 0, %s29
    %s32 = ssub.s32 %s19, %s31
    %s33 = ssub.s32 %s20, %s27
    %s34 = sor.u32 %s32, %s33
    %p35 = scmp.eq.s32.totalorder %s34, 0
    %s37 = sadd.s32 %s36, 1
    %s38 = scalar_select %p35, %s36, %s37
    %p41 = pneg %p35
    %p42 = scmp.eq.s32.totalorder %s12, 1
    %p43 = por %p41, %p42
    %p44 = scmp.ne.s32.totalorder %s36, %s39
    %p45 = scmp.eq.s32.totalorder %s12, 0
    %p46 = por %p44, %p45
    %p47 = scmp.ne.s32.totalorder %s36, %s39
    %p48 = scmp.eq.s32.totalorder %s17, 1
    %p49 = por %p47, %p48
    %p50 = scmp.ne.s32.totalorder %s39, %s40
    %p51 = scmp.eq.s32.totalorder %s17, 0
    %p52 = por %p50, %p51
    %p53 = scmp.ne.s32.totalorder %s39, %s40
    %p54 = scmp.eq.s32.totalorder %s18, 1
    %p55 = por %p53, %p54
    %p57 = scmp.ne.s32.totalorder %s40, %s56
    %p58 = scmp.eq.s32.totalorder %s18, 0
    %p59 = por %p57, %p58
    %s60 = sadd.s32 %s20, 1
    %s61 = sadd.s32 %s27, 1
    %s62 = ssub.s32 %s19, %s31
    %s63 = ssub.s32 %s60, %s61
    %s64 = sor.u32 %s62, %s63
    %p65 = scmp.eq.s32.totalorder %s64, 0
    %s67 = sadd.s32 %s66, 1
    %s68 = scalar_select %p65, %s66, %s67
    %p71 = pneg %p65
    %p72 = scmp.eq.s32.totalorder %s12, 1
    %p73 = por %p71, %p72
    %p74 = scmp.ne.s32.totalorder %s66, %s69
    %p75 = scmp.eq.s32.totalorder %s12, 0
    %p76 = por %p74, %p75
    %p77 = scmp.ne.s32.totalorder %s66, %s69
    %p78 = scmp.eq.s32.totalorder %s17, 1
    %p79 = por %p77, %p78
    %p80 = scmp.ne.s32.totalorder %s69, %s70
    %p81 = scmp.eq.s32.totalorder %s17, 0
    %p82 = por %p80, %p81
    %p83 = scmp.ne.s32.totalorder %s69, %s70
    %p84 = scmp.eq.s32.totalorder %s18, 1
    %p85 = por %p83, %p84
    %p87 = scmp.ne.s32.totalorder %s70, %s86
    %p88 = scmp.eq.s32.totalorder %s18, 0
    %p89 = por %p87, %p88
    %s91 = sadd.s32 %s90, 1
    %p94 = scmp.eq.s32.totalorder %s12, 1
    %p95 = scmp.ne.s32.totalorder %s90, %s92
    %p96 = scmp.eq.s32.totalorder %s12, 0
    %p97 = por %p95, %p96
    %p98 = scmp.ne.s32.totalorder %s90, %s92
    %p99 = scmp.eq.s32.totalorder %s17, 1
    %p100 = por %p98, %p99
    %p101 = scmp.ne.s32.totalorder %s92, %s93
    %p102 = scmp.eq.s32.totalorder %s17, 0
    %p103 = por %p101, %p102
    %p104 = scmp.ne.s32.totalorder %s92, %s93
    %p105 = scmp.eq.s32.totalorder %s18, 1
    %p106 = por %p104, %p105
    %p108 = scmp.ne.s32.totalorder %s93, %s107
    %p109 = scmp.eq.s32.totalorder %s18, 0
    %p110 = por %p108, %p109
    %s112 = sadd.s32 %s111, 1
    %p115 = scmp.eq.s32.totalorder %s12, 1
    %p116 = scmp.ne.s32.totalorder %s111, %s113
    %p117 = scmp.eq.s32.totalorder %s12, 0
    %p118 = por %p116, %p117
    %p119 = scmp.ne.s32.totalorder %s111, %s113
    %p120 = scmp.eq.s32.totalorder %s17, 1
    %p121 = por %p119, %p120
    %p122 = scmp.ne.s32.totalorder %s113, %s114
    %p123 = scmp.eq.s32.totalorder %s17, 0
    %p124 = por %p122, %p123
    %p125 = scmp.ne.s32.totalorder %s113, %s114
    %p126 = scmp.eq.s32.totalorder %s18, 1
    %p127 = por %p125, %p126
    %p129 = scmp.ne.s32.totalorder %s114, %s128
    %p130 = scmp.eq.s32.totalorder %s18, 0
    %p131 = por %p129, %p130
    %s132 = ssub.s32 %s19, %s31
    %s133 = ssub.s32 %s20, %s27
    %s134 = sor.u32 %s132, %s133
    %p135 = scmp.eq.s32.totalorder %s134, 0
    %s137 = sadd.s32 %s136, 1
    %s138 = scalar_select %p135, %s136, %s137
    %p141 = pneg %p135
    %p142 = scmp.eq.s32.totalorder %s12, 1
    %p143 = por %p141, %p142
    %p144 = scmp.ne.s32.totalorder %s136, %s139
    %p145 = scmp.eq.s32.totalorder %s12, 0
    %p146 = por %p144, %p145
    %p147 = scmp.ne.s32.totalorder %s136, %s139
    %p148 = scmp.eq.s32.totalorder %s17, 1
    %p149 = por %p147, %p148
    %p150 = scmp.ne.s32.totalorder %s139, %s140
    %p151 = scmp.eq.s32.totalorder %s17, 0
    %p152 = por %p150, %p151
    %p153 = scmp.ne.s32.totalorder %s139, %s140
    %p154 = scmp.eq.s32.totalorder %s18, 1
    %p155 = por %p153, %p154
    %p157 = scmp.ne.s32.totalorder %s140, %s156
    %p158 = scmp.eq.s32.totalorder %s18, 0
    %p159 = por %p157, %p158
    %s160 = ssub.s32 %s19, %s31
    %s161 = ssub.s32 %s20, %s27
    %s162 = sor.u32 %s160, %s161
    %p163 = scmp.eq.s32.totalorder %s162, 0
    %s165 = sadd.s32 %s164, 1
    %s166 = scalar_select %p163, %s164, %s165
    %p169 = pneg %p163
    %p170 = scmp.eq.s32.totalorder %s12, 1
    %p171 = por %p169, %p170
    %p172 = scmp.ne.s32.totalorder %s164, %s167
    %p173 = scmp.eq.s32.totalorder %s12, 0
    %p174 = por %p172, %p173
    %p175 = scmp.ne.s32.totalorder %s164, %s167
    %p176 = scmp.eq.s32.totalorder %s17, 1
    %p177 = por %p175, %p176
    %p178 = scmp.ne.s32.totalorder %s167, %s168
    %p179 = scmp.eq.s32.totalorder %s17, 0
    %p180 = por %p178, %p179
    %p181 = scmp.ne.s32.totalorder %s167, %s168
    %p182 = scmp.eq.s32.totalorder %s18, 1
    %p183 = por %p181, %p182
    %p185 = scmp.ne.s32.totalorder %s168, %s184
    %p186 = scmp.eq.s32.totalorder %s18, 0
    %p187 = por %p185, %p186
    %p188 = scmp.le.s32.totalorder 1, %s12
    %p189 = scmp.lt.s32.totalorder %s12, 3
    %p190 = pnand %p188, %p189
    %p191 = pneg %p190
    // Predicated region
    $region9: #{_lambda_.13} parent=5 // pred_check
      _
    $region10: #{_lambda_.13} parent=5 // pred_check_branch
      %193 = sbr.rel (%p190) target = $region12
    $region11: #{_lambda_.13} parent=5 // pred_region
      %s194 = ssub.s32 %s12, 1
      // Predicated region
      $region13: #{_lambda_.13} parent=11 // pred_check
        %p195 = pneg %p103
      $region14: #{_lambda_.13} parent=11 // pred_check_branch
        %197 = sbr.rel (%p195) target = $region16
      $region15: #{_lambda_.13} parent=11 // pred_region
        _
      $region16: #{_lambda_.13} parent=11 // pred_fallthru
        _
      // Predicated region
      $region17: #{_lambda_.13} parent=11 // pred_check
        %p198 = pneg %p124
      $region18: #{_lambda_.13} parent=11 // pred_check_branch
        %200 = sbr.rel (%p198) target = $region20
      $region19: #{_lambda_.13} parent=11 // pred_region
        _
      $region20: #{_lambda_.13} parent=11 // pred_fallthru
        _
    $region12: #{_lambda_.13} parent=5 // pred_fallthru
      _
    %p201 = scmp.lt.s32.totalorder %s12, 2
    // Predicated region
    $region21: #{_lambda_.13} parent=5 // pred_check
      %p202 = pneg %p201
    $region22: #{_lambda_.13} parent=5 // pred_check_branch
      %204 = sbr.rel (%p202) target = $region24
    $region23: #{_lambda_.13} parent=5 // pred_region
      // Predicated region
      $region25: #{_lambda_.13} parent=23 // pred_check
        %p205 = pneg %p46
      $region26: #{_lambda_.13} parent=23 // pred_check_branch
        %207 = sbr.rel (%p205) target = $region28
      $region27: #{_lambda_.13} parent=23 // pred_region
        %s208 = smul.u32 2, %s20
        %p209 = scmp.lt.s32.totalorder %s19, 1
        %s210 = scalar_select %p209, %s19, 1
        %p211 = scmp.lt.s32.totalorder %s208, 3
        %s212 = scalar_select %p211, %s208, 3
        %s213 = smul.addr %s210, 4
        %s214 = sadd.s32 %s212, %s213
        %s215 = smul.addr %s214, 8
        %s216 = scalar_lea.vmem %s0, %s215
        %s217 = smul.u32 2, %s20
      $region28: #{_lambda_.13} parent=23 // pred_fallthru
        _
      // Predicated region
      $region29: #{_lambda_.13} parent=23 // pred_check
        %p218 = pneg %p76
      $region30: #{_lambda_.13} parent=23 // pred_check_branch
        %220 = sbr.rel (%p218) target = $region32
      $region31: #{_lambda_.13} parent=23 // pred_region
        %s221 = sadd.s32 %s20, 1
        %s222 = smul.u32 2, %s221
        %p223 = scmp.lt.s32.totalorder %s19, 1
        %s224 = scalar_select %p223, %s19, 1
        %p225 = scmp.lt.s32.totalorder %s222, 3
        %s226 = scalar_select %p225, %s222, 3
        %s227 = smul.addr %s224, 4
        %s228 = sadd.s32 %s226, %s227
        %s229 = smul.addr %s228, 8
        %s230 = scalar_lea.vmem %s1, %s229
        %s231 = sadd.s32 %s20, 1
        %s232 = smul.u32 2, %s231
      $region32: #{_lambda_.13} parent=23 // pred_fallthru
        _
    $region24: #{_lambda_.13} parent=5 // pred_fallthru
      _
    %p233 = scmp.le.s32.totalorder 1, %s12
    %p234 = scmp.lt.s32.totalorder %s12, 3
    %p235 = pnand %p233, %p234
    %p236 = pneg %p235
    // Predicated region
    $region33: #{_lambda_.13} parent=5 // pred_check
      _
    $region34: #{_lambda_.13} parent=5 // pred_check_branch
      %238 = sbr.rel (%p235) target = $region36
    $region35: #{_lambda_.13} parent=5 // pred_region
      %s239 = ssub.s32 %s12, 1
      %s240 = smul.u32 2, %s22
      %p241 = scmp.lt.s32.totalorder %s21, 1
      %s242 = scalar_select %p241, %s21, 1
      %p243 = scmp.lt.s32.totalorder %s240, 3
      %s244 = scalar_select %p243, %s240, 3
      %s245 = smul.addr %s242, 4
      %s246 = sadd.s32 %s244, %s245
      %s247 = smul.addr %s246, 8
      %s248 = scalar_lea.vmem %s0, %s247
      %p249 = pneg %p52
      %p250 = pneg %p49
      %s251 = sadd.s32 %s22, 1
      %s252 = smul.u32 2, %s251
      %p253 = scmp.lt.s32.totalorder %s21, 1
      %s254 = scalar_select %p253, %s21, 1
      %p255 = scmp.lt.s32.totalorder %s252, 3
      %s256 = scalar_select %p255, %s252, 3
      %s257 = smul.addr %s254, 4
      %s258 = sadd.s32 %s256, %s257
      %s259 = smul.addr %s258, 8
      %s260 = scalar_lea.vmem %s1, %s259
      %p261 = pneg %p82
      %p262 = pneg %p79
      %p263 = pneg %p103
      %p264 = pneg %p100
      %p265 = pneg %p124
      %p266 = pneg %p121
      %p267 = pneg %p152
      %p268 = pneg %p149
      %s269 = smul.u32 2, %s22
      %p270 = scmp.lt.s32.totalorder %s21, 1
      %s271 = scalar_select %p270, %s21, 1
      %p272 = scmp.lt.s32.totalorder %s269, 1
      %s273 = scalar_select %p272, %s269, 1
      %s274 = smul.addr %s271, 2
      %s275 = sadd.s32 %s273, %s274
      %s276 = smul.addr %s275, 8
      %s277 = scalar_lea.vmem %s4, %s276
      %p278 = pneg %p180
      %p279 = pneg %p177
      %s280 = smul.u32 2, %s22
      %p281 = scmp.lt.s32.totalorder %s21, 1
      %s282 = scalar_select %p281, %s21, 1
      %p283 = scmp.lt.s32.totalorder %s280, 1
      %s284 = scalar_select %p283, %s280, 1
      %s285 = smul.addr %s282, 2
      %s286 = sadd.s32 %s284, %s285
      %s287 = smul.addr %s286, 8
      %s288 = scalar_lea.vmem %s5, %s287
      %s289 = smul.u32 2, %s22
      %p290 = scmp.lt.s32.totalorder %s21, 1
      %s291 = scalar_select %p290, %s21, 1
      %p292 = scmp.lt.s32.totalorder %s289, 3
      %s293 = scalar_select %p292, %s289, 3
      %s294 = smul.addr %s291, 4
      %s295 = sadd.s32 %s293, %s294
      %s296 = smul.addr %s295, 8
      %s297 = scalar_lea.vmem %s0, %s296
      %s298 = smul.u32 2, %s22
      %s299 = sadd.s32 %s22, 1
      %s300 = smul.u32 2, %s299
      %p301 = scmp.lt.s32.totalorder %s21, 1
      %s302 = scalar_select %p301, %s21, 1
      %p303 = scmp.lt.s32.totalorder %s300, 3
      %s304 = scalar_select %p303, %s300, 3
      %s305 = smul.addr %s302, 4
      %s306 = sadd.s32 %s304, %s305
      %s307 = smul.addr %s306, 8
      %s308 = scalar_lea.vmem %s1, %s307
      %s309 = sadd.s32 %s22, 1
      %s310 = smul.u32 2, %s309
      %s311 = smul.u32 2, %s22
      %p312 = scmp.lt.s32.totalorder %s21, 1
      %s313 = scalar_select %p312, %s21, 1
      %p314 = scmp.lt.s32.totalorder %s311, 1
      %s315 = scalar_select %p314, %s311, 1
      %s316 = smul.addr %s313, 2
      %s317 = sadd.s32 %s315, %s316
      %s318 = smul.addr %s317, 8
      %s319 = scalar_lea.vmem %s4, %s318
      %s320 = smul.u32 2, %s22
      %s321 = smul.u32 2, %s22
      %p322 = scmp.lt.s32.totalorder %s21, 1
      %s323 = scalar_select %p322, %s21, 1
      %p324 = scmp.lt.s32.totalorder %s321, 1
      %s325 = scalar_select %p324, %s321, 1
      %s326 = smul.addr %s323, 2
      %s327 = sadd.s32 %s325, %s326
      %s328 = smul.addr %s327, 8
      %s329 = scalar_lea.vmem %s5, %s328
      %s330 = smul.u32 2, %s22
      %v331 = vld [vmem:[%s297] sm:$0xff]
      %v332 = vld [vmem:[%s297 + $0x8] sm:$0xff]
      %333 = vst [vmem:[#allocation2] sm:$0xff] %v331
      %334 = vst [vmem:[#allocation2 + $0x8] sm:$0xff] %v332
      %v335 = vld [vmem:[%s308] sm:$0xff]
      %v336 = vld [vmem:[%s308 + $0x8] sm:$0xff]
      %337 = vst [vmem:[#allocation2 + $0x10] sm:$0xff] %v335
      %338 = vst [vmem:[#allocation2 + $0x18] sm:$0xff] %v336
      %v339 = vld [vmem:[%s2] sm:$0xff]
      %v340 = vld [vmem:[%s2 + $0x8] sm:$0xff]
      %v341 = vld [vmem:[%s2 + $0x10] sm:$0xff]
      %v342 = vld [vmem:[%s2 + $0x18] sm:$0xff]
      %v343 = vld [vmem:[%s2 + $0x20] sm:$0xff]
      %v344 = vld [vmem:[%s2 + $0x28] sm:$0xff]
      %v345 = vld [vmem:[%s2 + $0x30] sm:$0xff]
      %v346 = vld [vmem:[%s2 + $0x38] sm:$0xff]
      %v347 = vld [vmem:[%s2 + $0x40] sm:$0xff]
      %v348 = vld [vmem:[%s2 + $0x48] sm:$0xff]
      %v349 = vld [vmem:[%s2 + $0x50] sm:$0xff]
      %v350 = vld [vmem:[%s2 + $0x58] sm:$0xff]
      %v351 = vld [vmem:[%s2 + $0x60] sm:$0xff]
      %v352 = vld [vmem:[%s2 + $0x68] sm:$0xff]
      %v353 = vld [vmem:[%s2 + $0x70] sm:$0xff]
      %v354 = vld [vmem:[%s2 + $0x78] sm:$0xff]
      %v355 = vld [vmem:[#allocation2 + $0x1] sm:$0xff]
      %v356 = vld [vmem:[#allocation2 + $0x9] sm:$0xff]
      %s357 = scalar_lea.vmem %s2, 128
      %v358 = vld [vmem:[%s357] sm:$0xff]
      %v359 = vld [vmem:[%s357 + $0x8] sm:$0xff]
      %v360 = vld [vmem:[%s357 + $0x10] sm:$0xff]
      %v361 = vld [vmem:[%s357 + $0x18] sm:$0xff]
      %v362 = vld [vmem:[%s357 + $0x20] sm:$0xff]
      %v363 = vld [vmem:[%s357 + $0x28] sm:$0xff]
      %v364 = vld [vmem:[%s357 + $0x30] sm:$0xff]
      %v365 = vld [vmem:[%s357 + $0x38] sm:$0xff]
      %v366 = vld [vmem:[%s357 + $0x40] sm:$0xff]
      %v367 = vld [vmem:[%s357 + $0x48] sm:$0xff]
      %v368 = vld [vmem:[%s357 + $0x50] sm:$0xff]
      %v369 = vld [vmem:[%s357 + $0x58] sm:$0xff]
      %v370 = vld [vmem:[%s357 + $0x60] sm:$0xff]
      %v371 = vld [vmem:[%s357 + $0x68] sm:$0xff]
      %v372 = vld [vmem:[%s357 + $0x70] sm:$0xff]
      %v373 = vld [vmem:[%s357 + $0x78] sm:$0xff]
      %374 = vmatprep.subr.mxu0 0.0
      %375 = vmatpush1.msra.mxu0 %v358
      %376 = vmatprep.subr.mxu0 0.0
      %377 = vmatpush1.msra.mxu0 %v359
      %378 = vmatprep.subr.mxu0 0.0
      %379 = vmatpush1.msra.mxu0 %v360
      %380 = vmatprep.subr.mxu0 0.0
      %381 = vmatpush1.msra.mxu0 %v361
      %382 = vmatprep.subr.mxu0 0.0
      %383 = vmatpush1.msra.mxu0 %v362
      %384 = vmatprep.subr.mxu0 0.0
      %385 = vmatpush1.msra.mxu0 %v363
      %386 = vmatprep.subr.mxu0 0.0
      %387 = vmatpush1.msra.mxu0 %v364
      %388 = vmatprep.subr.mxu0 0.0
      %389 = vmatpush1.msra.mxu0 %v365
      %390 = vmatprep.subr.mxu0 0.0
      %391 = vmatpush1.msra.mxu0 %v366
      %392 = vmatprep.subr.mxu0 0.0
      %393 = vmatpush1.msra.mxu0 %v367
      %394 = vmatprep.subr.mxu0 0.0
      %395 = vmatpush1.msra.mxu0 %v368
      %396 = vmatprep.subr.mxu0 0.0
      %397 = vmatpush1.msra.mxu0 %v369
      %398 = vmatprep.subr.mxu0 0.0
      %399 = vmatpush1.msra.mxu0 %v370
      %400 = vmatprep.subr.mxu0 0.0
      %401 = vmatpush1.msra.mxu0 %v371
      %402 = vmatprep.subr.mxu0 0.0
      %403 = vmatpush1.msra.mxu0 %v372
      %404 = vmatprep.subr.mxu0 0.0
      %405 = vmatpush1.msra.mxu0 %v373
      %406 = vmatprep.subr.mxu0 0.0
      %407 = vmatpush1.msra.mxu0 0.0
      %408 = vmatprep.subr.mxu0 0.0
      %409 = vmatpush1.msra.mxu0 0.0
      %410 = vmatprep.subr.mxu0 0.0
      %411 = vmatpush1.msra.mxu0 0.0
      %412 = vmatprep.subr.mxu0 0.0
      %413 = vmatpush1.msra.mxu0 0.0
      %414 = vmatprep.subr.mxu0 0.0
      %415 = vmatpush1.msra.mxu0 0.0
      %416 = vmatprep.subr.mxu0 0.0
      %417 = vmatpush1.msra.mxu0 0.0
      %418 = vmatprep.subr.mxu0 0.0
      %419 = vmatpush1.msra.mxu0 0.0
      %420 = vmatprep.subr.mxu0 0.0
      %421 = vmatpush1.msra.mxu0 0.0
      %422 = vmatprep.subr.mxu0 0.0
      %423 = vmatpush1.msra.mxu0 0.0
      %424 = vmatprep.subr.mxu0 0.0
      %425 = vmatpush1.msra.mxu0 0.0
      %426 = vmatprep.subr.mxu0 0.0
      %427 = vmatpush1.msra.mxu0 0.0
      %428 = vmatprep.subr.mxu0 0.0
      %429 = vmatpush1.msra.mxu0 0.0
      %430 = vmatprep.subr.mxu0 0.0
      %431 = vmatpush1.msra.mxu0 0.0
      %432 = vmatprep.subr.mxu0 0.0
      %433 = vmatpush1.msra.mxu0 0.0
      %434 = vmatprep.subr.mxu0 0.0
      %435 = vmatpush1.msra.mxu0 0.0
      %436 = vmatprep.subr.mxu0 0.0
      %437 = vmatpush1.msra.mxu0 0.0
      %438 = vmatprep.mubr.f32.mxu0 0.0
      %439 = vmatmul.mubr.f32.gmra.mrb[0].mxu0 %v355
      %v440 = vpop.f32.mrb[0].mxu0
      %v441 = vadd.f32 0.0, %v440
      %v442 = vpop.f32.mrb[0].mxu0
      %443 = vmatprep.mubr.f32.mxu0 0.0
      %444 = vmatmul.mubr.f32.gmra.mrb[0].mxu0 %v356
      %v445 = vpop.f32.mrb[0].mxu0
      %v446 = vadd.f32 0.0, %v445
      %v447 = vpop.f32.mrb[0].mxu0
      %448 = vdwg.mxu0
      %449 = vmatprep.subr.mxu0 0.0
      %450 = vmatpush1.msra.mxu0 %v339
      %451 = vmatprep.subr.mxu0 0.0
      %452 = vmatpush1.msra.mxu0 %v340
      %453 = vmatprep.subr.mxu0 0.0
      %454 = vmatpush1.msra.mxu0 %v341
      %455 = vmatprep.subr.mxu0 0.0
      %456 = vmatpush1.msra.mxu0 %v342
      %457 = vmatprep.subr.mxu0 0.0
      %458 = vmatpush1.msra.mxu0 %v343
      %459 = vmatprep.subr.mxu0 0.0
      %460 = vmatpush1.msra.mxu0 %v344
      %461 = vmatprep.subr.mxu0 0.0
      %462 = vmatpush1.msra.mxu0 %v345
      %463 = vmatprep.subr.mxu0 0.0
      %464 = vmatpush1.msra.mxu0 %v346
      %465 = vmatprep.subr.mxu0 0.0
      %466 = vmatpush1.msra.mxu0 %v347
      %467 = vmatprep.subr.mxu0 0.0
      %468 = vmatpush1.msra.mxu0 %v348
      %469 = vmatprep.subr.mxu0 0.0
      %470 = vmatpush1.msra.mxu0 %v349
      %471 = vmatprep.subr.mxu0 0.0
      %472 = vmatpush1.msra.mxu0 %v350
      %473 = vmatprep.subr.mxu0 0.0
      %474 = vmatpush1.msra.mxu0 %v351
      %475 = vmatprep.subr.mxu0 0.0
      %476 = vmatpush1.msra.mxu0 %v352
      %477 = vmatprep.subr.mxu0 0.0
      %478 = vmatpush1.msra.mxu0 %v353
      %479 = vmatprep.subr.mxu0 0.0
      %480 = vmatpush1.msra.mxu0 %v354
      %481 = vmatprep.subr.mxu0 0.0
      %482 = vmatpush1.msra.mxu0 0.0
      %483 = vmatprep.subr.mxu0 0.0
      %484 = vmatpush1.msra.mxu0 0.0
      %485 = vmatprep.subr.mxu0 0.0
      %486 = vmatpush1.msra.mxu0 0.0
      %487 = vmatprep.subr.mxu0 0.0
      %488 = vmatpush1.msra.mxu0 0.0
      %489 = vmatprep.subr.mxu0 0.0
      %490 = vmatpush1.msra.mxu0 0.0
      %491 = vmatprep.subr.mxu0 0.0
      %492 = vmatpush1.msra.mxu0 0.0
      %493 = vmatprep.subr.mxu0 0.0
      %494 = vmatpush1.msra.mxu0 0.0
      %495 = vmatprep.subr.mxu0 0.0
      %496 = vmatpush1.msra.mxu0 0.0
      %497 = vmatprep.subr.mxu0 0.0
      %498 = vmatpush1.msra.mxu0 0.0
      %499 = vmatprep.subr.mxu0 0.0
      %500 = vmatpush1.msra.mxu0 0.0
      %501 = vmatprep.subr.mxu0 0.0
      %502 = vmatpush1.msra.mxu0 0.0
      %503 = vmatprep.subr.mxu0 0.0
      %504 = vmatpush1.msra.mxu0 0.0
      %505 = vmatprep.subr.mxu0 0.0
      %506 = vmatpush1.msra.mxu0 0.0
      %507 = vmatprep.subr.mxu0 0.0
      %508 = vmatpush1.msra.mxu0 0.0
      %509 = vmatprep.subr.mxu0 0.0
      %510 = vmatpush1.msra.mxu0 0.0
      %511 = vmatprep.subr.mxu0 0.0
      %512 = vmatpush1.msra.mxu0 0.0
      %513 = vmatprep.mubr.f32.mxu0 0.0
      %514 = vmatmul.mubr.f32.gmra.mrb[0].mxu0 %v331
      %v515 = vpop.f32.mrb[0].mxu0
      %v516 = vadd.f32 %v441, %v515
      %v517 = vpop.f32.mrb[0].mxu0
      %518 = vmatprep.mubr.f32.mxu0 0.0
      %519 = vmatmul.mubr.f32.gmra.mrb[0].mxu0 %v332
      %v520 = vpop.f32.mrb[0].mxu0
      %v521 = vadd.f32 %v446, %v520
      %v522 = vpop.f32.mrb[0].mxu0
      %523 = vdwg.mxu0
      %v524 = vld [vmem:[#allocation2 + $0x2] sm:$0xff]
      %v525 = vld [vmem:[#allocation2 + $0xa] sm:$0xff]
      %s526 = scalar_lea.vmem %s2, 256
      %v527 = vld [vmem:[%s526] sm:$0xff]
      %v528 = vld [vmem:[%s526 + $0x8] sm:$0xff]
      %v529 = vld [vmem:[%s526 + $0x10] sm:$0xff]
      %v530 = vld [vmem:[%s526 + $0x18] sm:$0xff]
      %v531 = vld [vmem:[%s526 + $0x20] sm:$0xff]
      %v532 = vld [vmem:[%s526 + $0x28] sm:$0xff]
      %v533 = vld [vmem:[%s526 + $0x30] sm:$0xff]
      %v534 = vld [vmem:[%s526 + $0x38] sm:$0xff]
      %v535 = vld [vmem:[%s526 + $0x40] sm:$0xff]
      %v536 = vld [vmem:[%s526 + $0x48] sm:$0xff]
      %v537 = vld [vmem:[%s526 + $0x50] sm:$0xff]
      %v538 = vld [vmem:[%s526 + $0x58] sm:$0xff]
      %v539 = vld [vmem:[%s526 + $0x60] sm:$0xff]
      %v540 = vld [vmem:[%s526 + $0x68] sm:$0xff]
      %v541 = vld [vmem:[%s526 + $0x70] sm:$0xff]
      %v542 = vld [vmem:[%s526 + $0x78] sm:$0xff]
      %543 = vmatprep.subr.mxu0 0.0
      %544 = vmatpush1.msra.mxu0 %v527
      %545 = vmatprep.subr.mxu0 0.0
      %546 = vmatpush1.msra.mxu0 %v528
      %547 = vmatprep.subr.mxu0 0.0
      %548 = vmatpush1.msra.mxu0 %v529
      %549 = vmatprep.subr.mxu0 0.0
      %550 = vmatpush1.msra.mxu0 %v530
      %551 = vmatprep.subr.mxu0 0.0
      %552 = vmatpush1.msra.mxu0 %v531
      %553 = vmatprep.subr.mxu0 0.0
      %554 = vmatpush1.msra.mxu0 %v532
      %555 = vmatprep.subr.mxu0 0.0
      %556 = vmatpush1.msra.mxu0 %v533
      %557 = vmatprep.subr.mxu0 0.0
      %558 = vmatpush1.msra.mxu0 %v534
      %559 = vmatprep.subr.mxu0 0.0
      %560 = vmatpush1.msra.mxu0 %v535
      %561 = vmatprep.subr.mxu0 0.0
      %562 = vmatpush1.msra.mxu0 %v536
      %563 = vmatprep.subr.mxu0 0.0
      %564 = vmatpush1.msra.mxu0 %v537
      %565 = vmatprep.subr.mxu0 0.0
      %566 = vmatpush1.msra.mxu0 %v538
      %567 = vmatprep.subr.mxu0 0.0
      %568 = vmatpush1.msra.mxu0 %v539
      %569 = vmatprep.subr.mxu0 0.0
      %570 = vmatpush1.msra.mxu0 %v540
      %571 = vmatprep.subr.mxu0 0.0
      %572 = vmatpush1.msra.mxu0 %v541
      %573 = vmatprep.subr.mxu0 0.0
      %574 = vmatpush1.msra.mxu0 %v542
      %575 = vmatprep.subr.mxu0 0.0
      %576 = vmatpush1.msra.mxu0 0.0
      %577 = vmatprep.subr.mxu0 0.0
      %578 = vmatpush1.msra.mxu0 0.0
      %579 = vmatprep.subr.mxu0 0.0
      %580 = vmatpush1.msra.mxu0 0.0
      %581 = vmatprep.subr.mxu0 0.0
      %582 = vmatpush1.msra.mxu0 0.0
      %583 = vmatprep.subr.mxu0 0.0
      %584 = vmatpush1.msra.mxu0 0.0
      %585 = vmatprep.subr.mxu0 0.0
      %586 = vmatpush1.msra.mxu0 0.0
      %587 = vmatprep.subr.mxu0 0.0
      %588 = vmatpush1.msra.mxu0 0.0
      %589 = vmatprep.subr.mxu0 0.0
      %590 = vmatpush1.msra.mxu0 0.0
      %591 = vmatprep.subr.mxu0 0.0
      %592 = vmatpush1.msra.mxu0 0.0
      %593 = vmatprep.subr.mxu0 0.0
      %594 = vmatpush1.msra.mxu0 0.0
      %595 = vmatprep.subr.mxu0 0.0
      %596 = vmatpush1.msra.mxu0 0.0
      %597 = vmatprep.subr.mxu0 0.0
      %598 = vmatpush1.msra.mxu0 0.0
      %599 = vmatprep.subr.mxu0 0.0
      %600 = vmatpush1.msra.mxu0 0.0
      %601 = vmatprep.subr.mxu0 0.0
      %602 = vmatpush1.msra.mxu0 0.0
      %603 = vmatprep.subr.mxu0 0.0
      %604 = vmatpush1.msra.mxu0 0.0
      %605 = vmatprep.subr.mxu0 0.0
      %606 = vmatpush1.msra.mxu0 0.0
      %607 = vmatprep.mubr.f32.mxu0 0.0
      %608 = vmatmul.mubr.f32.gmra.mrb[0].mxu0 %v524
      %v609 = vpop.f32.mrb[0].mxu0
      %v610 = vadd.f32 0.0, %v609
      %v611 = vpop.f32.mrb[0].mxu0
      %612 = vmatprep.mubr.f32.mxu0 0.0
      %613 = vmatmul.mubr.f32.gmra.mrb[0].mxu0 %v525
      %v614 = vpop.f32.mrb[0].mxu0
      %v615 = vadd.f32 0.0, %v614
      %v616 = vpop.f32.mrb[0].mxu0
      %617 = vdwg.mxu0
      %v618 = vadd.f32 %v516, %v610
      %v619 = vadd.f32 %v521, %v615
      %v620 = vld [vmem:[%s3] sm:$0x1]
      %v622 = vlaneseq
      %v623 = vshrl.u32 %v622, 7
      %v624 = vsub.s32 0, %v623
      %v625 = vrot.slane %v620, %v624
      %v627 = vadd.f32 %v618, %v625
      %v628 = vadd.f32 %v619, %v625
      %629 = vst [vmem:[%s319] sm:$0xff] %v627
      %630 = vst [vmem:[%s319 + $0x8] sm:$0xff] %v628
      %vm631 = vcmp.gt.f32.partialorder %v627, 0.0
      %vm632 = vcmp.gt.f32.partialorder %v628, 0.0
      %v633 = vmul.f32 %v627, 0.1
      %v634 = vmul.f32 %v628, 0.1
      %v635 = vsel %vm631, %v627, %v633
      %v636 = vsel %vm632, %v628, %v634
      %637 = vst [vmem:[%s329] sm:$0xff] %v635
      %638 = vst [vmem:[%s329 + $0x8] sm:$0xff] %v636
      %s639 = smul.u32 2, %s22
      %p640 = scmp.lt.s32.totalorder %s21, 1
      %s641 = scalar_select %p640, %s21, 1
      %p642 = scmp.lt.s32.totalorder %s639, 1
      %s643 = scalar_select %p642, %s639, 1
      %s644 = smul.addr %s641, 2
      %s645 = sadd.s32 %s643, %s644
      %s646 = smul.addr %s645, 8
      %s647 = scalar_lea.vmem %s4, %s646
      %s648 = smul.u32 2, %s22
      %p649 = scmp.lt.s32.totalorder %s21, 1
      %s650 = scalar_select %p649, %s21, 1
      %p651 = scmp.lt.s32.totalorder %s648, 1
      %s652 = scalar_select %p651, %s648, 1
      %s653 = smul.addr %s650, 2
      %s654 = sadd.s32 %s652, %s653
      %s655 = smul.addr %s654, 8
      %s656 = scalar_lea.vmem %s5, %s655
      // Predicated region
      $region37: #{_lambda_.13} parent=35 // pred_check
        %p657 = pneg %p149
      $region38: #{_lambda_.13} parent=35 // pred_check_branch
        %659 = sbr.rel (%p657) target = $region40
      $region39: #{_lambda_.13} parent=35 // pred_region
        %s660 = smul.u32 2, %s22
      $region40: #{_lambda_.13} parent=35 // pred_fallthru
        _
      // Predicated region
      $region41: #{_lambda_.13} parent=35 // pred_check
        %p661 = pneg %p177
      $region42: #{_lambda_.13} parent=35 // pred_check_branch
        %663 = sbr.rel (%p661) target = $region44
      $region43: #{_lambda_.13} parent=35 // pred_region
        %s664 = smul.u32 2, %s22
      $region44: #{_lambda_.13} parent=35 // pred_fallthru
        _
    $region36: #{_lambda_.13} parent=5 // pred_fallthru
      _
    %p665 = scmp.le.s32.totalorder 2, %s12
    // Predicated region
    $region45: #{_lambda_.13} parent=5 // pred_check
      %p666 = pneg %p665
    $region46: #{_lambda_.13} parent=5 // pred_check_branch
      %668 = sbr.rel (%p666) target = $region48
    $region47: #{_lambda_.13} parent=5 // pred_region
      %s669 = ssub.s32 %s12, 2
      // Predicated region
      $region49: #{_lambda_.13} parent=47 // pred_check
        %p670 = pneg %p155
      $region50: #{_lambda_.13} parent=47 // pred_check_branch
        %672 = sbr.rel (%p670) target = $region52
      $region51: #{_lambda_.13} parent=47 // pred_region
        %s673 = smul.u32 2, %s24
        %p674 = scmp.lt.s32.totalorder %s23, 1
        %s675 = scalar_select %p674, %s23, 1
        %p676 = scmp.lt.s32.totalorder %s673, 1
        %s677 = scalar_select %p676, %s673, 1
        %s678 = smul.addr %s675, 2
        %s679 = sadd.s32 %s677, %s678
        %s680 = smul.addr %s679, 8
        %s681 = scalar_lea.vmem %s4, %s680
      $region52: #{_lambda_.13} parent=47 // pred_fallthru
        _
      // Predicated region
      $region53: #{_lambda_.13} parent=47 // pred_check
        %p682 = pneg %p183
      $region54: #{_lambda_.13} parent=47 // pred_check_branch
        %684 = sbr.rel (%p682) target = $region56
      $region55: #{_lambda_.13} parent=47 // pred_region
        %s685 = smul.u32 2, %s24
        %p686 = scmp.lt.s32.totalorder %s23, 1
        %s687 = scalar_select %p686, %s23, 1
        %p688 = scmp.lt.s32.totalorder %s685, 1
        %s689 = scalar_select %p688, %s685, 1
        %s690 = smul.addr %s687, 2
        %s691 = sadd.s32 %s689, %s690
        %s692 = smul.addr %s691, 8
        %s693 = scalar_lea.vmem %s5, %s692
      $region56: #{_lambda_.13} parent=47 // pred_fallthru
        _
    $region48: #{_lambda_.13} parent=5 // pred_fallthru
      _
  $region6: #{_lambda_.13} parent=0 // loop_footer
    %s16 = sadd.s32 1, %s12
  $region7: #{_lambda_.13} parent=0 // loop_footer_branch
    %11 = sbr.rel target = $region3
  $region8: #{_lambda_.13} parent=0 // loop_exit
    _

// kernel: _lambda_.15
$region0: #{_lambda_.15}
  #allocation0 [shape = 'u32[]', space=smem, size = 0x4, offset = 0x4, fixed_abs, tag = 'smem constant byte address 0x4 - core index']
  #allocation1 [shape = 'u32[144,128]{1,0:T(1,128)}', space=vmem, size = 0x12000, scoped, tag = 'internal scratch']
  #allocation2 [shape = 'f32[32,128]{1,0:T(8,128)}', space=vmem, size = 0x4000, scoped, tag = 'scratch operand']
  %s0 = inlined_call_operand.vmem [shape: f32[2,32,128], index: 0, kind: input, shape index: {}, may-alias: {0,1}]
  %s1 = inlined_call_operand.vmem [shape: f32[2,32,128], index: 1, kind: input, shape index: {}, may-alias: {0,1}]
  %s2 = inlined_call_operand.vmem [shape: f32[3,128,128], index: 2, kind: input, shape index: {}]
  %s3 = inlined_call_operand.vmem [shape: f32[1,128], index: 3, kind: input, shape index: {}]
  %s4 = inlined_call_operand.vmem [shape: f32[2,16,128], index: 4, kind: output, shape index: {}]
  %s5 = sld [smem:[#allocation0]]
  $region49: #{_lambda_.15} parent=0
    _
  %s7 = ssub.s32 1, %s5
  %s8 = scalar_select 0, %s7, %s5
  loop: start=0, step=1, limit=4
  $region2: #{_lambda_.15} parent=0 // loop_pre_header
    _
  $region3: #{_lambda_.15} parent=0 // loop_header
    %s10 = sphi 0, %s14
    %p11 = scmp.ge.s32.totalorder %s10, 4
    %s17 = sphi 0, %s29
    %s18 = sphi 0, %s25
    %s19 = sphi 0, %s17
    %s20 = sphi 0, %s18
    %s21 = sphi 0, %s19
    %s22 = sphi 0, %s20
    %s34 = sphi 0, %s36
    %s37 = sphi 0, %s34
    %s38 = sphi 0, %s37
    %s54 = sphi 0, %s38
    %s64 = sphi 0, %s66
    %s67 = sphi 0, %s64
    %s68 = sphi 0, %s67
    %s84 = sphi 0, %s68
    %s88 = sphi 0, %s88
    %s90 = sphi 0, %s88
    %s91 = sphi 0, %s90
    %s105 = sphi 0, %s91
    %s109 = sphi 0, %s109
    %s111 = sphi 0, %s109
    %s112 = sphi 0, %s111
    %s126 = sphi 0, %s112
    %s134 = sphi 0, %s136
    %s137 = sphi 0, %s134
    %s138 = sphi 0, %s137
    %s154 = sphi 0, %s138
  $region4: #{_lambda_.15} parent=0 // loop_header_branch
    %13 = sbr.rel (%p11) target = $region8
  $region5: #{_lambda_.15} parent=0 // loop_body
    %s15 = ssub.s32 %s10, 1
    %s16 = ssub.s32 %s10, 2
    %s23 = sadd.s32 1, %s18
    %p24 = scmp.ge.s32.totalorder %s23, 1
    %s25 = scalar_select %p24, 0, %s23
    %s26 = sadd.s32 1, %s17
    %s27 = scalar_select %p24, %s26, %s17
    %p28 = scmp.ge.s32.totalorder %s27, 2
    %s29 = scalar_select %p28, 0, %s27
    %s30 = ssub.s32 %s17, %s29
    %s31 = ssub.s32 %s18, %s25
    %s32 = sor.u32 %s30, %s31
    %p33 = scmp.eq.s32.totalorder %s32, 0
    %s35 = sadd.s32 %s34, 1
    %s36 = scalar_select %p33, %s34, %s35
    %p39 = pneg %p33
    %p40 = scmp.eq.s32.totalorder %s10, 1
    %p41 = por %p39, %p40
    %p42 = scmp.ne.s32.totalorder %s34, %s37
    %p43 = scmp.eq.s32.totalorder %s10, 0
    %p44 = por %p42, %p43
    %p45 = scmp.ne.s32.totalorder %s34, %s37
    %p46 = scmp.eq.s32.totalorder %s15, 1
    %p47 = por %p45, %p46
    %p48 = scmp.ne.s32.totalorder %s37, %s38
    %p49 = scmp.eq.s32.totalorder %s15, 0
    %p50 = por %p48, %p49
    %p51 = scmp.ne.s32.totalorder %s37, %s38
    %p52 = scmp.eq.s32.totalorder %s16, 1
    %p53 = por %p51, %p52
    %p55 = scmp.ne.s32.totalorder %s38, %s54
    %p56 = scmp.eq.s32.totalorder %s16, 0
    %p57 = por %p55, %p56
    %s58 = sadd.s32 %s18, 1
    %s59 = sadd.s32 %s25, 1
    %s60 = ssub.s32 %s17, %s29
    %s61 = ssub.s32 %s58, %s59
    %s62 = sor.u32 %s60, %s61
    %p63 = scmp.eq.s32.totalorder %s62, 0
    %s65 = sadd.s32 %s64, 1
    %s66 = scalar_select %p63, %s64, %s65
    %p69 = pneg %p63
    %p70 = scmp.eq.s32.totalorder %s10, 1
    %p71 = por %p69, %p70
    %p72 = scmp.ne.s32.totalorder %s64, %s67
    %p73 = scmp.eq.s32.totalorder %s10, 0
    %p74 = por %p72, %p73
    %p75 = scmp.ne.s32.totalorder %s64, %s67
    %p76 = scmp.eq.s32.totalorder %s15, 1
    %p77 = por %p75, %p76
    %p78 = scmp.ne.s32.totalorder %s67, %s68
    %p79 = scmp.eq.s32.totalorder %s15, 0
    %p80 = por %p78, %p79
    %p81 = scmp.ne.s32.totalorder %s67, %s68
    %p82 = scmp.eq.s32.totalorder %s16, 1
    %p83 = por %p81, %p82
    %p85 = scmp.ne.s32.totalorder %s68, %s84
    %p86 = scmp.eq.s32.totalorder %s16, 0
    %p87 = por %p85, %p86
    %s89 = sadd.s32 %s88, 1
    %p92 = scmp.eq.s32.totalorder %s10, 1
    %p93 = scmp.ne.s32.totalorder %s88, %s90
    %p94 = scmp.eq.s32.totalorder %s10, 0
    %p95 = por %p93, %p94
    %p96 = scmp.ne.s32.totalorder %s88, %s90
    %p97 = scmp.eq.s32.totalorder %s15, 1
    %p98 = por %p96, %p97
    %p99 = scmp.ne.s32.totalorder %s90, %s91
    %p100 = scmp.eq.s32.totalorder %s15, 0
    %p101 = por %p99, %p100
    %p102 = scmp.ne.s32.totalorder %s90, %s91
    %p103 = scmp.eq.s32.totalorder %s16, 1
    %p104 = por %p102, %p103
    %p106 = scmp.ne.s32.totalorder %s91, %s105
    %p107 = scmp.eq.s32.totalorder %s16, 0
    %p108 = por %p106, %p107
    %s110 = sadd.s32 %s109, 1
    %p113 = scmp.eq.s32.totalorder %s10, 1
    %p114 = scmp.ne.s32.totalorder %s109, %s111
    %p115 = scmp.eq.s32.totalorder %s10, 0
    %p116 = por %p114, %p115
    %p117 = scmp.ne.s32.totalorder %s109, %s111
    %p118 = scmp.eq.s32.totalorder %s15, 1
    %p119 = por %p117, %p118
    %p120 = scmp.ne.s32.totalorder %s111, %s112
    %p121 = scmp.eq.s32.totalorder %s15, 0
    %p122 = por %p120, %p121
    %p123 = scmp.ne.s32.totalorder %s111, %s112
    %p124 = scmp.eq.s32.totalorder %s16, 1
    %p125 = por %p123, %p124
    %p127 = scmp.ne.s32.totalorder %s112, %s126
    %p128 = scmp.eq.s32.totalorder %s16, 0
    %p129 = por %p127, %p128
    %s130 = ssub.s32 %s17, %s29
    %s131 = ssub.s32 %s18, %s25
    %s132 = sor.u32 %s130, %s131
    %p133 = scmp.eq.s32.totalorder %s132, 0
    %s135 = sadd.s32 %s134, 1
    %s136 = scalar_select %p133, %s134, %s135
    %p139 = pneg %p133
    %p140 = scmp.eq.s32.totalorder %s10, 1
    %p141 = por %p139, %p140
    %p142 = scmp.ne.s32.totalorder %s134, %s137
    %p143 = scmp.eq.s32.totalorder %s10, 0
    %p144 = por %p142, %p143
    %p145 = scmp.ne.s32.totalorder %s134, %s137
    %p146 = scmp.eq.s32.totalorder %s15, 1
    %p147 = por %p145, %p146
    %p148 = scmp.ne.s32.totalorder %s137, %s138
    %p149 = scmp.eq.s32.totalorder %s15, 0
    %p150 = por %p148, %p149
    %p151 = scmp.ne.s32.totalorder %s137, %s138
    %p152 = scmp.eq.s32.totalorder %s16, 1
    %p153 = por %p151, %p152
    %p155 = scmp.ne.s32.totalorder %s138, %s154
    %p156 = scmp.eq.s32.totalorder %s16, 0
    %p157 = por %p155, %p156
    %p158 = scmp.le.s32.totalorder 1, %s10
    %p159 = scmp.lt.s32.totalorder %s10, 3
    %p160 = pnand %p158, %p159
    %p161 = pneg %p160
    // Predicated region
    $region9: #{_lambda_.15} parent=5 // pred_check
      _
    $region10: #{_lambda_.15} parent=5 // pred_check_branch
      %163 = sbr.rel (%p160) target = $region12
    $region11: #{_lambda_.15} parent=5 // pred_region
      %s164 = ssub.s32 %s10, 1
      // Predicated region
      $region13: #{_lambda_.15} parent=11 // pred_check
        %p165 = pneg %p101
      $region14: #{_lambda_.15} parent=11 // pred_check_branch
        %167 = sbr.rel (%p165) target = $region16
      $region15: #{_lambda_.15} parent=11 // pred_region
        _
      $region16: #{_lambda_.15} parent=11 // pred_fallthru
        _
      // Predicated region
      $region17: #{_lambda_.15} parent=11 // pred_check
        %p168 = pneg %p122
      $region18: #{_lambda_.15} parent=11 // pred_check_branch
        %170 = sbr.rel (%p168) target = $region20
      $region19: #{_lambda_.15} parent=11 // pred_region
        _
      $region20: #{_lambda_.15} parent=11 // pred_fallthru
        _
    $region12: #{_lambda_.15} parent=5 // pred_fallthru
      _
    %p171 = scmp.lt.s32.totalorder %s10, 2
    // Predicated region
    $region21: #{_lambda_.15} parent=5 // pred_check
      %p172 = pneg %p171
    $region22: #{_lambda_.15} parent=5 // pred_check_branch
      %174 = sbr.rel (%p172) target = $region24
    $region23: #{_lambda_.15} parent=5 // pred_region
      // Predicated region
      $region25: #{_lambda_.15} parent=23 // pred_check
        %p175 = pneg %p44
      $region26: #{_lambda_.15} parent=23 // pred_check_branch
        %177 = sbr.rel (%p175) target = $region28
      $region27: #{_lambda_.15} parent=23 // pred_region
        %s178 = smul.u32 2, %s18
        %p179 = scmp.lt.s32.totalorder %s17, 1
        %s180 = scalar_select %p179, %s17, 1
        %p181 = scmp.lt.s32.totalorder %s178, 3
        %s182 = scalar_select %p181, %s178, 3
        %s183 = smul.addr %s180, 4
        %s184 = sadd.s32 %s182, %s183
        %s185 = smul.addr %s184, 8
        %s186 = scalar_lea.vmem %s0, %s185
        %s187 = smul.u32 2, %s18
      $region28: #{_lambda_.15} parent=23 // pred_fallthru
        _
      // Predicated region
      $region29: #{_lambda_.15} parent=23 // pred_check
        %p188 = pneg %p74
      $region30: #{_lambda_.15} parent=23 // pred_check_branch
        %190 = sbr.rel (%p188) target = $region32
      $region31: #{_lambda_.15} parent=23 // pred_region
        %s191 = sadd.s32 %s18, 1
        %s192 = smul.u32 2, %s191
        %p193 = scmp.lt.s32.totalorder %s17, 1
        %s194 = scalar_select %p193, %s17, 1
        %p195 = scmp.lt.s32.totalorder %s192, 3
        %s196 = scalar_select %p195, %s192, 3
        %s197 = smul.addr %s194, 4
        %s198 = sadd.s32 %s196, %s197
        %s199 = smul.addr %s198, 8
        %s200 = scalar_lea.vmem %s1, %s199
        %s201 = sadd.s32 %s18, 1
        %s202 = smul.u32 2, %s201
      $region32: #{_lambda_.15} parent=23 // pred_fallthru
        _
    $region24: #{_lambda_.15} parent=5 // pred_fallthru
      _
    %p203 = scmp.le.s32.totalorder 1, %s10
    %p204 = scmp.lt.s32.totalorder %s10, 3
    %p205 = pnand %p203, %p204
    %p206 = pneg %p205
    // Predicated region
    $region33: #{_lambda_.15} parent=5 // pred_check
      _
    $region34: #{_lambda_.15} parent=5 // pred_check_branch
      %208 = sbr.rel (%p205) target = $region36
    $region35: #{_lambda_.15} parent=5 // pred_region
      %s209 = ssub.s32 %s10, 1
      %s210 = smul.u32 2, %s20
      %p211 = scmp.lt.s32.totalorder %s19, 1
      %s212 = scalar_select %p211, %s19, 1
      %p213 = scmp.lt.s32.totalorder %s210, 3
      %s214 = scalar_select %p213, %s210, 3
      %s215 = smul.addr %s212, 4
      %s216 = sadd.s32 %s214, %s215
      %s217 = smul.addr %s216, 8
      %s218 = scalar_lea.vmem %s0, %s217
      %p219 = pneg %p50
      %p220 = pneg %p47
      %s221 = sadd.s32 %s20, 1
      %s222 = smul.u32 2, %s221
      %p223 = scmp.lt.s32.totalorder %s19, 1
      %s224 = scalar_select %p223, %s19, 1
      %p225 = scmp.lt.s32.totalorder %s222, 3
      %s226 = scalar_select %p225, %s222, 3
      %s227 = smul.addr %s224, 4
      %s228 = sadd.s32 %s226, %s227
      %s229 = smul.addr %s228, 8
      %s230 = scalar_lea.vmem %s1, %s229
      %p231 = pneg %p80
      %p232 = pneg %p77
      %p233 = pneg %p101
      %p234 = pneg %p98
      %p235 = pneg %p122
      %p236 = pneg %p119
      %p237 = pneg %p150
      %p238 = pneg %p147
      %s239 = smul.u32 2, %s20
      %p240 = scmp.lt.s32.totalorder %s19, 1
      %s241 = scalar_select %p240, %s19, 1
      %p242 = scmp.lt.s32.totalorder %s239, 1
      %s243 = scalar_select %p242, %s239, 1
      %s244 = smul.addr %s241, 2
      %s245 = sadd.s32 %s243, %s244
      %s246 = smul.addr %s245, 8
      %s247 = scalar_lea.vmem %s4, %s246
      %s248 = smul.u32 2, %s20
      %p249 = scmp.lt.s32.totalorder %s19, 1
      %s250 = scalar_select %p249, %s19, 1
      %p251 = scmp.lt.s32.totalorder %s248, 3
      %s252 = scalar_select %p251, %s248, 3
      %s253 = smul.addr %s250, 4
      %s254 = sadd.s32 %s252, %s253
      %s255 = smul.addr %s254, 8
      %s256 = scalar_lea.vmem %s0, %s255
      %s257 = smul.u32 2, %s20
      %s258 = sadd.s32 %s20, 1
      %s259 = smul.u32 2, %s258
      %p260 = scmp.lt.s32.totalorder %s19, 1
      %s261 = scalar_select %p260, %s19, 1
      %p262 = scmp.lt.s32.totalorder %s259, 3
      %s263 = scalar_select %p262, %s259, 3
      %s264 = smul.addr %s261, 4
      %s265 = sadd.s32 %s263, %s264
      %s266 = smul.addr %s265, 8
      %s267 = scalar_lea.vmem %s1, %s266
      %s268 = sadd.s32 %s20, 1
      %s269 = smul.u32 2, %s268
      %s270 = smul.u32 2, %s20
      %p271 = scmp.lt.s32.totalorder %s19, 1
      %s272 = scalar_select %p271, %s19, 1
      %p273 = scmp.lt.s32.totalorder %s270, 1
      %s274 = scalar_select %p273, %s270, 1
      %s275 = smul.addr %s272, 2
      %s276 = sadd.s32 %s274, %s275
      %s277 = smul.addr %s276, 8
      %s278 = scalar_lea.vmem %s4, %s277
      %s279 = smul.u32 2, %s20
      %v280 = vld [vmem:[%s256] sm:$0xff]
      %v281 = vld [vmem:[%s256 + $0x8] sm:$0xff]
      %282 = vst [vmem:[#allocation2] sm:$0xff] %v280
      %283 = vst [vmem:[#allocation2 + $0x8] sm:$0xff] %v281
      %v284 = vld [vmem:[%s267] sm:$0xff]
      %v285 = vld [vmem:[%s267 + $0x8] sm:$0xff]
      %286 = vst [vmem:[#allocation2 + $0x10] sm:$0xff] %v284
      %287 = vst [vmem:[#allocation2 + $0x18] sm:$0xff] %v285
      %v288 = vld [vmem:[%s2] sm:$0xff]
      %v289 = vld [vmem:[%s2 + $0x8] sm:$0xff]
      %v290 = vld [vmem:[%s2 + $0x10] sm:$0xff]
      %v291 = vld [vmem:[%s2 + $0x18] sm:$0xff]
      %v292 = vld [vmem:[%s2 + $0x20] sm:$0xff]
      %v293 = vld [vmem:[%s2 + $0x28] sm:$0xff]
      %v294 = vld [vmem:[%s2 + $0x30] sm:$0xff]
      %v295 = vld [vmem:[%s2 + $0x38] sm:$0xff]
      %v296 = vld [vmem:[%s2 + $0x40] sm:$0xff]
      %v297 = vld [vmem:[%s2 + $0x48] sm:$0xff]
      %v298 = vld [vmem:[%s2 + $0x50] sm:$0xff]
      %v299 = vld [vmem:[%s2 + $0x58] sm:$0xff]
      %v300 = vld [vmem:[%s2 + $0x60] sm:$0xff]
      %v301 = vld [vmem:[%s2 + $0x68] sm:$0xff]
      %v302 = vld [vmem:[%s2 + $0x70] sm:$0xff]
      %v303 = vld [vmem:[%s2 + $0x78] sm:$0xff]
      %v304 = vld [vmem:[#allocation2 + $0x1] sm:$0xff]
      %v305 = vld [vmem:[#allocation2 + $0x9] sm:$0xff]
      %s306 = scalar_lea.vmem %s2, 128
      %v307 = vld [vmem:[%s306] sm:$0xff]
      %v308 = vld [vmem:[%s306 + $0x8] sm:$0xff]
      %v309 = vld [vmem:[%s306 + $0x10] sm:$0xff]
      %v310 = vld [vmem:[%s306 + $0x18] sm:$0xff]
      %v311 = vld [vmem:[%s306 + $0x20] sm:$0xff]
      %v312 = vld [vmem:[%s306 + $0x28] sm:$0xff]
      %v313 = vld [vmem:[%s306 + $0x30] sm:$0xff]
      %v314 = vld [vmem:[%s306 + $0x38] sm:$0xff]
      %v315 = vld [vmem:[%s306 + $0x40] sm:$0xff]
      %v316 = vld [vmem:[%s306 + $0x48] sm:$0xff]
      %v317 = vld [vmem:[%s306 + $0x50] sm:$0xff]
      %v318 = vld [vmem:[%s306 + $0x58] sm:$0xff]
      %v319 = vld [vmem:[%s306 + $0x60] sm:$0xff]
      %v320 = vld [vmem:[%s306 + $0x68] sm:$0xff]
      %v321 = vld [vmem:[%s306 + $0x70] sm:$0xff]
      %v322 = vld [vmem:[%s306 + $0x78] sm:$0xff]
      %323 = vmatprep.subr.mxu0 0.0
      %324 = vmatpush1.msra.mxu0 %v307
      %325 = vmatprep.subr.mxu0 0.0
      %326 = vmatpush1.msra.mxu0 %v308
      %327 = vmatprep.subr.mxu0 0.0
      %328 = vmatpush1.msra.mxu0 %v309
      %329 = vmatprep.subr.mxu0 0.0
      %330 = vmatpush1.msra.mxu0 %v310
      %331 = vmatprep.subr.mxu0 0.0
      %332 = vmatpush1.msra.mxu0 %v311
      %333 = vmatprep.subr.mxu0 0.0
      %334 = vmatpush1.msra.mxu0 %v312
      %335 = vmatprep.subr.mxu0 0.0
      %336 = vmatpush1.msra.mxu0 %v313
      %337 = vmatprep.subr.mxu0 0.0
      %338 = vmatpush1.msra.mxu0 %v314
      %339 = vmatprep.subr.mxu0 0.0
      %340 = vmatpush1.msra.mxu0 %v315
      %341 = vmatprep.subr.mxu0 0.0
      %342 = vmatpush1.msra.mxu0 %v316
      %343 = vmatprep.subr.mxu0 0.0
      %344 = vmatpush1.msra.mxu0 %v317
      %345 = vmatprep.subr.mxu0 0.0
      %346 = vmatpush1.msra.mxu0 %v318
      %347 = vmatprep.subr.mxu0 0.0
      %348 = vmatpush1.msra.mxu0 %v319
      %349 = vmatprep.subr.mxu0 0.0
      %350 = vmatpush1.msra.mxu0 %v320
      %351 = vmatprep.subr.mxu0 0.0
      %352 = vmatpush1.msra.mxu0 %v321
      %353 = vmatprep.subr.mxu0 0.0
      %354 = vmatpush1.msra.mxu0 %v322
      %355 = vmatprep.subr.mxu0 0.0
      %356 = vmatpush1.msra.mxu0 0.0
      %357 = vmatprep.subr.mxu0 0.0
      %358 = vmatpush1.msra.mxu0 0.0
      %359 = vmatprep.subr.mxu0 0.0
      %360 = vmatpush1.msra.mxu0 0.0
      %361 = vmatprep.subr.mxu0 0.0
      %362 = vmatpush1.msra.mxu0 0.0
      %363 = vmatprep.subr.mxu0 0.0
      %364 = vmatpush1.msra.mxu0 0.0
      %365 = vmatprep.subr.mxu0 0.0
      %366 = vmatpush1.msra.mxu0 0.0
      %367 = vmatprep.subr.mxu0 0.0
      %368 = vmatpush1.msra.mxu0 0.0
      %369 = vmatprep.subr.mxu0 0.0
      %370 = vmatpush1.msra.mxu0 0.0
      %371 = vmatprep.subr.mxu0 0.0
      %372 = vmatpush1.msra.mxu0 0.0
      %373 = vmatprep.subr.mxu0 0.0
      %374 = vmatpush1.msra.mxu0 0.0
      %375 = vmatprep.subr.mxu0 0.0
      %376 = vmatpush1.msra.mxu0 0.0
      %377 = vmatprep.subr.mxu0 0.0
      %378 = vmatpush1.msra.mxu0 0.0
      %379 = vmatprep.subr.mxu0 0.0
      %380 = vmatpush1.msra.mxu0 0.0
      %381 = vmatprep.subr.mxu0 0.0
      %382 = vmatpush1.msra.mxu0 0.0
      %383 = vmatprep.subr.mxu0 0.0
      %384 = vmatpush1.msra.mxu0 0.0
      %385 = vmatprep.subr.mxu0 0.0
      %386 = vmatpush1.msra.mxu0 0.0
      %387 = vmatprep.mubr.f32.mxu0 0.0
      %388 = vmatmul.mubr.f32.gmra.mrb[0].mxu0 %v304
      %v389 = vpop.f32.mrb[0].mxu0
      %v390 = vadd.f32 0.0, %v389
      %v391 = vpop.f32.mrb[0].mxu0
      %392 = vmatprep.mubr.f32.mxu0 0.0
      %393 = vmatmul.mubr.f32.gmra.mrb[0].mxu0 %v305
      %v394 = vpop.f32.mrb[0].mxu0
      %v395 = vadd.f32 0.0, %v394
      %v396 = vpop.f32.mrb[0].mxu0
      %397 = vdwg.mxu0
      %398 = vmatprep.subr.mxu0 0.0
      %399 = vmatpush1.msra.mxu0 %v288
      %400 = vmatprep.subr.mxu0 0.0
      %401 = vmatpush1.msra.mxu0 %v289
      %402 = vmatprep.subr.mxu0 0.0
      %403 = vmatpush1.msra.mxu0 %v290
      %404 = vmatprep.subr.mxu0 0.0
      %405 = vmatpush1.msra.mxu0 %v291
      %406 = vmatprep.subr.mxu0 0.0
      %407 = vmatpush1.msra.mxu0 %v292
      %408 = vmatprep.subr.mxu0 0.0
      %409 = vmatpush1.msra.mxu0 %v293
      %410 = vmatprep.subr.mxu0 0.0
      %411 = vmatpush1.msra.mxu0 %v294
      %412 = vmatprep.subr.mxu0 0.0
      %413 = vmatpush1.msra.mxu0 %v295
      %414 = vmatprep.subr.mxu0 0.0
      %415 = vmatpush1.msra.mxu0 %v296
      %416 = vmatprep.subr.mxu0 0.0
      %417 = vmatpush1.msra.mxu0 %v297
      %418 = vmatprep.subr.mxu0 0.0
      %419 = vmatpush1.msra.mxu0 %v298
      %420 = vmatprep.subr.mxu0 0.0
      %421 = vmatpush1.msra.mxu0 %v299
      %422 = vmatprep.subr.mxu0 0.0
      %423 = vmatpush1.msra.mxu0 %v300
      %424 = vmatprep.subr.mxu0 0.0
      %425 = vmatpush1.msra.mxu0 %v301
      %426 = vmatprep.subr.mxu0 0.0
      %427 = vmatpush1.msra.mxu0 %v302
      %428 = vmatprep.subr.mxu0 0.0
      %429 = vmatpush1.msra.mxu0 %v303
      %430 = vmatprep.subr.mxu0 0.0
      %431 = vmatpush1.msra.mxu0 0.0
      %432 = vmatprep.subr.mxu0 0.0
      %433 = vmatpush1.msra.mxu0 0.0
      %434 = vmatprep.subr.mxu0 0.0
      %435 = vmatpush1.msra.mxu0 0.0
      %436 = vmatprep.subr.mxu0 0.0
      %437 = vmatpush1.msra.mxu0 0.0
      %438 = vmatprep.subr.mxu0 0.0
      %439 = vmatpush1.msra.mxu0 0.0
      %440 = vmatprep.subr.mxu0 0.0
      %441 = vmatpush1.msra.mxu0 0.0
      %442 = vmatprep.subr.mxu0 0.0
      %443 = vmatpush1.msra.mxu0 0.0
      %444 = vmatprep.subr.mxu0 0.0
      %445 = vmatpush1.msra.mxu0 0.0
      %446 = vmatprep.subr.mxu0 0.0
      %447 = vmatpush1.msra.mxu0 0.0
      %448 = vmatprep.subr.mxu0 0.0
      %449 = vmatpush1.msra.mxu0 0.0
      %450 = vmatprep.subr.mxu0 0.0
      %451 = vmatpush1.msra.mxu0 0.0
      %452 = vmatprep.subr.mxu0 0.0
      %453 = vmatpush1.msra.mxu0 0.0
      %454 = vmatprep.subr.mxu0 0.0
      %455 = vmatpush1.msra.mxu0 0.0
      %456 = vmatprep.subr.mxu0 0.0
      %457 = vmatpush1.msra.mxu0 0.0
      %458 = vmatprep.subr.mxu0 0.0
      %459 = vmatpush1.msra.mxu0 0.0
      %460 = vmatprep.subr.mxu0 0.0
      %461 = vmatpush1.msra.mxu0 0.0
      %462 = vmatprep.mubr.f32.mxu0 0.0
      %463 = vmatmul.mubr.f32.gmra.mrb[0].mxu0 %v280
      %v464 = vpop.f32.mrb[0].mxu0
      %v465 = vadd.f32 %v390, %v464
      %v466 = vpop.f32.mrb[0].mxu0
      %467 = vmatprep.mubr.f32.mxu0 0.0
      %468 = vmatmul.mubr.f32.gmra.mrb[0].mxu0 %v281
      %v469 = vpop.f32.mrb[0].mxu0
      %v470 = vadd.f32 %v395, %v469
      %v471 = vpop.f32.mrb[0].mxu0
      %472 = vdwg.mxu0
      %v473 = vld [vmem:[#allocation2 + $0x2] sm:$0xff]
      %v474 = vld [vmem:[#allocation2 + $0xa] sm:$0xff]
      %s475 = scalar_lea.vmem %s2, 256
      %v476 = vld [vmem:[%s475] sm:$0xff]
      %v477 = vld [vmem:[%s475 + $0x8] sm:$0xff]
      %v478 = vld [vmem:[%s475 + $0x10] sm:$0xff]
      %v479 = vld [vmem:[%s475 + $0x18] sm:$0xff]
      %v480 = vld [vmem:[%s475 + $0x20] sm:$0xff]
      %v481 = vld [vmem:[%s475 + $0x28] sm:$0xff]
      %v482 = vld [vmem:[%s475 + $0x30] sm:$0xff]
      %v483 = vld [vmem:[%s475 + $0x38] sm:$0xff]
      %v484 = vld [vmem:[%s475 + $0x40] sm:$0xff]
      %v485 = vld [vmem:[%s475 + $0x48] sm:$0xff]
      %v486 = vld [vmem:[%s475 + $0x50] sm:$0xff]
      %v487 = vld [vmem:[%s475 + $0x58] sm:$0xff]
      %v488 = vld [vmem:[%s475 + $0x60] sm:$0xff]
      %v489 = vld [vmem:[%s475 + $0x68] sm:$0xff]
      %v490 = vld [vmem:[%s475 + $0x70] sm:$0xff]
      %v491 = vld [vmem:[%s475 + $0x78] sm:$0xff]
      %492 = vmatprep.subr.mxu0 0.0
      %493 = vmatpush1.msra.mxu0 %v476
      %494 = vmatprep.subr.mxu0 0.0
      %495 = vmatpush1.msra.mxu0 %v477
      %496 = vmatprep.subr.mxu0 0.0
      %497 = vmatpush1.msra.mxu0 %v478
      %498 = vmatprep.subr.mxu0 0.0
      %499 = vmatpush1.msra.mxu0 %v479
      %500 = vmatprep.subr.mxu0 0.0
      %501 = vmatpush1.msra.mxu0 %v480
      %502 = vmatprep.subr.mxu0 0.0
      %503 = vmatpush1.msra.mxu0 %v481
      %504 = vmatprep.subr.mxu0 0.0
      %505 = vmatpush1.msra.mxu0 %v482
      %506 = vmatprep.subr.mxu0 0.0
      %507 = vmatpush1.msra.mxu0 %v483
      %508 = vmatprep.subr.mxu0 0.0
      %509 = vmatpush1.msra.mxu0 %v484
      %510 = vmatprep.subr.mxu0 0.0
      %511 = vmatpush1.msra.mxu0 %v485
      %512 = vmatprep.subr.mxu0 0.0
      %513 = vmatpush1.msra.mxu0 %v486
      %514 = vmatprep.subr.mxu0 0.0
      %515 = vmatpush1.msra.mxu0 %v487
      %516 = vmatprep.subr.mxu0 0.0
      %517 = vmatpush1.msra.mxu0 %v488
      %518 = vmatprep.subr.mxu0 0.0
      %519 = vmatpush1.msra.mxu0 %v489
      %520 = vmatprep.subr.mxu0 0.0
      %521 = vmatpush1.msra.mxu0 %v490
      %522 = vmatprep.subr.mxu0 0.0
      %523 = vmatpush1.msra.mxu0 %v491
      %524 = vmatprep.subr.mxu0 0.0
      %525 = vmatpush1.msra.mxu0 0.0
      %526 = vmatprep.subr.mxu0 0.0
      %527 = vmatpush1.msra.mxu0 0.0
      %528 = vmatprep.subr.mxu0 0.0
      %529 = vmatpush1.msra.mxu0 0.0
      %530 = vmatprep.subr.mxu0 0.0
      %531 = vmatpush1.msra.mxu0 0.0
      %532 = vmatprep.subr.mxu0 0.0
      %533 = vmatpush1.msra.mxu0 0.0
      %534 = vmatprep.subr.mxu0 0.0
      %535 = vmatpush1.msra.mxu0 0.0
      %536 = vmatprep.subr.mxu0 0.0
      %537 = vmatpush1.msra.mxu0 0.0
      %538 = vmatprep.subr.mxu0 0.0
      %539 = vmatpush1.msra.mxu0 0.0
      %540 = vmatprep.subr.mxu0 0.0
      %541 = vmatpush1.msra.mxu0 0.0
      %542 = vmatprep.subr.mxu0 0.0
      %543 = vmatpush1.msra.mxu0 0.0
      %544 = vmatprep.subr.mxu0 0.0
      %545 = vmatpush1.msra.mxu0 0.0
      %546 = vmatprep.subr.mxu0 0.0
      %547 = vmatpush1.msra.mxu0 0.0
      %548 = vmatprep.subr.mxu0 0.0
      %549 = vmatpush1.msra.mxu0 0.0
      %550 = vmatprep.subr.mxu0 0.0
      %551 = vmatpush1.msra.mxu0 0.0
      %552 = vmatprep.subr.mxu0 0.0
      %553 = vmatpush1.msra.mxu0 0.0
      %554 = vmatprep.subr.mxu0 0.0
      %555 = vmatpush1.msra.mxu0 0.0
      %556 = vmatprep.mubr.f32.mxu0 0.0
      %557 = vmatmul.mubr.f32.gmra.mrb[0].mxu0 %v473
      %v558 = vpop.f32.mrb[0].mxu0
      %v559 = vadd.f32 0.0, %v558
      %v560 = vpop.f32.mrb[0].mxu0
      %561 = vmatprep.mubr.f32.mxu0 0.0
      %562 = vmatmul.mubr.f32.gmra.mrb[0].mxu0 %v474
      %v563 = vpop.f32.mrb[0].mxu0
      %v564 = vadd.f32 0.0, %v563
      %v565 = vpop.f32.mrb[0].mxu0
      %566 = vdwg.mxu0
      %v567 = vadd.f32 %v465, %v559
      %v568 = vadd.f32 %v470, %v564
      %v569 = vld [vmem:[%s3] sm:$0x1]
      %v571 = vlaneseq
      %v572 = vshrl.u32 %v571, 7
      %v573 = vsub.s32 0, %v572
      %v574 = vrot.slane %v569, %v573
      %v576 = vadd.f32 %v567, %v574
      %v577 = vadd.f32 %v568, %v574
      %578 = vst [vmem:[%s278] sm:$0xff] %v576
      %579 = vst [vmem:[%s278 + $0x8] sm:$0xff] %v577
      %s580 = smul.u32 2, %s20
      %p581 = scmp.lt.s32.totalorder %s19, 1
      %s582 = scalar_select %p581, %s19, 1
      %p583 = scmp.lt.s32.totalorder %s580, 1
      %s584 = scalar_select %p583, %s580, 1
      %s585 = smul.addr %s582, 2
      %s586 = sadd.s32 %s584, %s585
      %s587 = smul.addr %s586, 8
      %s588 = scalar_lea.vmem %s4, %s587
      // Predicated region
      $region37: #{_lambda_.15} parent=35 // pred_check
        %p589 = pneg %p147
      $region38: #{_lambda_.15} parent=35 // pred_check_branch
        %591 = sbr.rel (%p589) target = $region40
      $region39: #{_lambda_.15} parent=35 // pred_region
        %s592 = smul.u32 2, %s20
      $region40: #{_lambda_.15} parent=35 // pred_fallthru
        _
    $region36: #{_lambda_.15} parent=5 // pred_fallthru
      _
    %p593 = scmp.le.s32.totalorder 2, %s10
    // Predicated region
    $region41: #{_lambda_.15} parent=5 // pred_check
      %p594 = pneg %p593
    $region42: #{_lambda_.15} parent=5 // pred_check_branch
      %596 = sbr.rel (%p594) target = $region44
    $region43: #{_lambda_.15} parent=5 // pred_region
      %s597 = ssub.s32 %s10, 2
      // Predicated region
      $region45: #{_lambda_.15} parent=43 // pred_check
        %p598 = pneg %p153
      $region46: #{_lambda_.15} parent=43 // pred_check_branch
        %600 = sbr.rel (%p598) target = $region48
      $region47: #{_lambda_.15} parent=43 // pred_region
        %s601 = smul.u32 2, %s22
        %p602 = scmp.lt.s32.totalorder %s21, 1
        %s603 = scalar_select %p602, %s21, 1
        %p604 = scmp.lt.s32.totalorder %s601, 1
        %s605 = scalar_select %p604, %s601, 1
        %s606 = smul.addr %s603, 2
        %s607 = sadd.s32 %s605, %s606
        %s608 = smul.addr %s607, 8
        %s609 = scalar_lea.vmem %s4, %s608
      $region48: #{_lambda_.15} parent=43 // pred_fallthru
        _
    $region44: #{_lambda_.15} parent=5 // pred_fallthru
      _
  $region6: #{_lambda_.15} parent=0 // loop_footer
    %s14 = sadd.s32 1, %s10
  $region7: #{_lambda_.15} parent=0 // loop_footer_branch
    %9 = sbr.rel target = $region3
  $region8: #{_lambda_.15} parent=0 // loop_exit
    _

</llo_original>
